<compile_context>
chip_gen: v6e
topology: v6e:2x2x1
jax: 0.10.0
libtpu: 0.0.40
codegen_flags: <defaults>
</compile_context>

<pallas_src>
import jax
import jax.numpy as jnp
from jax.experimental import pallas as pl
from jax.experimental.pallas import tpu as pltpu


# ------------------------------ Pallas kernel ------------------------------ #

def _fused_head_loss_kernel(x_ref, gt_ref, w1_ref, b1_ref, w2_ref, b2_ref,
                            hm_ref, sums_ref):
    """One (batch, row-tile) grid step.

    x_ref   : (1, H+2, W+2, C_in)  bf16  zero-padded NHWC input (resident per batch)
    gt_ref  : (TILE_M, C_cls)      f32   ground-truth heatmap tile (flattened rows)
    w1_ref  : (9, C_in, C_hid)     f32   3x3 conv weights, tap-major
    b1_ref  : (1, C_hid)           f32
    w2_ref  : (C_hid, C_cls)       f32   1x1 conv (head) weights
    b2_ref  : (1, C_cls)           f32
    hm_ref  : (TILE_M, C_cls)      f32   heatmap logits tile (output)
    sums_ref: (3,) SMEM f32              [sum(pos_loss), sum(neg_loss), num_pos]
    """
    b = pl.program_id(0)
    r = pl.program_id(1)

    tile_m, c_cls = hm_ref.shape
    _, hp, wp, c_in = x_ref.shape
    w = wp - 2
    tile_h = tile_m // w
    c_hid = w1_ref.shape[2]

    # ---- 3x3 conv as 9 shifted (TILE_M, C_in) @ (C_in, C_hid) matmuls ----
    # Load the halo row-slab once; upcast to f32 in VMEM (bf16 only for HBM/DMA).
    row0 = pl.multiple_of(r * tile_h, tile_h)
    halo = x_ref[0, pl.ds(row0, tile_h + 2), :, :].astype(jnp.float32)

    acc = jnp.zeros((tile_m, c_hid), jnp.float32)
    for dy in range(3):
        for dx in range(3):
            tap = halo[dy:dy + tile_h, dx:dx + w, :].reshape(tile_m, c_in)
            acc = acc + jnp.dot(tap, w1_ref[dy * 3 + dx],
                                preferred_element_type=jnp.float32)
    hidden = jnp.maximum(acc + b1_ref[...], 0.0)                     # ReLU (VPU)

    # ---- 1x1 conv head -> heatmap logits (stored, and reused for the loss) ----
    logits = jnp.dot(hidden, w2_ref[...],
                     preferred_element_type=jnp.float32) + b2_ref[...]
    hm_ref[...] = logits

    # ---- fused CenterNet focal-loss partial sums on the resident logits ----
    # TODO(synk): C_cls=2 keeps this elementwise block lane-sparse; a lane-dense
    # relayout would raise VPU/EUP utilization, but the kernel is HBM-bound.
    gt = gt_ref[...]
    pred = jnp.clip(jax.nn.sigmoid(logits), 1e-4, 1.0 - 1e-4)        # _sigmoid()
    pos_mask = (gt == 1.0).astype(jnp.float32)
    om_gt = 1.0 - gt
    om_gt2 = om_gt * om_gt
    neg_weights = om_gt2 * om_gt2           # (1-gt)^4 via squaring: no pow / NaN
    om_pred = 1.0 - pred
    pos_loss = jnp.log(pred) * (om_pred * om_pred) * pos_mask
    neg_loss = (jnp.log(om_pred) * (pred * pred)
                * neg_weights * (1.0 - pos_mask))

    @pl.when(jnp.logical_and(b == 0, r == 0))
    def _init():
        sums_ref[0] = 0.0
        sums_ref[1] = 0.0
        sums_ref[2] = 0.0

    sums_ref[0] += jnp.sum(pos_loss)
    sums_ref[1] += jnp.sum(neg_loss)
    sums_ref[2] += jnp.sum(pos_mask)


# ------------------------------ kernel wrapper ------------------------------ #

def _pick_tile_h(h, w, target_rows=2048):
    """Largest divisor of h with tile_h * w <= target_rows (>= 1)."""
    best = 1
    for t in range(1, h + 1):
        if h % t == 0 and t * w <= target_rows:
            best = t
    return best


def fused_head_and_focal(x_pad_bf16, gt_flat, w1, b1, w2, b2, *, tile_h):
    b, hp, wp, c_in = x_pad_bf16.shape
    h, w = hp - 2, wp - 2
    c_cls = w2.shape[1]
    assert h % tile_h == 0, "tile_h must divide H"
    r_tiles = h // tile_h
    tile_m = tile_h * w

    def flat_idx(bi, ri):
        return (bi * r_tiles + ri, 0)

    grid_spec = pltpu.PrefetchScalarGridSpec(
        num_scalar_prefetch=0,
        grid=(b, r_tiles),
        in_specs=[
            # Padded image: same block across the row-tile axis -> stays resident
            # in VMEM, re-DMAed only when the batch index changes.
            pl.BlockSpec((1, hp, wp, c_in), lambda bi, ri: (bi, 0, 0, 0)),
            pl.BlockSpec((tile_m, c_cls), flat_idx),            # gt tile (pipelined)
            pl.BlockSpec(w1.shape, lambda bi, ri: (0, 0, 0)),   # weights resident
            pl.BlockSpec(b1.shape, lambda bi, ri: (0, 0)),
            pl.BlockSpec(w2.shape, lambda bi, ri: (0, 0)),
            pl.BlockSpec(b2.shape, lambda bi, ri: (0, 0)),
        ],
        out_specs=[
            pl.BlockSpec((tile_m, c_cls), flat_idx),            # logits tile
            pl.BlockSpec(memory_space=pltpu.MemorySpace.SMEM),  # loss partial sums
        ],
    )

    return pl.pallas_call(
        _fused_head_loss_kernel,
        grid_spec=grid_spec,
        out_shape=(
            jax.ShapeDtypeStruct((b * h * w, c_cls), jnp.float32),
            jax.ShapeDtypeStruct((3,), jnp.float32),
        ),
        compiler_params=pltpu.CompilerParams(
            # The loss accumulator (SMEM output) is carried across both grid axes,
            # so both must stay serial.
            # TODO(synk): emit per-batch partial sums instead to allow "parallel"
            # on the batch axis (v7x megacore 2x).
            dimension_semantics=("arbitrary", "arbitrary"),
            vmem_limit_bytes=32 * 1024 * 1024,
        ),
    )(x_pad_bf16, gt_flat, w1, b1, w2, b2)


# --------------------------------- glue ------------------------------------ #

def model_with_loss_forward(batch, params, *, tile_h=None):
    """Mirrors ModleWithLoss.forward(batch) -> (outputs[-1], loss, loss_stats)."""
    w1, b1, w2, b2 = params

    pre_img = batch['pre_img'] if 'pre_img' in batch else None
    pre_hm = batch['pre_hm'] if 'pre_hm' in batch else None

    # --- self.model(batch['image'], pre_img, pre_hm) ---
    feats = [batch['image']]
    if pre_img is not None:
        feats.append(pre_img)
    if pre_hm is not None:
        feats.append(pre_hm)
    x = jnp.concatenate(feats, axis=1)                     # NCHW, C_in = 3+3+1 = 7
    bsz, c_in, h, w = x.shape

    # NHWC + spatial zero-pad (3x3, stride 1, pad 1).  Stored bf16 in HBM (conv
    # path is HBM-bound); the kernel upcasts to f32 in VMEM (v5e-safe VPU math).
    x_nhwc = jnp.transpose(x, (0, 2, 3, 1))
    x_pad = jnp.pad(x_nhwc, ((0, 0), (1, 1), (1, 1), (0, 0))).astype(jnp.bfloat16)

    c_cls = w2.shape[1]
    gt_flat = jnp.transpose(batch['hm'], (0, 2, 3, 1)).reshape(bsz * h * w, c_cls)
    gt_flat = gt_flat.astype(jnp.float32)

    if tile_h is None:
        tile_h = _pick_tile_h(h, w)

    hm_flat, sums = fused_head_and_focal(
        x_pad, gt_flat,
        w1.astype(jnp.float32), b1.reshape(1, -1).astype(jnp.float32),
        w2.astype(jnp.float32), b2.reshape(1, -1).astype(jnp.float32),
        tile_h=tile_h)

    hm_nchw = jnp.transpose(hm_flat.reshape(bsz, h, w, c_cls), (0, 3, 1, 2))
    outputs = [{'hm': hm_nchw}]                   # model returns list of head dicts

    # --- self.loss(outputs, batch) : focal loss on the 'hm' head ---
    pos_sum, neg_sum, num_pos = sums[0], sums[1], sums[2]
    hm_loss = jnp.where(num_pos > 0,
                        -(pos_sum + neg_sum) / jnp.maximum(num_pos, 1.0),
                        -neg_sum)
    loss = hm_loss                                # single-head total loss
    loss_stats = {'tot': loss, 'hm': hm_loss}

    return outputs[-1], loss, loss_stats


# ---------------------------------- main ------------------------------------ #

if __name__ == "__main__":
    key = jax.random.PRNGKey(0)
    B, H, W = 2, 16, 16
    C_img, C_pre_hm = 3, 1
    C_in = 2 * C_img + C_pre_hm        # image + pre_img + pre_hm = 7 channels
    C_hid, C_cls = 8, 2

    ks = jax.random.split(key, 6)
    image   = jax.random.normal(ks[0], (B, C_img, H, W), jnp.float32)
    pre_img = jax.random.normal(ks[1], (B, C_img, H, W), jnp.float32)
    pre_hm  = jax.random.uniform(ks[2], (B, C_pre_hm, H, W), jnp.float32)

    # Ground-truth heatmap in [0, 0.9) with a few exact peaks at 1.0.
    gt_hm = jax.random.uniform(ks[3], (B, C_cls, H, W), jnp.float32) * 0.9
    gt_hm = gt_hm.at[:, :, 4, 4].set(1.0)
    gt_hm = gt_hm.at[:, :, 10, 7].set(1.0)

    # Deterministic synthetic parameters (shapes implied by the conv head).
    w1 = jax.random.normal(ks[4], (9, C_in, C_hid), jnp.float32) * 0.1
    b1 = jnp.zeros((C_hid,), jnp.float32)
    w2 = jax.random.normal(ks[5], (C_hid, C_cls), jnp.float32) * 0.1
    b2 = jnp.full((C_cls,), -2.19, jnp.float32)      # CenterNet hm-bias init

    batch = {'image': image, 'pre_img': pre_img, 'pre_hm': pre_hm, 'hm': gt_hm}

    # tile_h=8 -> grid (B=2, row-tiles=2): exercises the pipelined tiling path.
    out_last, loss, loss_stats = model_with_loss_forward(
        batch, (w1, b1, w2, b2), tile_h=8)
    jax.block_until_ready(loss)
    assert out_last['hm'].shape == (B, C_cls, H, W)
    assert bool(jnp.isfinite(loss))
    print("KERNEL_OK")
</pallas_src>

<mosaic_0001>
module attributes {stable_mosaic.version = 11 : i64} {
  func.func @_fused_head_loss_kernel(%arg0: i32, %arg1: i32, %arg2: memref<1x18x18x7xbf16, #tpu.memory_space<vmem>>, %arg3: memref<128x2xf32, #tpu.memory_space<vmem>>, %arg4: memref<9x7x8xf32, #tpu.memory_space<vmem>>, %arg5: memref<1x8xf32, #tpu.memory_space<vmem>>, %arg6: memref<8x2xf32, #tpu.memory_space<vmem>>, %arg7: memref<1x2xf32, #tpu.memory_space<vmem>>, %arg8: memref<128x2xf32, #tpu.memory_space<vmem>>, %arg9: memref<3xf32, #tpu.memory_space<smem>>) attributes {dimension_semantics = [#tpu.dimension_semantics<arbitrary>, #tpu.dimension_semantics<arbitrary>], iteration_bounds = array<i64: 2, 2>, scalar_prefetch = 0 : i64, scratch_operands = 0 : i64, tpu.core_type = #tpu.core_type<tc>, window_params = [{transform_indices = @transform_0, window_bounds = array<i64: 1, 18, 18, 7>}, {transform_indices = @transform_1, window_bounds = array<i64: 128, 2>}, {pipeline_mode = #tpu.pipeline_mode<synchronous>, transform_indices = @transform_2, window_bounds = array<i64: 9, 7, 8>}, {pipeline_mode = #tpu.pipeline_mode<synchronous>, transform_indices = @transform_3, window_bounds = array<i64: 1, 8>}, {pipeline_mode = #tpu.pipeline_mode<synchronous>, transform_indices = @transform_4, window_bounds = array<i64: 8, 2>}, {pipeline_mode = #tpu.pipeline_mode<synchronous>, transform_indices = @transform_5, window_bounds = array<i64: 1, 2>}, {transform_indices = @transform_6, window_bounds = array<i64: 128, 2>}, {transform_indices = @transform_7, window_bounds = array<i64: 3>}]} {
    %c8_i32 = arith.constant 8 : i32
    %0 = arith.muli %arg1, %c8_i32 : i32
    %1 = tpu.assume_multiple %0, 8 : i32
    %c0 = arith.constant 0 : index
    %2 = arith.index_cast %1 : i32 to index
    %c0_0 = arith.constant 0 : index
    %c0_1 = arith.constant 0 : index
    %3 = vector.load %arg2[%c0, %2, %c0_0, %c0_1] : memref<1x18x18x7xbf16, #tpu.memory_space<vmem>>, vector<1x10x18x7xbf16>
    %4 = vector.shape_cast %3 : vector<1x10x18x7xbf16> to vector<10x18x7xbf16>
    %5 = arith.extf %4 : vector<10x18x7xbf16> to vector<10x18x7xf32>
    %cst = arith.constant 0.000000e+00 : f32
    %6 = vector.broadcast %cst : f32 to vector<128x8xf32>
    %7 = vector.extract_strided_slice %5 {offsets = [0, 0, 0], sizes = [8, 16, 7], strides = [1, 1, 1]} : vector<10x18x7xf32> to vector<8x16x7xf32>
    %8 = vector.shape_cast %7 : vector<8x16x7xf32> to vector<128x7xf32>
    %c0_2 = arith.constant 0 : index
    %c0_3 = arith.constant 0 : index
    %c0_4 = arith.constant 0 : index
    %9 = vector.load %arg4[%c0_2, %c0_3, %c0_4] : memref<9x7x8xf32, #tpu.memory_space<vmem>>, vector<1x7x8xf32>
    %10 = vector.shape_cast %9 : vector<1x7x8xf32> to vector<7x8xf32>
    %cst_5 = arith.constant dense<0.000000e+00> : vector<128x8xf32>
    %11 = tpu.matmul %8, %10, %cst_5 {dimension_numbers = #tpu.dot_dimension_numbers<[1], [0], [0], [1], [0, 0, 1, 1], [], []>} : vector<128x7xf32>, vector<7x8xf32>, vector<128x8xf32> -> vector<128x8xf32>
    %12 = arith.addf %6, %11 : vector<128x8xf32>
    %13 = vector.extract_strided_slice %5 {offsets = [0, 1, 0], sizes = [8, 16, 7], strides = [1, 1, 1]} : vector<10x18x7xf32> to vector<8x16x7xf32>
    %14 = vector.shape_cast %13 : vector<8x16x7xf32> to vector<128x7xf32>
    %c1 = arith.constant 1 : index
    %c0_6 = arith.constant 0 : index
    %c0_7 = arith.constant 0 : index
    %15 = vector.load %arg4[%c1, %c0_6, %c0_7] : memref<9x7x8xf32, #tpu.memory_space<vmem>>, vector<1x7x8xf32>
    %16 = vector.shape_cast %15 : vector<1x7x8xf32> to vector<7x8xf32>
    %cst_8 = arith.constant dense<0.000000e+00> : vector<128x8xf32>
    %17 = tpu.matmul %14, %16, %cst_8 {dimension_numbers = #tpu.dot_dimension_numbers<[1], [0], [0], [1], [0, 0, 1, 1], [], []>} : vector<128x7xf32>, vector<7x8xf32>, vector<128x8xf32> -> vector<128x8xf32>
    %18 = arith.addf %12, %17 : vector<128x8xf32>
    %19 = vector.extract_strided_slice %5 {offsets = [0, 2, 0], sizes = [8, 16, 7], strides = [1, 1, 1]} : vector<10x18x7xf32> to vector<8x16x7xf32>
    %20 = vector.shape_cast %19 : vector<8x16x7xf32> to vector<128x7xf32>
    %c2 = arith.constant 2 : index
    %c0_9 = arith.constant 0 : index
    %c0_10 = arith.constant 0 : index
    %21 = vector.load %arg4[%c2, %c0_9, %c0_10] : memref<9x7x8xf32, #tpu.memory_space<vmem>>, vector<1x7x8xf32>
    %22 = vector.shape_cast %21 : vector<1x7x8xf32> to vector<7x8xf32>
    %cst_11 = arith.constant dense<0.000000e+00> : vector<128x8xf32>
    %23 = tpu.matmul %20, %22, %cst_11 {dimension_numbers = #tpu.dot_dimension_numbers<[1], [0], [0], [1], [0, 0, 1, 1], [], []>} : vector<128x7xf32>, vector<7x8xf32>, vector<128x8xf32> -> vector<128x8xf32>
    %24 = arith.addf %18, %23 : vector<128x8xf32>
    %25 = vector.extract_strided_slice %5 {offsets = [1, 0, 0], sizes = [8, 16, 7], strides = [1, 1, 1]} : vector<10x18x7xf32> to vector<8x16x7xf32>
    %26 = vector.shape_cast %25 : vector<8x16x7xf32> to vector<128x7xf32>
    %c3 = arith.constant 3 : index
    %c0_12 = arith.constant 0 : index
    %c0_13 = arith.constant 0 : index
    %27 = vector.load %arg4[%c3, %c0_12, %c0_13] : memref<9x7x8xf32, #tpu.memory_space<vmem>>, vector<1x7x8xf32>
    %28 = vector.shape_cast %27 : vector<1x7x8xf32> to vector<7x8xf32>
    %cst_14 = arith.constant dense<0.000000e+00> : vector<128x8xf32>
    %29 = tpu.matmul %26, %28, %cst_14 {dimension_numbers = #tpu.dot_dimension_numbers<[1], [0], [0], [1], [0, 0, 1, 1], [], []>} : vector<128x7xf32>, vector<7x8xf32>, vector<128x8xf32> -> vector<128x8xf32>
    %30 = arith.addf %24, %29 : vector<128x8xf32>
    %31 = vector.extract_strided_slice %5 {offsets = [1, 1, 0], sizes = [8, 16, 7], strides = [1, 1, 1]} : vector<10x18x7xf32> to vector<8x16x7xf32>
    %32 = vector.shape_cast %31 : vector<8x16x7xf32> to vector<128x7xf32>
    %c4 = arith.constant 4 : index
    %c0_15 = arith.constant 0 : index
    %c0_16 = arith.constant 0 : index
    %33 = vector.load %arg4[%c4, %c0_15, %c0_16] : memref<9x7x8xf32, #tpu.memory_space<vmem>>, vector<1x7x8xf32>
    %34 = vector.shape_cast %33 : vector<1x7x8xf32> to vector<7x8xf32>
    %cst_17 = arith.constant dense<0.000000e+00> : vector<128x8xf32>
    %35 = tpu.matmul %32, %34, %cst_17 {dimension_numbers = #tpu.dot_dimension_numbers<[1], [0], [0], [1], [0, 0, 1, 1], [], []>} : vector<128x7xf32>, vector<7x8xf32>, vector<128x8xf32> -> vector<128x8xf32>
    %36 = arith.addf %30, %35 : vector<128x8xf32>
    %37 = vector.extract_strided_slice %5 {offsets = [1, 2, 0], sizes = [8, 16, 7], strides = [1, 1, 1]} : vector<10x18x7xf32> to vector<8x16x7xf32>
    %38 = vector.shape_cast %37 : vector<8x16x7xf32> to vector<128x7xf32>
    %c5 = arith.constant 5 : index
    %c0_18 = arith.constant 0 : index
    %c0_19 = arith.constant 0 : index
    %39 = vector.load %arg4[%c5, %c0_18, %c0_19] : memref<9x7x8xf32, #tpu.memory_space<vmem>>, vector<1x7x8xf32>
    %40 = vector.shape_cast %39 : vector<1x7x8xf32> to vector<7x8xf32>
    %cst_20 = arith.constant dense<0.000000e+00> : vector<128x8xf32>
    %41 = tpu.matmul %38, %40, %cst_20 {dimension_numbers = #tpu.dot_dimension_numbers<[1], [0], [0], [1], [0, 0, 1, 1], [], []>} : vector<128x7xf32>, vector<7x8xf32>, vector<128x8xf32> -> vector<128x8xf32>
    %42 = arith.addf %36, %41 : vector<128x8xf32>
    %43 = vector.extract_strided_slice %5 {offsets = [2, 0, 0], sizes = [8, 16, 7], strides = [1, 1, 1]} : vector<10x18x7xf32> to vector<8x16x7xf32>
    %44 = vector.shape_cast %43 : vector<8x16x7xf32> to vector<128x7xf32>
    %c6 = arith.constant 6 : index
    %c0_21 = arith.constant 0 : index
    %c0_22 = arith.constant 0 : index
    %45 = vector.load %arg4[%c6, %c0_21, %c0_22] : memref<9x7x8xf32, #tpu.memory_space<vmem>>, vector<1x7x8xf32>
    %46 = vector.shape_cast %45 : vector<1x7x8xf32> to vector<7x8xf32>
    %cst_23 = arith.constant dense<0.000000e+00> : vector<128x8xf32>
    %47 = tpu.matmul %44, %46, %cst_23 {dimension_numbers = #tpu.dot_dimension_numbers<[1], [0], [0], [1], [0, 0, 1, 1], [], []>} : vector<128x7xf32>, vector<7x8xf32>, vector<128x8xf32> -> vector<128x8xf32>
    %48 = arith.addf %42, %47 : vector<128x8xf32>
    %49 = vector.extract_strided_slice %5 {offsets = [2, 1, 0], sizes = [8, 16, 7], strides = [1, 1, 1]} : vector<10x18x7xf32> to vector<8x16x7xf32>
    %50 = vector.shape_cast %49 : vector<8x16x7xf32> to vector<128x7xf32>
    %c7 = arith.constant 7 : index
    %c0_24 = arith.constant 0 : index
    %c0_25 = arith.constant 0 : index
    %51 = vector.load %arg4[%c7, %c0_24, %c0_25] : memref<9x7x8xf32, #tpu.memory_space<vmem>>, vector<1x7x8xf32>
    %52 = vector.shape_cast %51 : vector<1x7x8xf32> to vector<7x8xf32>
    %cst_26 = arith.constant dense<0.000000e+00> : vector<128x8xf32>
    %53 = tpu.matmul %50, %52, %cst_26 {dimension_numbers = #tpu.dot_dimension_numbers<[1], [0], [0], [1], [0, 0, 1, 1], [], []>} : vector<128x7xf32>, vector<7x8xf32>, vector<128x8xf32> -> vector<128x8xf32>
    %54 = arith.addf %48, %53 : vector<128x8xf32>
    %55 = vector.extract_strided_slice %5 {offsets = [2, 2, 0], sizes = [8, 16, 7], strides = [1, 1, 1]} : vector<10x18x7xf32> to vector<8x16x7xf32>
    %56 = vector.shape_cast %55 : vector<8x16x7xf32> to vector<128x7xf32>
    %c8 = arith.constant 8 : index
    %c0_27 = arith.constant 0 : index
    %c0_28 = arith.constant 0 : index
    %57 = vector.load %arg4[%c8, %c0_27, %c0_28] : memref<9x7x8xf32, #tpu.memory_space<vmem>>, vector<1x7x8xf32>
    %58 = vector.shape_cast %57 : vector<1x7x8xf32> to vector<7x8xf32>
    %cst_29 = arith.constant dense<0.000000e+00> : vector<128x8xf32>
    %59 = tpu.matmul %56, %58, %cst_29 {dimension_numbers = #tpu.dot_dimension_numbers<[1], [0], [0], [1], [0, 0, 1, 1], [], []>} : vector<128x7xf32>, vector<7x8xf32>, vector<128x8xf32> -> vector<128x8xf32>
    %60 = arith.addf %54, %59 : vector<128x8xf32>
    %c0_30 = arith.constant 0 : index
    %c0_31 = arith.constant 0 : index
    %61 = vector.load %arg5[%c0_30, %c0_31] : memref<1x8xf32, #tpu.memory_space<vmem>>, vector<1x8xf32>
    %62 = vector.broadcast %61 : vector<1x8xf32> to vector<128x8xf32>
    %63 = arith.addf %60, %62 : vector<128x8xf32>
    %cst_32 = arith.constant 0.000000e+00 : f32
    %64 = vector.broadcast %cst_32 : f32 to vector<128x8xf32>
    %65 = arith.maximumf %63, %64 : vector<128x8xf32>
    %c0_33 = arith.constant 0 : index
    %c0_34 = arith.constant 0 : index
    %66 = vector.load %arg6[%c0_33, %c0_34] : memref<8x2xf32, #tpu.memory_space<vmem>>, vector<8x2xf32>
    %cst_35 = arith.constant dense<0.000000e+00> : vector<128x2xf32>
    %67 = tpu.matmul %65, %66, %cst_35 {dimension_numbers = #tpu.dot_dimension_numbers<[1], [0], [0], [1], [0, 0, 1, 1], [], []>} : vector<128x8xf32>, vector<8x2xf32>, vector<128x2xf32> -> vector<128x2xf32>
    %c0_36 = arith.constant 0 : index
    %c0_37 = arith.constant 0 : index
    %68 = vector.load %arg7[%c0_36, %c0_37] : memref<1x2xf32, #tpu.memory_space<vmem>>, vector<1x2xf32>
    %69 = vector.broadcast %68 : vector<1x2xf32> to vector<128x2xf32>
    %70 = arith.addf %67, %69 : vector<128x2xf32>
    %c0_38 = arith.constant 0 : index
    %c0_39 = arith.constant 0 : index
    %71 = vector.load %arg8[%c0_38, %c0_39] : memref<128x2xf32, #tpu.memory_space<vmem>>, vector<128x2xf32>
    tpu.vector_store %arg8[%c0_38, %c0_39], %70 {strides = array<i32>} : memref<128x2xf32, #tpu.memory_space<vmem>>, vector<128x2xf32>,
    %c0_40 = arith.constant 0 : index
    %c0_41 = arith.constant 0 : index
    %72 = vector.load %arg3[%c0_40, %c0_41] : memref<128x2xf32, #tpu.memory_space<vmem>>, vector<128x2xf32>
    %73 = arith.negf %70 : vector<128x2xf32>
    %74 = math.exp %73 : vector<128x2xf32>
    %cst_42 = arith.constant 1.000000e+00 : f32
    %75 = vector.broadcast %cst_42 : f32 to vector<128x2xf32>
    %76 = arith.addf %75, %74 : vector<128x2xf32>
    %77 = arith.divf %75, %76 : vector<128x2xf32>
    %cst_43 = arith.constant 9.99999974E-5 : f32
    %cst_44 = arith.constant 0.999899983 : f32
    %78 = vector.broadcast %cst_43 : f32 to vector<128x2xf32>
    %79 = arith.maximumf %78, %77 : vector<128x2xf32>
    %80 = vector.broadcast %cst_44 : f32 to vector<128x2xf32>
    %81 = arith.minimumf %80, %79 : vector<128x2xf32>
    %cst_45 = arith.constant 1.000000e+00 : f32
    %82 = vector.broadcast %cst_45 : f32 to vector<128x2xf32>
    %83 = arith.cmpf oeq, %72, %82 : vector<128x2xf32>
    %84 = arith.extui %83 : vector<128x2xi1> to vector<128x2xi32>
    %85 = arith.sitofp %84 : vector<128x2xi32> to vector<128x2xf32>
    %cst_46 = arith.constant 1.000000e+00 : f32
    %86 = vector.broadcast %cst_46 : f32 to vector<128x2xf32>
    %87 = arith.subf %86, %72 : vector<128x2xf32>
    %88 = arith.mulf %87, %87 : vector<128x2xf32>
    %89 = arith.mulf %88, %88 : vector<128x2xf32>
    %cst_47 = arith.constant 1.000000e+00 : f32
    %90 = vector.broadcast %cst_47 : f32 to vector<128x2xf32>
    %91 = arith.subf %90, %81 : vector<128x2xf32>
    %92 = math.log %81 : vector<128x2xf32>
    %93 = arith.mulf %91, %91 : vector<128x2xf32>
    %94 = arith.mulf %92, %93 : vector<128x2xf32>
    %95 = arith.mulf %94, %85 : vector<128x2xf32>
    %96 = math.log %91 : vector<128x2xf32>
    %97 = arith.mulf %81, %81 : vector<128x2xf32>
    %98 = arith.mulf %96, %97 : vector<128x2xf32>
    %99 = arith.mulf %98, %89 : vector<128x2xf32>
    %cst_48 = arith.constant 1.000000e+00 : f32
    %100 = vector.broadcast %cst_48 : f32 to vector<128x2xf32>
    %101 = arith.subf %100, %85 : vector<128x2xf32>
    %102 = arith.mulf %99, %101 : vector<128x2xf32>
    %c0_i32 = arith.constant 0 : i32
    %103 = arith.cmpi eq, %arg0, %c0_i32 : i32
    %c0_i32_49 = arith.constant 0 : i32
    %104 = arith.cmpi eq, %arg1, %c0_i32_49 : i32
    %105 = arith.andi %103, %104 : i1
    %106 = arith.extui %105 : i1 to i32
    %c0_i32_50 = arith.constant 0 : i32
    %107 = arith.cmpi ne, %106, %c0_i32_50 : i32
    scf.if %107 {
      %cst_60 = arith.constant 0.000000e+00 : f32
      %c0_61 = arith.constant 0 : index
      %129 = memref.load %arg9[%c0_61] : memref<3xf32, #tpu.memory_space<smem>>
      memref.store %cst_60, %arg9[%c0_61] : memref<3xf32, #tpu.memory_space<smem>>
      %cst_62 = arith.constant 0.000000e+00 : f32
      %c1_63 = arith.constant 1 : index
      %130 = memref.load %arg9[%c1_63] : memref<3xf32, #tpu.memory_space<smem>>
      memref.store %cst_62, %arg9[%c1_63] : memref<3xf32, #tpu.memory_space<smem>>
      %cst_64 = arith.constant 0.000000e+00 : f32
      %c2_65 = arith.constant 2 : index
      %131 = memref.load %arg9[%c2_65] : memref<3xf32, #tpu.memory_space<smem>>
      memref.store %cst_64, %arg9[%c2_65] : memref<3xf32, #tpu.memory_space<smem>>
    } else {
    }
    %c0_51 = arith.constant 0 : index
    %108 = memref.load %arg9[%c0_51] : memref<3xf32, #tpu.memory_space<smem>>
    %109 = vector.shape_cast %95 : vector<128x2xf32> to vector<1x128x2xf32>
    %cst_52 = arith.constant dense<0.000000e+00> : vector<1xf32>
    %110 = vector.multi_reduction <add>, %109, %cst_52 [1, 2] : vector<1x128x2xf32> to vector<1xf32>
    %111 = vector.shape_cast %110 : vector<1xf32> to vector<1x1x1xf32>
    %112 = vector.extract %111[0, 0, 0] : f32 from vector<1x1x1xf32>
    %113 = arith.addf %108, %112 : f32
    %c0_53 = arith.constant 0 : index
    %114 = memref.load %arg9[%c0_53] : memref<3xf32, #tpu.memory_space<smem>>
    memref.store %113, %arg9[%c0_53] : memref<3xf32, #tpu.memory_space<smem>>
    %c1_54 = arith.constant 1 : index
    %115 = memref.load %arg9[%c1_54] : memref<3xf32, #tpu.memory_space<smem>>
    %116 = vector.shape_cast %102 : vector<128x2xf32> to vector<1x128x2xf32>
    %cst_55 = arith.constant dense<0.000000e+00> : vector<1xf32>
    %117 = vector.multi_reduction <add>, %116, %cst_55 [1, 2] : vector<1x128x2xf32> to vector<1xf32>
    %118 = vector.shape_cast %117 : vector<1xf32> to vector<1x1x1xf32>
    %119 = vector.extract %118[0, 0, 0] : f32 from vector<1x1x1xf32>
    %120 = arith.addf %115, %119 : f32
    %c1_56 = arith.constant 1 : index
    %121 = memref.load %arg9[%c1_56] : memref<3xf32, #tpu.memory_space<smem>>
    memref.store %120, %arg9[%c1_56] : memref<3xf32, #tpu.memory_space<smem>>
    %c2_57 = arith.constant 2 : index
    %122 = memref.load %arg9[%c2_57] : memref<3xf32, #tpu.memory_space<smem>>
    %123 = vector.shape_cast %85 : vector<128x2xf32> to vector<1x128x2xf32>
    %cst_58 = arith.constant dense<0.000000e+00> : vector<1xf32>
    %124 = vector.multi_reduction <add>, %123, %cst_58 [1, 2] : vector<1x128x2xf32> to vector<1xf32>
    %125 = vector.shape_cast %124 : vector<1xf32> to vector<1x1x1xf32>
    %126 = vector.extract %125[0, 0, 0] : f32 from vector<1x1x1xf32>
    %127 = arith.addf %122, %126 : f32
    %c2_59 = arith.constant 2 : index
    %128 = memref.load %arg9[%c2_59] : memref<3xf32, #tpu.memory_space<smem>>
    memref.store %127, %arg9[%c2_59] : memref<3xf32, #tpu.memory_space<smem>>
    return
  }
  func.func @transform_0(%arg0: i32, %arg1: i32) -> (i32, i32, i32, i32) {
    %c0_i32 = arith.constant 0 : i32
    %c0_i32_0 = arith.constant 0 : i32
    %c0_i32_1 = arith.constant 0 : i32
    %c0_i32_2 = arith.constant 0 : i32
    return %arg0, %c0_i32, %c0_i32_0, %c0_i32_1 : i32, i32, i32, i32
  }
  func.func @transform_1(%arg0: i32, %arg1: i32) -> (i32, i32) {
    %c2_i32 = arith.constant 2 : i32
    %0 = arith.muli %arg0, %c2_i32 : i32
    %1 = arith.addi %0, %arg1 : i32
    %c0_i32 = arith.constant 0 : i32
    %c0_i32_0 = arith.constant 0 : i32
    return %1, %c0_i32 : i32, i32
  }
  func.func @transform_2(%arg0: i32, %arg1: i32) -> (i32, i32, i32) {
    %c0_i32 = arith.constant 0 : i32
    %c0_i32_0 = arith.constant 0 : i32
    %c0_i32_1 = arith.constant 0 : i32
    %c0_i32_2 = arith.constant 0 : i32
    return %c0_i32, %c0_i32_0, %c0_i32_1 : i32, i32, i32
  }
  func.func @transform_3(%arg0: i32, %arg1: i32) -> (i32, i32) {
    %c0_i32 = arith.constant 0 : i32
    %c0_i32_0 = arith.constant 0 : i32
    %c0_i32_1 = arith.constant 0 : i32
    return %c0_i32, %c0_i32_0 : i32, i32
  }
  func.func @transform_4(%arg0: i32, %arg1: i32) -> (i32, i32) {
    %c0_i32 = arith.constant 0 : i32
    %c0_i32_0 = arith.constant 0 : i32
    %c0_i32_1 = arith.constant 0 : i32
    return %c0_i32, %c0_i32_0 : i32, i32
  }
  func.func @transform_5(%arg0: i32, %arg1: i32) -> (i32, i32) {
    %c0_i32 = arith.constant 0 : i32
    %c0_i32_0 = arith.constant 0 : i32
    %c0_i32_1 = arith.constant 0 : i32
    return %c0_i32, %c0_i32_0 : i32, i32
  }
  func.func @transform_6(%arg0: i32, %arg1: i32) -> (i32, i32) {
    %c2_i32 = arith.constant 2 : i32
    %0 = arith.muli %arg0, %c2_i32 : i32
    %1 = arith.addi %0, %arg1 : i32
    %c0_i32 = arith.constant 0 : i32
    %c0_i32_0 = arith.constant 0 : i32
    return %1, %c0_i32 : i32, i32
  }
  func.func @transform_7(%arg0: i32, %arg1: i32) -> i32 {
    %c0_i32 = arith.constant 0 : i32
    %c0_i32_0 = arith.constant 0 : i32
    return %c0_i32 : i32
  }
}

</mosaic_0001>

<llo_original>
// kernel: tpu_custom_call.1
$region0: #{tpu_custom_call.1}
  #allocation0 [shape = 'u32[]', space=smem, size = 0x4, offset = 0x4, fixed_abs, tag = 'smem constant byte address 0x4 - core index']
  #allocation1 [shape = 'u32[144,128]{1,0:T(1,128)}', space=vmem, size = 0x12000, scoped, tag = 'internal scratch']
  %s0 = inlined_call_operand.vmem [shape: bf16[2,18,18,7], index: 0, kind: input, shape index: {}]
  %s1 = inlined_call_operand.vmem [shape: f32[512,2], index: 1, kind: input, shape index: {}]
  %s2 = inlined_call_operand.vmem [shape: f32[9,7,8], index: 2, kind: input, shape index: {}]
  %s3 = inlined_call_operand.vmem [shape: f32[1,8], index: 3, kind: input, shape index: {}]
  %s4 = inlined_call_operand.vmem [shape: f32[8,2], index: 4, kind: input, shape index: {}]
  %s5 = inlined_call_operand.vmem [shape: f32[1,2], index: 5, kind: input, shape index: {}]
  %s6 = inlined_call_operand.vmem [shape: f32[512,2], index: 6, kind: output, shape index: {0}]
  %s7 = inlined_call_operand.hbm [shape: f32[3], index: 7, kind: output, shape index: {1}]
  %8 = xla_tuple %s6, %s7
  %s9 = sld [smem:[#allocation0]]
  $region69: #{tpu_custom_call.1} parent=0
    _
  %s11 = ssub.s32 1, %s9
  %s12 = scalar_select 0, %s11, %s9
  $region1: #{tpu_custom_call.1} parent=0
    #allocation2 [shape = 'u8[512]{0}', space=smem, size = 0x200, scoped, tag = 'output window, operand 1, single buffered']
    #allocation3 [shape = 's32[2]{0}', space=sflag, size = 0x8, scoped, tag = 'scoped memory for tpu_custom_call.1']
    %13 = vsyncpa [#allocation3], 0
    loop: start=0, step=1, limit=6
    $region2: #{tpu_custom_call.1} parent=1 // loop_pre_header
      _
    $region3: #{tpu_custom_call.1} parent=1 // loop_header
      %s15 = sphi 0, %s19
      %p16 = scmp.ge.s32.totalorder %s15, 6
      %s22 = sphi 0, %s34
      %s23 = sphi 0, %s30
      %s24 = sphi 0, %s22
      %s25 = sphi 0, %s23
      %s26 = sphi 0, %s24
      %s27 = sphi 0, %s25
      %s37 = sphi 0, %s39
      %s40 = sphi 0, %s37
      %s41 = sphi 0, %s40
      %s57 = sphi 0, %s41
      %s67 = sphi 0, %s69
      %s70 = sphi 0, %s67
      %s71 = sphi 0, %s70
      %s87 = sphi 0, %s71
      %s91 = sphi 0, %s91
      %s93 = sphi 0, %s91
      %s94 = sphi 0, %s93
      %s108 = sphi 0, %s94
      %s112 = sphi 0, %s112
      %s114 = sphi 0, %s112
      %s115 = sphi 0, %s114
      %s129 = sphi 0, %s115
      %s133 = sphi 0, %s133
      %s135 = sphi 0, %s133
      %s136 = sphi 0, %s135
      %s150 = sphi 0, %s136
      %s154 = sphi 0, %s154
      %s156 = sphi 0, %s154
      %s157 = sphi 0, %s156
      %s171 = sphi 0, %s157
      %s181 = sphi 0, %s183
      %s184 = sphi 0, %s181
      %s185 = sphi 0, %s184
      %s201 = sphi 0, %s185
      %s205 = sphi 0, %s205
      %s207 = sphi 0, %s205
      %s208 = sphi 0, %s207
      %s222 = sphi 0, %s208
    $region4: #{tpu_custom_call.1} parent=1 // loop_header_branch
      %18 = sbr.rel (%p16) target = $region8
    $region5: #{tpu_custom_call.1} parent=1 // loop_body
      %s20 = ssub.s32 %s15, 1
      %s21 = ssub.s32 %s15, 2
      %s28 = sadd.s32 1, %s23
      %p29 = scmp.ge.s32.totalorder %s28, 2
      %s30 = scalar_select %p29, 0, %s28
      %s31 = sadd.s32 1, %s22
      %s32 = scalar_select %p29, %s31, %s22
      %p33 = scmp.ge.s32.totalorder %s32, 2
      %s34 = scalar_select %p33, 0, %s32
      %s35 = ssub.s32 %s22, %s34
      %p36 = scmp.eq.s32.totalorder %s35, 0
      %s38 = sadd.s32 %s37, 1
      %s39 = scalar_select %p36, %s37, %s38
      %p42 = pneg %p36
      %p43 = scmp.eq.s32.totalorder %s15, 3
      %p44 = por %p42, %p43
      %p45 = scmp.ne.s32.totalorder %s37, %s40
      %p46 = scmp.eq.s32.totalorder %s15, 0
      %p47 = por %p45, %p46
      %p48 = scmp.ne.s32.totalorder %s37, %s40
      %p49 = scmp.eq.s32.totalorder %s20, 3
      %p50 = por %p48, %p49
      %p51 = scmp.ne.s32.totalorder %s40, %s41
      %p52 = scmp.eq.s32.totalorder %s20, 0
      %p53 = por %p51, %p52
      %p54 = scmp.ne.s32.totalorder %s40, %s41
      %p55 = scmp.eq.s32.totalorder %s21, 3
      %p56 = por %p54, %p55
      %p58 = scmp.ne.s32.totalorder %s41, %s57
      %p59 = scmp.eq.s32.totalorder %s21, 0
      %p60 = por %p58, %p59
      %s61 = smul.u32 %s22, 2
      %s62 = sadd.s32 %s61, %s23
      %s63 = smul.u32 %s34, 2
      %s64 = sadd.s32 %s63, %s30
      %s65 = ssub.s32 %s62, %s64
      %p66 = scmp.eq.s32.totalorder %s65, 0
      %s68 = sadd.s32 %s67, 1
      %s69 = scalar_select %p66, %s67, %s68
      %p72 = pneg %p66
      %p73 = scmp.eq.s32.totalorder %s15, 3
      %p74 = por %p72, %p73
      %p75 = scmp.ne.s32.totalorder %s67, %s70
      %p76 = scmp.eq.s32.totalorder %s15, 0
      %p77 = por %p75, %p76
      %p78 = scmp.ne.s32.totalorder %s67, %s70
      %p79 = scmp.eq.s32.totalorder %s20, 3
      %p80 = por %p78, %p79
      %p81 = scmp.ne.s32.totalorder %s70, %s71
      %p82 = scmp.eq.s32.totalorder %s20, 0
      %p83 = por %p81, %p82
      %p84 = scmp.ne.s32.totalorder %s70, %s71
      %p85 = scmp.eq.s32.totalorder %s21, 3
      %p86 = por %p84, %p85
      %p88 = scmp.ne.s32.totalorder %s71, %s87
      %p89 = scmp.eq.s32.totalorder %s21, 0
      %p90 = por %p88, %p89
      %s92 = sadd.s32 %s91, 1
      %p95 = scmp.eq.s32.totalorder %s15, 3
      %p96 = scmp.ne.s32.totalorder %s91, %s93
      %p97 = scmp.eq.s32.totalorder %s15, 0
      %p98 = por %p96, %p97
      %p99 = scmp.ne.s32.totalorder %s91, %s93
      %p100 = scmp.eq.s32.totalorder %s20, 3
      %p101 = por %p99, %p100
      %p102 = scmp.ne.s32.totalorder %s93, %s94
      %p103 = scmp.eq.s32.totalorder %s20, 0
      %p104 = por %p102, %p103
      %p105 = scmp.ne.s32.totalorder %s93, %s94
      %p106 = scmp.eq.s32.totalorder %s21, 3
      %p107 = por %p105, %p106
      %p109 = scmp.ne.s32.totalorder %s94, %s108
      %p110 = scmp.eq.s32.totalorder %s21, 0
      %p111 = por %p109, %p110
      %s113 = sadd.s32 %s112, 1
      %p116 = scmp.eq.s32.totalorder %s15, 3
      %p117 = scmp.ne.s32.totalorder %s112, %s114
      %p118 = scmp.eq.s32.totalorder %s15, 0
      %p119 = por %p117, %p118
      %p120 = scmp.ne.s32.totalorder %s112, %s114
      %p121 = scmp.eq.s32.totalorder %s20, 3
      %p122 = por %p120, %p121
      %p123 = scmp.ne.s32.totalorder %s114, %s115
      %p124 = scmp.eq.s32.totalorder %s20, 0
      %p125 = por %p123, %p124
      %p126 = scmp.ne.s32.totalorder %s114, %s115
      %p127 = scmp.eq.s32.totalorder %s21, 3
      %p128 = por %p126, %p127
      %p130 = scmp.ne.s32.totalorder %s115, %s129
      %p131 = scmp.eq.s32.totalorder %s21, 0
      %p132 = por %p130, %p131
      %s134 = sadd.s32 %s133, 1
      %p137 = scmp.eq.s32.totalorder %s15, 3
      %p138 = scmp.ne.s32.totalorder %s133, %s135
      %p139 = scmp.eq.s32.totalorder %s15, 0
      %p140 = por %p138, %p139
      %p141 = scmp.ne.s32.totalorder %s133, %s135
      %p142 = scmp.eq.s32.totalorder %s20, 3
      %p143 = por %p141, %p142
      %p144 = scmp.ne.s32.totalorder %s135, %s136
      %p145 = scmp.eq.s32.totalorder %s20, 0
      %p146 = por %p144, %p145
      %p147 = scmp.ne.s32.totalorder %s135, %s136
      %p148 = scmp.eq.s32.totalorder %s21, 3
      %p149 = por %p147, %p148
      %p151 = scmp.ne.s32.totalorder %s136, %s150
      %p152 = scmp.eq.s32.totalorder %s21, 0
      %p153 = por %p151, %p152
      %s155 = sadd.s32 %s154, 1
      %p158 = scmp.eq.s32.totalorder %s15, 3
      %p159 = scmp.ne.s32.totalorder %s154, %s156
      %p160 = scmp.eq.s32.totalorder %s15, 0
      %p161 = por %p159, %p160
      %p162 = scmp.ne.s32.totalorder %s154, %s156
      %p163 = scmp.eq.s32.totalorder %s20, 3
      %p164 = por %p162, %p163
      %p165 = scmp.ne.s32.totalorder %s156, %s157
      %p166 = scmp.eq.s32.totalorder %s20, 0
      %p167 = por %p165, %p166
      %p168 = scmp.ne.s32.totalorder %s156, %s157
      %p169 = scmp.eq.s32.totalorder %s21, 3
      %p170 = por %p168, %p169
      %p172 = scmp.ne.s32.totalorder %s157, %s171
      %p173 = scmp.eq.s32.totalorder %s21, 0
      %p174 = por %p172, %p173
      %s175 = smul.u32 %s22, 2
      %s176 = sadd.s32 %s175, %s23
      %s177 = smul.u32 %s34, 2
      %s178 = sadd.s32 %s177, %s30
      %s179 = ssub.s32 %s176, %s178
      %p180 = scmp.eq.s32.totalorder %s179, 0
      %s182 = sadd.s32 %s181, 1
      %s183 = scalar_select %p180, %s181, %s182
      %p186 = pneg %p180
      %p187 = scmp.eq.s32.totalorder %s15, 3
      %p188 = por %p186, %p187
      %p189 = scmp.ne.s32.totalorder %s181, %s184
      %p190 = scmp.eq.s32.totalorder %s15, 0
      %p191 = por %p189, %p190
      %p192 = scmp.ne.s32.totalorder %s181, %s184
      %p193 = scmp.eq.s32.totalorder %s20, 3
      %p194 = por %p192, %p193
      %p195 = scmp.ne.s32.totalorder %s184, %s185
      %p196 = scmp.eq.s32.totalorder %s20, 0
      %p197 = por %p195, %p196
      %p198 = scmp.ne.s32.totalorder %s184, %s185
      %p199 = scmp.eq.s32.totalorder %s21, 3
      %p200 = por %p198, %p199
      %p202 = scmp.ne.s32.totalorder %s185, %s201
      %p203 = scmp.eq.s32.totalorder %s21, 0
      %p204 = por %p202, %p203
      %s206 = sadd.s32 %s205, 1
      %p209 = scmp.eq.s32.totalorder %s15, 3
      %p210 = scmp.ne.s32.totalorder %s205, %s207
      %p211 = scmp.eq.s32.totalorder %s15, 0
      %p212 = por %p210, %p211
      %p213 = scmp.ne.s32.totalorder %s205, %s207
      %p214 = scmp.eq.s32.totalorder %s20, 3
      %p215 = por %p213, %p214
      %p216 = scmp.ne.s32.totalorder %s207, %s208
      %p217 = scmp.eq.s32.totalorder %s20, 0
      %p218 = por %p216, %p217
      %p219 = scmp.ne.s32.totalorder %s207, %s208
      %p220 = scmp.eq.s32.totalorder %s21, 3
      %p221 = por %p219, %p220
      %p223 = scmp.ne.s32.totalorder %s208, %s222
      %p224 = scmp.eq.s32.totalorder %s21, 0
      %p225 = por %p223, %p224
      %p226 = scmp.le.s32.totalorder 1, %s15
      %p227 = scmp.lt.s32.totalorder %s15, 5
      %p228 = pnand %p226, %p227
      %p229 = pneg %p228
      // Predicated region
      $region9: #{tpu_custom_call.1} parent=5 // pred_check
        _
      $region10: #{tpu_custom_call.1} parent=5 // pred_check_branch
        %231 = sbr.rel (%p228) target = $region12
      $region11: #{tpu_custom_call.1} parent=5 // pred_region
        %s232 = ssub.s32 %s15, 1
        // Predicated region
        $region13: #{tpu_custom_call.1} parent=11 // pred_check
          %p233 = pneg %p104
        $region14: #{tpu_custom_call.1} parent=11 // pred_check_branch
          %235 = sbr.rel (%p233) target = $region16
        $region15: #{tpu_custom_call.1} parent=11 // pred_region
          _
        $region16: #{tpu_custom_call.1} parent=11 // pred_fallthru
          _
        // Predicated region
        $region17: #{tpu_custom_call.1} parent=11 // pred_check
          %p236 = pneg %p125
        $region18: #{tpu_custom_call.1} parent=11 // pred_check_branch
          %238 = sbr.rel (%p236) target = $region20
        $region19: #{tpu_custom_call.1} parent=11 // pred_region
          _
        $region20: #{tpu_custom_call.1} parent=11 // pred_fallthru
          _
        // Predicated region
        $region21: #{tpu_custom_call.1} parent=11 // pred_check
          %p239 = pneg %p146
        $region22: #{tpu_custom_call.1} parent=11 // pred_check_branch
          %241 = sbr.rel (%p239) target = $region24
        $region23: #{tpu_custom_call.1} parent=11 // pred_region
          _
        $region24: #{tpu_custom_call.1} parent=11 // pred_fallthru
          _
        // Predicated region
        $region25: #{tpu_custom_call.1} parent=11 // pred_check
          %p242 = pneg %p167
        $region26: #{tpu_custom_call.1} parent=11 // pred_check_branch
          %244 = sbr.rel (%p242) target = $region28
        $region27: #{tpu_custom_call.1} parent=11 // pred_region
          _
        $region28: #{tpu_custom_call.1} parent=11 // pred_fallthru
          _
      $region12: #{tpu_custom_call.1} parent=5 // pred_fallthru
        _
      %p245 = scmp.lt.s32.totalorder %s15, 4
      // Predicated region
      $region29: #{tpu_custom_call.1} parent=5 // pred_check
        %p246 = pneg %p245
      $region30: #{tpu_custom_call.1} parent=5 // pred_check_branch
        %248 = sbr.rel (%p246) target = $region32
      $region31: #{tpu_custom_call.1} parent=5 // pred_region
        // Predicated region
        $region33: #{tpu_custom_call.1} parent=31 // pred_check
          %p249 = pneg %p47
        $region34: #{tpu_custom_call.1} parent=31 // pred_check_branch
          %251 = sbr.rel (%p249) target = $region36
        $region35: #{tpu_custom_call.1} parent=31 // pred_region
          %p252 = scmp.lt.s32.totalorder %s22, 1
          %s253 = scalar_select %p252, %s22, 1
          %s254 = smul.addr %s253, 54
          %s255 = smul.addr %s254, 4
          %s256 = scalar_lea.vmem %s0, %s255
        $region36: #{tpu_custom_call.1} parent=31 // pred_fallthru
          _
        // Predicated region
        $region37: #{tpu_custom_call.1} parent=31 // pred_check
          %p257 = pneg %p77
        $region38: #{tpu_custom_call.1} parent=31 // pred_check_branch
          %259 = sbr.rel (%p257) target = $region40
        $region39: #{tpu_custom_call.1} parent=31 // pred_region
          %s260 = smul.u32 %s22, 2
          %s261 = sadd.s32 %s260, %s23
          %s262 = smul.u32 16, %s261
          %p263 = scmp.lt.s32.totalorder %s262, 63
          %s264 = scalar_select %p263, %s262, 63
          %s265 = smul.addr %s264, 8
          %s266 = scalar_lea.vmem %s1, %s265
          %s267 = smul.u32 %s22, 2
          %s268 = sadd.s32 %s267, %s23
          %s269 = smul.u32 16, %s268
        $region40: #{tpu_custom_call.1} parent=31 // pred_fallthru
          _
      $region32: #{tpu_custom_call.1} parent=5 // pred_fallthru
        _
      %p270 = scmp.le.s32.totalorder 1, %s15
      %p271 = scmp.lt.s32.totalorder %s15, 5
      %p272 = pnand %p270, %p271
      %p273 = pneg %p272
      // Predicated region
      $region41: #{tpu_custom_call.1} parent=5 // pred_check
        _
      $region42: #{tpu_custom_call.1} parent=5 // pred_check_branch
        %275 = sbr.rel (%p272) target = $region44
      $region43: #{tpu_custom_call.1} parent=5 // pred_region
        %s276 = ssub.s32 %s15, 1
        %p277 = scmp.lt.s32.totalorder %s24, 1
        %s278 = scalar_select %p277, %s24, 1
        %s279 = smul.addr %s278, 54
        %s280 = smul.addr %s279, 4
        %s281 = scalar_lea.vmem %s0, %s280
        %p282 = pneg %p53
        %p283 = pneg %p50
        %s284 = smul.u32 %s24, 2
        %s285 = sadd.s32 %s284, %s25
        %s286 = smul.u32 16, %s285
        %p287 = scmp.lt.s32.totalorder %s286, 63
        %s288 = scalar_select %p287, %s286, 63
        %s289 = smul.addr %s288, 8
        %s290 = scalar_lea.vmem %s1, %s289
        %p291 = pneg %p83
        %p292 = pneg %p80
        %p293 = pneg %p104
        %p294 = pneg %p101
        %p295 = pneg %p125
        %p296 = pneg %p122
        %p297 = pneg %p146
        %p298 = pneg %p143
        %p299 = pneg %p167
        %p300 = pneg %p164
        %p301 = pneg %p197
        %p302 = pneg %p194
        %s303 = smul.u32 %s24, 2
        %s304 = sadd.s32 %s303, %s25
        %s305 = smul.u32 16, %s304
        %p306 = scmp.lt.s32.totalorder %s305, 63
        %s307 = scalar_select %p306, %s305, 63
        %s308 = smul.addr %s307, 8
        %s309 = scalar_lea.vmem %s6, %s308
        %p310 = pneg %p218
        %p311 = pneg %p215
        %p312 = scmp.lt.s32.totalorder %s24, 1
        %s313 = scalar_select %p312, %s24, 1
        %s314 = smul.addr %s313, 54
        %s315 = smul.addr %s314, 4
        %s316 = scalar_lea.vmem %s0, %s315
        %s317 = smul.u32 %s24, 2
        %s318 = sadd.s32 %s317, %s25
        %s319 = smul.u32 16, %s318
        %p320 = scmp.lt.s32.totalorder %s319, 63
        %s321 = scalar_select %p320, %s319, 63
        %s322 = smul.addr %s321, 8
        %s323 = scalar_lea.vmem %s1, %s322
        %s324 = smul.u32 %s24, 2
        %s325 = sadd.s32 %s324, %s25
        %s326 = smul.u32 16, %s325
        %s327 = smul.u32 %s24, 2
        %s328 = sadd.s32 %s327, %s25
        %s329 = smul.u32 16, %s328
        %p330 = scmp.lt.s32.totalorder %s329, 63
        %s331 = scalar_select %p330, %s329, 63
        %s332 = smul.addr %s331, 8
        %s333 = scalar_lea.vmem %s6, %s332
        %s334 = smul.u32 %s24, 2
        %s335 = sadd.s32 %s334, %s25
        %s336 = smul.u32 16, %s335
        %s337 = smul.u32 %s25, 8
        %s338 = smul.u32 %s337, 3
        %s339 = smul.addr %s338, 4
        %s340 = scalar_lea.vmem %s316, %s339
        %v341 = vld [vmem:[%s340] sm:$0xf]
        %v342 = vld [vmem:[%s340 + $0x4] sm:$0xf]
        %v343 = vld [vmem:[%s340 + $0x8] sm:$0x1]
        %v344 = vld [vmem:[%s340 + $0xc] sm:$0xf]
        %v345 = vld [vmem:[%s340 + $0x10] sm:$0xf]
        %v346 = vld [vmem:[%s340 + $0x14] sm:$0x1]
        %v347 = vld [vmem:[%s340 + $0x18] sm:$0xf]
        %v348 = vld [vmem:[%s340 + $0x1c] sm:$0xf]
        %v349 = vld [vmem:[%s340 + $0x20] sm:$0x1]
        %v350 = vld [vmem:[%s340 + $0x24] sm:$0xf]
        %v351 = vld [vmem:[%s340 + $0x28] sm:$0xf]
        %v352 = vld [vmem:[%s340 + $0x2c] sm:$0x1]
        %v353 = vld [vmem:[%s340 + $0x30] sm:$0xf]
        %v354 = vld [vmem:[%s340 + $0x34] sm:$0xf]
        %v355 = vld [vmem:[%s340 + $0x38] sm:$0x1]
        %v356 = vld [vmem:[%s340 + $0x3c] sm:$0xf]
        %v357 = vld [vmem:[%s340 + $0x40] sm:$0xf]
        %v358 = vld [vmem:[%s340 + $0x44] sm:$0x1]
        %v359 = vld [vmem:[%s340 + $0x48] sm:$0xf]
        %v360 = vld [vmem:[%s340 + $0x4c] sm:$0xf]
        %v361 = vld [vmem:[%s340 + $0x50] sm:$0x1]
        %v362 = vld [vmem:[%s340 + $0x54] sm:$0xf]
        %v363 = vld [vmem:[%s340 + $0x58] sm:$0xf]
        %v364 = vld [vmem:[%s340 + $0x5c] sm:$0x1]
        %v365 = vld [vmem:[%s340 + $0x60] sm:$0xf]
        %v366 = vld [vmem:[%s340 + $0x64] sm:$0xf]
        %v367 = vld [vmem:[%s340 + $0x68] sm:$0x1]
        %v368 = vld [vmem:[%s340 + $0x6c] sm:$0xf]
        %v369 = vld [vmem:[%s340 + $0x70] sm:$0xf]
        %v370 = vld [vmem:[%s340 + $0x74] sm:$0x1]
        %v371 = vunpack.c.l.bf16 %v341
        %v372 = vunpack.c.l.bf16 %v342
        %v373 = vunpack.c.l.bf16 %v343
        %v374 = vunpack.c.l.bf16 %v344
        %v375 = vunpack.c.l.bf16 %v345
        %v376 = vunpack.c.l.bf16 %v346
        %v377 = vunpack.c.l.bf16 %v347
        %v378 = vunpack.c.l.bf16 %v348
        %v379 = vunpack.c.l.bf16 %v349
        %v380 = vunpack.c.l.bf16 %v350
        %v381 = vunpack.c.l.bf16 %v351
        %v382 = vunpack.c.l.bf16 %v352
        %v383 = vunpack.c.l.bf16 %v353
        %v384 = vunpack.c.l.bf16 %v354
        %v385 = vunpack.c.l.bf16 %v355
        %v386 = vunpack.c.l.bf16 %v356
        %v387 = vunpack.c.l.bf16 %v357
        %v388 = vunpack.c.l.bf16 %v358
        %v389 = vunpack.c.l.bf16 %v359
        %v390 = vunpack.c.l.bf16 %v360
        %v391 = vunpack.c.l.bf16 %v361
        %v392 = vunpack.c.l.bf16 %v362
        %v393 = vunpack.c.l.bf16 %v363
        %v394 = vunpack.c.l.bf16 %v364
        %v395 = vunpack.c.l.bf16 %v365
        %v396 = vunpack.c.l.bf16 %v366
        %v397 = vunpack.c.l.bf16 %v367
        %v398 = vunpack.c.l.bf16 %v368
        %v399 = vunpack.c.l.bf16 %v369
        %v400 = vunpack.c.l.bf16 %v370
        %v401 = vld [vmem:[%s2] sm:$0x7f]
        %vm426 = vcmask 1046528
        %v427 = vrot.slane %v371, 1
        %v428 = vrot.slane %v372, 1
        %v429 = vsel %vm426, %v427, %v428
        %v430 = vrot.slane %v373, 1
        %v431 = vsel %vm426, %v428, %v430
        %v432 = vrot.slane %v374, 1
        %v433 = vrot.slane %v375, 1
        %v434 = vsel %vm426, %v432, %v433
        %v435 = vrot.slane %v376, 1
        %v436 = vsel %vm426, %v433, %v435
        %v437 = vrot.slane %v377, 1
        %v438 = vrot.slane %v378, 1
        %v439 = vsel %vm426, %v437, %v438
        %v440 = vrot.slane %v379, 1
        %v441 = vsel %vm426, %v438, %v440
        %v442 = vrot.slane %v380, 1
        %v443 = vrot.slane %v381, 1
        %v444 = vsel %vm426, %v442, %v443
        %v445 = vrot.slane %v382, 1
        %v446 = vsel %vm426, %v443, %v445
        %v447 = vrot.slane %v383, 1
        %v448 = vrot.slane %v384, 1
        %v449 = vsel %vm426, %v447, %v448
        %v450 = vrot.slane %v385, 1
        %v451 = vsel %vm426, %v448, %v450
        %v452 = vrot.slane %v386, 1
        %v453 = vrot.slane %v387, 1
        %v454 = vsel %vm426, %v452, %v453
        %v455 = vrot.slane %v388, 1
        %v456 = vsel %vm426, %v453, %v455
        %v457 = vrot.slane %v389, 1
        %v458 = vrot.slane %v390, 1
        %v459 = vsel %vm426, %v457, %v458
        %v460 = vrot.slane %v391, 1
        %v461 = vsel %vm426, %v458, %v460
        %v462 = vrot.slane %v392, 1
        %v463 = vrot.slane %v393, 1
        %v464 = vsel %vm426, %v462, %v463
        %v465 = vrot.slane %v394, 1
        %v466 = vsel %vm426, %v463, %v465
        %s467 = scalar_lea.vmem %s2, 8
        %v468 = vld [vmem:[%s467] sm:$0x7f]
        %vm469 = vcmask 56320
        %v470 = vsel %vm469, %v429, 0
        %v472 = vsel %vm469, %v431, 0
        %v474 = vsel %vm469, %v434, 0
        %v476 = vsel %vm469, %v436, 0
        %v478 = vsel %vm469, %v439, 0
        %v480 = vsel %vm469, %v441, 0
        %v482 = vsel %vm469, %v444, 0
        %v484 = vsel %vm469, %v446, 0
        %v486 = vsel %vm469, %v449, 0
        %v488 = vsel %vm469, %v451, 0
        %v490 = vsel %vm469, %v454, 0
        %v492 = vsel %vm469, %v456, 0
        %v494 = vsel %vm469, %v459, 0
        %v496 = vsel %vm469, %v461, 0
        %v498 = vsel %vm469, %v464, 0
        %v500 = vsel %vm469, %v466, 0
        %v503 = vsel %vm426, %v468, 0
        %505 = vmatprep.subr.mxu0 0.0
        %506 = vmatpush1.msra.mxu0 0.0
        %507 = vmatprep.subr.mxu0 0.0
        %508 = vmatpush1.msra.mxu0 0.0
        %509 = vmatprep.subr.mxu0 0.0
        %510 = vmatpush1.msra.mxu0 0.0
        %511 = vmatprep.subr.mxu0 0.0
        %512 = vmatpush1.msra.mxu0 0.0
        %513 = vmatprep.subr.mxu0 0.0
        %514 = vmatpush1.msra.mxu0 0.0
        %515 = vmatprep.subr.mxu0 0.0
        %516 = vmatpush1.msra.mxu0 0.0
        %517 = vmatprep.subr.mxu0 0.0
        %518 = vmatpush1.msra.mxu0 0.0
        %519 = vmatprep.subr.mxu0 0.0
        %520 = vmatpush1.msra.mxu0 0.0
        %521 = vmatprep.subr.mxu0 0.0
        %522 = vmatpush1.msra.mxu0 0.0
        %523 = vmatprep.subr.mxu0 0.0
        %524 = vmatpush1.msra.mxu0 0.0
        %525 = vmatprep.subr.mxu0 0.0
        %526 = vmatpush1.msra.mxu0 0.0
        %527 = vmatprep.subr.mxu0 0.0
        %528 = vmatpush1.msra.mxu0 0.0
        %529 = vmatprep.subr.mxu0 0.0
        %530 = vmatpush1.msra.mxu0 0.0
        %531 = vmatprep.subr.mxu0 0.0
        %532 = vmatpush1.msra.mxu0 0.0
        %533 = vmatprep.subr.mxu0 0.0
        %534 = vmatpush1.msra.mxu0 0.0
        %535 = vmatprep.subr.mxu0 0.0
        %536 = vmatpush1.msra.mxu0 %v503
        %537 = vmatprep.subr.mxu0 0.0
        %538 = vmatpush2.msra.mxu0 0.0
        %539 = vmatprep.subr.mxu0 0.0
        %540 = vmatpush2.msra.mxu0 0.0
        %541 = vmatprep.subr.mxu0 0.0
        %542 = vmatpush2.msra.mxu0 0.0
        %543 = vmatprep.subr.mxu0 0.0
        %544 = vmatpush2.msra.mxu0 0.0
        %545 = vmatprep.subr.mxu0 0.0
        %546 = vmatpush2.msra.mxu0 0.0
        %547 = vmatprep.subr.mxu0 0.0
        %548 = vmatpush2.msra.mxu0 0.0
        %549 = vmatprep.subr.mxu0 0.0
        %550 = vmatpush2.msra.mxu0 0.0
        %551 = vmatprep.subr.mxu0 0.0
        %552 = vmatpush2.msra.mxu0 0.0
        %553 = vmatprep.subr.mxu0 0.0
        %554 = vmatpush2.msra.mxu0 0.0
        %555 = vmatprep.subr.mxu0 0.0
        %556 = vmatpush2.msra.mxu0 0.0
        %557 = vmatprep.subr.mxu0 0.0
        %558 = vmatpush2.msra.mxu0 0.0
        %559 = vmatprep.subr.mxu0 0.0
        %560 = vmatpush2.msra.mxu0 0.0
        %561 = vmatprep.subr.mxu0 0.0
        %562 = vmatpush2.msra.mxu0 0.0
        %563 = vmatprep.subr.mxu0 0.0
        %564 = vmatpush2.msra.mxu0 0.0
        %565 = vmatprep.subr.mxu0 0.0
        %566 = vmatpush2.msra.mxu0 0.0
        %567 = vmatprep.subr.mxu0 0.0
        %568 = vmatpush2.msra.mxu0 0.0
        %569 = vmatprep.mubr.f32.mxu0 0.0
        %570 = vmatmul.mubr.f32.gmra.mxu0 %v470
        %v571 = vpop.f32.mrf.mxu0
        %v572 = vadd.f32 0.0, %v571
        %v573 = vpop.f32.mrf.mxu0
        %574 = vmatprep.mubr.f32.mxu0 0.0
        %575 = vmatmul.mubr.f32.gmra.mxu0 %v472
        %v576 = vpop.f32.mrf.mxu0
        %v577 = vadd.f32 0.0, %v576
        %v578 = vpop.f32.mrf.mxu0
        %579 = vmatprep.mubr.f32.mxu0 0.0
        %580 = vmatmul.mubr.f32.gmra.mxu0 %v474
        %v581 = vpop.f32.mrf.mxu0
        %v582 = vadd.f32 0.0, %v581
        %v583 = vpop.f32.mrf.mxu0
        %584 = vmatprep.mubr.f32.mxu0 0.0
        %585 = vmatmul.mubr.f32.gmra.mxu0 %v476
        %v586 = vpop.f32.mrf.mxu0
        %v587 = vadd.f32 0.0, %v586
        %v588 = vpop.f32.mrf.mxu0
        %589 = vmatprep.mubr.f32.mxu0 0.0
        %590 = vmatmul.mubr.f32.gmra.mxu0 %v478
        %v591 = vpop.f32.mrf.mxu0
        %v592 = vadd.f32 0.0, %v591
        %v593 = vpop.f32.mrf.mxu0
        %594 = vmatprep.mubr.f32.mxu0 0.0
        %595 = vmatmul.mubr.f32.gmra.mxu0 %v480
        %v596 = vpop.f32.mrf.mxu0
        %v597 = vadd.f32 0.0, %v596
        %v598 = vpop.f32.mrf.mxu0
        %599 = vmatprep.mubr.f32.mxu0 0.0
        %600 = vmatmul.mubr.f32.gmra.mxu0 %v482
        %v601 = vpop.f32.mrf.mxu0
        %v602 = vadd.f32 0.0, %v601
        %v603 = vpop.f32.mrf.mxu0
        %604 = vmatprep.mubr.f32.mxu0 0.0
        %605 = vmatmul.mubr.f32.gmra.mxu0 %v484
        %v606 = vpop.f32.mrf.mxu0
        %v607 = vadd.f32 0.0, %v606
        %v608 = vpop.f32.mrf.mxu0
        %609 = vmatprep.mubr.f32.mxu0 0.0
        %610 = vmatmul.mubr.f32.gmra.mxu0 %v486
        %v611 = vpop.f32.mrf.mxu0
        %v612 = vadd.f32 0.0, %v611
        %v613 = vpop.f32.mrf.mxu0
        %614 = vmatprep.mubr.f32.mxu0 0.0
        %615 = vmatmul.mubr.f32.gmra.mxu0 %v488
        %v616 = vpop.f32.mrf.mxu0
        %v617 = vadd.f32 0.0, %v616
        %v618 = vpop.f32.mrf.mxu0
        %619 = vmatprep.mubr.f32.mxu0 0.0
        %620 = vmatmul.mubr.f32.gmra.mxu0 %v490
        %v621 = vpop.f32.mrf.mxu0
        %v622 = vadd.f32 0.0, %v621
        %v623 = vpop.f32.mrf.mxu0
        %624 = vmatprep.mubr.f32.mxu0 0.0
        %625 = vmatmul.mubr.f32.gmra.mxu0 %v492
        %v626 = vpop.f32.mrf.mxu0
        %v627 = vadd.f32 0.0, %v626
        %v628 = vpop.f32.mrf.mxu0
        %629 = vmatprep.mubr.f32.mxu0 0.0
        %630 = vmatmul.mubr.f32.gmra.mxu0 %v494
        %v631 = vpop.f32.mrf.mxu0
        %v632 = vadd.f32 0.0, %v631
        %v633 = vpop.f32.mrf.mxu0
        %634 = vmatprep.mubr.f32.mxu0 0.0
        %635 = vmatmul.mubr.f32.gmra.mxu0 %v496
        %v636 = vpop.f32.mrf.mxu0
        %v637 = vadd.f32 0.0, %v636
        %v638 = vpop.f32.mrf.mxu0
        %639 = vmatprep.mubr.f32.mxu0 0.0
        %640 = vmatmul.mubr.f32.gmra.mxu0 %v498
        %v641 = vpop.f32.mrf.mxu0
        %v642 = vadd.f32 0.0, %v641
        %v643 = vpop.f32.mrf.mxu0
        %644 = vmatprep.mubr.f32.mxu0 0.0
        %645 = vmatmul.mubr.f32.gmra.mxu0 %v500
        %v646 = vpop.f32.mrf.mxu0
        %v647 = vadd.f32 0.0, %v646
        %v648 = vpop.f32.mrf.mxu0
        %649 = vdwg.mxu0
        %v650 = vsel %vm469, %v371, 0
        %v652 = vsel %vm469, %v372, 0
        %v654 = vsel %vm469, %v374, 0
        %v656 = vsel %vm469, %v375, 0
        %v658 = vsel %vm469, %v377, 0
        %v660 = vsel %vm469, %v378, 0
        %v662 = vsel %vm469, %v380, 0
        %v664 = vsel %vm469, %v381, 0
        %v666 = vsel %vm469, %v383, 0
        %v668 = vsel %vm469, %v384, 0
        %v670 = vsel %vm469, %v386, 0
        %v672 = vsel %vm469, %v387, 0
        %v674 = vsel %vm469, %v389, 0
        %v676 = vsel %vm469, %v390, 0
        %v678 = vsel %vm469, %v392, 0
        %v680 = vsel %vm469, %v393, 0
        %v683 = vsel %vm426, %v401, 0
        %685 = vmatprep.subr.mxu0 0.0
        %686 = vmatpush1.msra.mxu0 0.0
        %687 = vmatprep.subr.mxu0 0.0
        %688 = vmatpush1.msra.mxu0 0.0
        %689 = vmatprep.subr.mxu0 0.0
        %690 = vmatpush1.msra.mxu0 0.0
        %691 = vmatprep.subr.mxu0 0.0
        %692 = vmatpush1.msra.mxu0 0.0
        %693 = vmatprep.subr.mxu0 0.0
        %694 = vmatpush1.msra.mxu0 0.0
        %695 = vmatprep.subr.mxu0 0.0
        %696 = vmatpush1.msra.mxu0 0.0
        %697 = vmatprep.subr.mxu0 0.0
        %698 = vmatpush1.msra.mxu0 0.0
        %699 = vmatprep.subr.mxu0 0.0
        %700 = vmatpush1.msra.mxu0 0.0
        %701 = vmatprep.subr.mxu0 0.0
        %702 = vmatpush1.msra.mxu0 0.0
        %703 = vmatprep.subr.mxu0 0.0
        %704 = vmatpush1.msra.mxu0 0.0
        %705 = vmatprep.subr.mxu0 0.0
        %706 = vmatpush1.msra.mxu0 0.0
        %707 = vmatprep.subr.mxu0 0.0
        %708 = vmatpush1.msra.mxu0 0.0
        %709 = vmatprep.subr.mxu0 0.0
        %710 = vmatpush1.msra.mxu0 0.0
        %711 = vmatprep.subr.mxu0 0.0
        %712 = vmatpush1.msra.mxu0 0.0
        %713 = vmatprep.subr.mxu0 0.0
        %714 = vmatpush1.msra.mxu0 0.0
        %715 = vmatprep.subr.mxu0 0.0
        %716 = vmatpush1.msra.mxu0 %v683
        %717 = vmatprep.subr.mxu0 0.0
        %718 = vmatpush2.msra.mxu0 0.0
        %719 = vmatprep.subr.mxu0 0.0
        %720 = vmatpush2.msra.mxu0 0.0
        %721 = vmatprep.subr.mxu0 0.0
        %722 = vmatpush2.msra.mxu0 0.0
        %723 = vmatprep.subr.mxu0 0.0
        %724 = vmatpush2.msra.mxu0 0.0
        %725 = vmatprep.subr.mxu0 0.0
        %726 = vmatpush2.msra.mxu0 0.0
        %727 = vmatprep.subr.mxu0 0.0
        %728 = vmatpush2.msra.mxu0 0.0
        %729 = vmatprep.subr.mxu0 0.0
        %730 = vmatpush2.msra.mxu0 0.0
        %731 = vmatprep.subr.mxu0 0.0
        %732 = vmatpush2.msra.mxu0 0.0
        %733 = vmatprep.subr.mxu0 0.0
        %734 = vmatpush2.msra.mxu0 0.0
        %735 = vmatprep.subr.mxu0 0.0
        %736 = vmatpush2.msra.mxu0 0.0
        %737 = vmatprep.subr.mxu0 0.0
        %738 = vmatpush2.msra.mxu0 0.0
        %739 = vmatprep.subr.mxu0 0.0
        %740 = vmatpush2.msra.mxu0 0.0
        %741 = vmatprep.subr.mxu0 0.0
        %742 = vmatpush2.msra.mxu0 0.0
        %743 = vmatprep.subr.mxu0 0.0
        %744 = vmatpush2.msra.mxu0 0.0
        %745 = vmatprep.subr.mxu0 0.0
        %746 = vmatpush2.msra.mxu0 0.0
        %747 = vmatprep.subr.mxu0 0.0
        %748 = vmatpush2.msra.mxu0 0.0
        %749 = vmatprep.mubr.f32.mxu0 0.0
        %750 = vmatmul.mubr.f32.gmra.mxu0 %v650
        %v751 = vpop.f32.mrf.mxu0
        %v752 = vadd.f32 %v572, %v751
        %v753 = vpop.f32.mrf.mxu0
        %754 = vmatprep.mubr.f32.mxu0 0.0
        %755 = vmatmul.mubr.f32.gmra.mxu0 %v652
        %v756 = vpop.f32.mrf.mxu0
        %v757 = vadd.f32 %v577, %v756
        %v758 = vpop.f32.mrf.mxu0
        %759 = vmatprep.mubr.f32.mxu0 0.0
        %760 = vmatmul.mubr.f32.gmra.mxu0 %v654
        %v761 = vpop.f32.mrf.mxu0
        %v762 = vadd.f32 %v582, %v761
        %v763 = vpop.f32.mrf.mxu0
        %764 = vmatprep.mubr.f32.mxu0 0.0
        %765 = vmatmul.mubr.f32.gmra.mxu0 %v656
        %v766 = vpop.f32.mrf.mxu0
        %v767 = vadd.f32 %v587, %v766
        %v768 = vpop.f32.mrf.mxu0
        %769 = vmatprep.mubr.f32.mxu0 0.0
        %770 = vmatmul.mubr.f32.gmra.mxu0 %v658
        %v771 = vpop.f32.mrf.mxu0
        %v772 = vadd.f32 %v592, %v771
        %v773 = vpop.f32.mrf.mxu0
        %774 = vmatprep.mubr.f32.mxu0 0.0
        %775 = vmatmul.mubr.f32.gmra.mxu0 %v660
        %v776 = vpop.f32.mrf.mxu0
        %v777 = vadd.f32 %v597, %v776
        %v778 = vpop.f32.mrf.mxu0
        %779 = vmatprep.mubr.f32.mxu0 0.0
        %780 = vmatmul.mubr.f32.gmra.mxu0 %v662
        %v781 = vpop.f32.mrf.mxu0
        %v782 = vadd.f32 %v602, %v781
        %v783 = vpop.f32.mrf.mxu0
        %784 = vmatprep.mubr.f32.mxu0 0.0
        %785 = vmatmul.mubr.f32.gmra.mxu0 %v664
        %v786 = vpop.f32.mrf.mxu0
        %v787 = vadd.f32 %v607, %v786
        %v788 = vpop.f32.mrf.mxu0
        %789 = vmatprep.mubr.f32.mxu0 0.0
        %790 = vmatmul.mubr.f32.gmra.mxu0 %v666
        %v791 = vpop.f32.mrf.mxu0
        %v792 = vadd.f32 %v612, %v791
        %v793 = vpop.f32.mrf.mxu0
        %794 = vmatprep.mubr.f32.mxu0 0.0
        %795 = vmatmul.mubr.f32.gmra.mxu0 %v668
        %v796 = vpop.f32.mrf.mxu0
        %v797 = vadd.f32 %v617, %v796
        %v798 = vpop.f32.mrf.mxu0
        %799 = vmatprep.mubr.f32.mxu0 0.0
        %800 = vmatmul.mubr.f32.gmra.mxu0 %v670
        %v801 = vpop.f32.mrf.mxu0
        %v802 = vadd.f32 %v622, %v801
        %v803 = vpop.f32.mrf.mxu0
        %804 = vmatprep.mubr.f32.mxu0 0.0
        %805 = vmatmul.mubr.f32.gmra.mxu0 %v672
        %v806 = vpop.f32.mrf.mxu0
        %v807 = vadd.f32 %v627, %v806
        %v808 = vpop.f32.mrf.mxu0
        %809 = vmatprep.mubr.f32.mxu0 0.0
        %810 = vmatmul.mubr.f32.gmra.mxu0 %v674
        %v811 = vpop.f32.mrf.mxu0
        %v812 = vadd.f32 %v632, %v811
        %v813 = vpop.f32.mrf.mxu0
        %814 = vmatprep.mubr.f32.mxu0 0.0
        %815 = vmatmul.mubr.f32.gmra.mxu0 %v676
        %v816 = vpop.f32.mrf.mxu0
        %v817 = vadd.f32 %v637, %v816
        %v818 = vpop.f32.mrf.mxu0
        %819 = vmatprep.mubr.f32.mxu0 0.0
        %820 = vmatmul.mubr.f32.gmra.mxu0 %v678
        %v821 = vpop.f32.mrf.mxu0
        %v822 = vadd.f32 %v642, %v821
        %v823 = vpop.f32.mrf.mxu0
        %824 = vmatprep.mubr.f32.mxu0 0.0
        %825 = vmatmul.mubr.f32.gmra.mxu0 %v680
        %v826 = vpop.f32.mrf.mxu0
        %v827 = vadd.f32 %v647, %v826
        %v828 = vpop.f32.mrf.mxu0
        %829 = vdwg.mxu0
        %vm830 = vcmask 1045504
        %v831 = vrot.slane %v371, 2
        %v832 = vrot.slane %v372, 2
        %v833 = vsel %vm830, %v831, %v832
        %v834 = vrot.slane %v373, 2
        %v835 = vsel %vm830, %v832, %v834
        %v836 = vrot.slane %v374, 2
        %v837 = vrot.slane %v375, 2
        %v838 = vsel %vm830, %v836, %v837
        %v839 = vrot.slane %v376, 2
        %v840 = vsel %vm830, %v837, %v839
        %v841 = vrot.slane %v377, 2
        %v842 = vrot.slane %v378, 2
        %v843 = vsel %vm830, %v841, %v842
        %v844 = vrot.slane %v379, 2
        %v845 = vsel %vm830, %v842, %v844
        %v846 = vrot.slane %v380, 2
        %v847 = vrot.slane %v381, 2
        %v848 = vsel %vm830, %v846, %v847
        %v849 = vrot.slane %v382, 2
        %v850 = vsel %vm830, %v847, %v849
        %v851 = vrot.slane %v383, 2
        %v852 = vrot.slane %v384, 2
        %v853 = vsel %vm830, %v851, %v852
        %v854 = vrot.slane %v385, 2
        %v855 = vsel %vm830, %v852, %v854
        %v856 = vrot.slane %v386, 2
        %v857 = vrot.slane %v387, 2
        %v858 = vsel %vm830, %v856, %v857
        %v859 = vrot.slane %v388, 2
        %v860 = vsel %vm830, %v857, %v859
        %v861 = vrot.slane %v389, 2
        %v862 = vrot.slane %v390, 2
        %v863 = vsel %vm830, %v861, %v862
        %v864 = vrot.slane %v391, 2
        %v865 = vsel %vm830, %v862, %v864
        %v866 = vrot.slane %v392, 2
        %v867 = vrot.slane %v393, 2
        %v868 = vsel %vm830, %v866, %v867
        %v869 = vrot.slane %v394, 2
        %v870 = vsel %vm830, %v867, %v869
        %s871 = scalar_lea.vmem %s2, 16
        %v872 = vld [vmem:[%s871] sm:$0x7f]
        %v873 = vsel %vm469, %v833, 0
        %v875 = vsel %vm469, %v835, 0
        %v877 = vsel %vm469, %v838, 0
        %v879 = vsel %vm469, %v840, 0
        %v881 = vsel %vm469, %v843, 0
        %v883 = vsel %vm469, %v845, 0
        %v885 = vsel %vm469, %v848, 0
        %v887 = vsel %vm469, %v850, 0
        %v889 = vsel %vm469, %v853, 0
        %v891 = vsel %vm469, %v855, 0
        %v893 = vsel %vm469, %v858, 0
        %v895 = vsel %vm469, %v860, 0
        %v897 = vsel %vm469, %v863, 0
        %v899 = vsel %vm469, %v865, 0
        %v901 = vsel %vm469, %v868, 0
        %v903 = vsel %vm469, %v870, 0
        %v906 = vsel %vm426, %v872, 0
        %908 = vmatprep.subr.mxu0 0.0
        %909 = vmatpush1.msra.mxu0 0.0
        %910 = vmatprep.subr.mxu0 0.0
        %911 = vmatpush1.msra.mxu0 0.0
        %912 = vmatprep.subr.mxu0 0.0
        %913 = vmatpush1.msra.mxu0 0.0
        %914 = vmatprep.subr.mxu0 0.0
        %915 = vmatpush1.msra.mxu0 0.0
        %916 = vmatprep.subr.mxu0 0.0
        %917 = vmatpush1.msra.mxu0 0.0
        %918 = vmatprep.subr.mxu0 0.0
        %919 = vmatpush1.msra.mxu0 0.0
        %920 = vmatprep.subr.mxu0 0.0
        %921 = vmatpush1.msra.mxu0 0.0
        %922 = vmatprep.subr.mxu0 0.0
        %923 = vmatpush1.msra.mxu0 0.0
        %924 = vmatprep.subr.mxu0 0.0
        %925 = vmatpush1.msra.mxu0 0.0
        %926 = vmatprep.subr.mxu0 0.0
        %927 = vmatpush1.msra.mxu0 0.0
        %928 = vmatprep.subr.mxu0 0.0
        %929 = vmatpush1.msra.mxu0 0.0
        %930 = vmatprep.subr.mxu0 0.0
        %931 = vmatpush1.msra.mxu0 0.0
        %932 = vmatprep.subr.mxu0 0.0
        %933 = vmatpush1.msra.mxu0 0.0
        %934 = vmatprep.subr.mxu0 0.0
        %935 = vmatpush1.msra.mxu0 0.0
        %936 = vmatprep.subr.mxu0 0.0
        %937 = vmatpush1.msra.mxu0 0.0
        %938 = vmatprep.subr.mxu0 0.0
        %939 = vmatpush1.msra.mxu0 %v906
        %940 = vmatprep.subr.mxu0 0.0
        %941 = vmatpush2.msra.mxu0 0.0
        %942 = vmatprep.subr.mxu0 0.0
        %943 = vmatpush2.msra.mxu0 0.0
        %944 = vmatprep.subr.mxu0 0.0
        %945 = vmatpush2.msra.mxu0 0.0
        %946 = vmatprep.subr.mxu0 0.0
        %947 = vmatpush2.msra.mxu0 0.0
        %948 = vmatprep.subr.mxu0 0.0
        %949 = vmatpush2.msra.mxu0 0.0
        %950 = vmatprep.subr.mxu0 0.0
        %951 = vmatpush2.msra.mxu0 0.0
        %952 = vmatprep.subr.mxu0 0.0
        %953 = vmatpush2.msra.mxu0 0.0
        %954 = vmatprep.subr.mxu0 0.0
        %955 = vmatpush2.msra.mxu0 0.0
        %956 = vmatprep.subr.mxu0 0.0
        %957 = vmatpush2.msra.mxu0 0.0
        %958 = vmatprep.subr.mxu0 0.0
        %959 = vmatpush2.msra.mxu0 0.0
        %960 = vmatprep.subr.mxu0 0.0
        %961 = vmatpush2.msra.mxu0 0.0
        %962 = vmatprep.subr.mxu0 0.0
        %963 = vmatpush2.msra.mxu0 0.0
        %964 = vmatprep.subr.mxu0 0.0
        %965 = vmatpush2.msra.mxu0 0.0
        %966 = vmatprep.subr.mxu0 0.0
        %967 = vmatpush2.msra.mxu0 0.0
        %968 = vmatprep.subr.mxu0 0.0
        %969 = vmatpush2.msra.mxu0 0.0
        %970 = vmatprep.subr.mxu0 0.0
        %971 = vmatpush2.msra.mxu0 0.0
        %972 = vmatprep.mubr.f32.mxu0 0.0
        %973 = vmatmul.mubr.f32.gmra.mxu0 %v873
        %v974 = vpop.f32.mrf.mxu0
        %v975 = vadd.f32 0.0, %v974
        %v976 = vpop.f32.mrf.mxu0
        %977 = vmatprep.mubr.f32.mxu0 0.0
        %978 = vmatmul.mubr.f32.gmra.mxu0 %v875
        %v979 = vpop.f32.mrf.mxu0
        %v980 = vadd.f32 0.0, %v979
        %v981 = vpop.f32.mrf.mxu0
        %982 = vmatprep.mubr.f32.mxu0 0.0
        %983 = vmatmul.mubr.f32.gmra.mxu0 %v877
        %v984 = vpop.f32.mrf.mxu0
        %v985 = vadd.f32 0.0, %v984
        %v986 = vpop.f32.mrf.mxu0
        %987 = vmatprep.mubr.f32.mxu0 0.0
        %988 = vmatmul.mubr.f32.gmra.mxu0 %v879
        %v989 = vpop.f32.mrf.mxu0
        %v990 = vadd.f32 0.0, %v989
        %v991 = vpop.f32.mrf.mxu0
        %992 = vmatprep.mubr.f32.mxu0 0.0
        %993 = vmatmul.mubr.f32.gmra.mxu0 %v881
        %v994 = vpop.f32.mrf.mxu0
        %v995 = vadd.f32 0.0, %v994
        %v996 = vpop.f32.mrf.mxu0
        %997 = vmatprep.mubr.f32.mxu0 0.0
        %998 = vmatmul.mubr.f32.gmra.mxu0 %v883
        %v999 = vpop.f32.mrf.mxu0
        %v1000 = vadd.f32 0.0, %v999
        %v1001 = vpop.f32.mrf.mxu0
        %1002 = vmatprep.mubr.f32.mxu0 0.0
        %1003 = vmatmul.mubr.f32.gmra.mxu0 %v885
        %v1004 = vpop.f32.mrf.mxu0
        %v1005 = vadd.f32 0.0, %v1004
        %v1006 = vpop.f32.mrf.mxu0
        %1007 = vmatprep.mubr.f32.mxu0 0.0
        %1008 = vmatmul.mubr.f32.gmra.mxu0 %v887
        %v1009 = vpop.f32.mrf.mxu0
        %v1010 = vadd.f32 0.0, %v1009
        %v1011 = vpop.f32.mrf.mxu0
        %1012 = vmatprep.mubr.f32.mxu0 0.0
        %1013 = vmatmul.mubr.f32.gmra.mxu0 %v889
        %v1014 = vpop.f32.mrf.mxu0
        %v1015 = vadd.f32 0.0, %v1014
        %v1016 = vpop.f32.mrf.mxu0
        %1017 = vmatprep.mubr.f32.mxu0 0.0
        %1018 = vmatmul.mubr.f32.gmra.mxu0 %v891
        %v1019 = vpop.f32.mrf.mxu0
        %v1020 = vadd.f32 0.0, %v1019
        %v1021 = vpop.f32.mrf.mxu0
        %1022 = vmatprep.mubr.f32.mxu0 0.0
        %1023 = vmatmul.mubr.f32.gmra.mxu0 %v893
        %v1024 = vpop.f32.mrf.mxu0
        %v1025 = vadd.f32 0.0, %v1024
        %v1026 = vpop.f32.mrf.mxu0
        %1027 = vmatprep.mubr.f32.mxu0 0.0
        %1028 = vmatmul.mubr.f32.gmra.mxu0 %v895
        %v1029 = vpop.f32.mrf.mxu0
        %v1030 = vadd.f32 0.0, %v1029
        %v1031 = vpop.f32.mrf.mxu0
        %1032 = vmatprep.mubr.f32.mxu0 0.0
        %1033 = vmatmul.mubr.f32.gmra.mxu0 %v897
        %v1034 = vpop.f32.mrf.mxu0
        %v1035 = vadd.f32 0.0, %v1034
        %v1036 = vpop.f32.mrf.mxu0
        %1037 = vmatprep.mubr.f32.mxu0 0.0
        %1038 = vmatmul.mubr.f32.gmra.mxu0 %v899
        %v1039 = vpop.f32.mrf.mxu0
        %v1040 = vadd.f32 0.0, %v1039
        %v1041 = vpop.f32.mrf.mxu0
        %1042 = vmatprep.mubr.f32.mxu0 0.0
        %1043 = vmatmul.mubr.f32.gmra.mxu0 %v901
        %v1044 = vpop.f32.mrf.mxu0
        %v1045 = vadd.f32 0.0, %v1044
        %v1046 = vpop.f32.mrf.mxu0
        %1047 = vmatprep.mubr.f32.mxu0 0.0
        %1048 = vmatmul.mubr.f32.gmra.mxu0 %v903
        %v1049 = vpop.f32.mrf.mxu0
        %v1050 = vadd.f32 0.0, %v1049
        %v1051 = vpop.f32.mrf.mxu0
        %1052 = vdwg.mxu0
        %v1053 = vadd.f32 %v752, %v975
        %v1054 = vadd.f32 %v757, %v980
        %v1055 = vadd.f32 %v762, %v985
        %v1056 = vadd.f32 %v767, %v990
        %v1057 = vadd.f32 %v772, %v995
        %v1058 = vadd.f32 %v777, %v1000
        %v1059 = vadd.f32 %v782, %v1005
        %v1060 = vadd.f32 %v787, %v1010
        %v1061 = vadd.f32 %v792, %v1015
        %v1062 = vadd.f32 %v797, %v1020
        %v1063 = vadd.f32 %v802, %v1025
        %v1064 = vadd.f32 %v807, %v1030
        %v1065 = vadd.f32 %v812, %v1035
        %v1066 = vadd.f32 %v817, %v1040
        %v1067 = vadd.f32 %v822, %v1045
        %v1068 = vadd.f32 %v827, %v1050
        %s1069 = scalar_lea.vmem %s2, 24
        %v1070 = vld [vmem:[%s1069] sm:$0x7f]
        %v1072 = vsel %vm469, %v395, 0
        %v1075 = vsel %vm469, %v396, 0
        %v1078 = vsel %vm426, %v1070, 0
        %1080 = vmatprep.subr.mxu0 0.0
        %1081 = vmatpush1.msra.mxu0 0.0
        %1082 = vmatprep.subr.mxu0 0.0
        %1083 = vmatpush1.msra.mxu0 0.0
        %1084 = vmatprep.subr.mxu0 0.0
        %1085 = vmatpush1.msra.mxu0 0.0
        %1086 = vmatprep.subr.mxu0 0.0
        %1087 = vmatpush1.msra.mxu0 0.0
        %1088 = vmatprep.subr.mxu0 0.0
        %1089 = vmatpush1.msra.mxu0 0.0
        %1090 = vmatprep.subr.mxu0 0.0
        %1091 = vmatpush1.msra.mxu0 0.0
        %1092 = vmatprep.subr.mxu0 0.0
        %1093 = vmatpush1.msra.mxu0 0.0
        %1094 = vmatprep.subr.mxu0 0.0
        %1095 = vmatpush1.msra.mxu0 0.0
        %1096 = vmatprep.subr.mxu0 0.0
        %1097 = vmatpush1.msra.mxu0 0.0
        %1098 = vmatprep.subr.mxu0 0.0
        %1099 = vmatpush1.msra.mxu0 0.0
        %1100 = vmatprep.subr.mxu0 0.0
        %1101 = vmatpush1.msra.mxu0 0.0
        %1102 = vmatprep.subr.mxu0 0.0
        %1103 = vmatpush1.msra.mxu0 0.0
        %1104 = vmatprep.subr.mxu0 0.0
        %1105 = vmatpush1.msra.mxu0 0.0
        %1106 = vmatprep.subr.mxu0 0.0
        %1107 = vmatpush1.msra.mxu0 0.0
        %1108 = vmatprep.subr.mxu0 0.0
        %1109 = vmatpush1.msra.mxu0 0.0
        %1110 = vmatprep.subr.mxu0 0.0
        %1111 = vmatpush1.msra.mxu0 %v1078
        %1112 = vmatprep.subr.mxu0 0.0
        %1113 = vmatpush2.msra.mxu0 0.0
        %1114 = vmatprep.subr.mxu0 0.0
        %1115 = vmatpush2.msra.mxu0 0.0
        %1116 = vmatprep.subr.mxu0 0.0
        %1117 = vmatpush2.msra.mxu0 0.0
        %1118 = vmatprep.subr.mxu0 0.0
        %1119 = vmatpush2.msra.mxu0 0.0
        %1120 = vmatprep.subr.mxu0 0.0
        %1121 = vmatpush2.msra.mxu0 0.0
        %1122 = vmatprep.subr.mxu0 0.0
        %1123 = vmatpush2.msra.mxu0 0.0
        %1124 = vmatprep.subr.mxu0 0.0
        %1125 = vmatpush2.msra.mxu0 0.0
        %1126 = vmatprep.subr.mxu0 0.0
        %1127 = vmatpush2.msra.mxu0 0.0
        %1128 = vmatprep.subr.mxu0 0.0
        %1129 = vmatpush2.msra.mxu0 0.0
        %1130 = vmatprep.subr.mxu0 0.0
        %1131 = vmatpush2.msra.mxu0 0.0
        %1132 = vmatprep.subr.mxu0 0.0
        %1133 = vmatpush2.msra.mxu0 0.0
        %1134 = vmatprep.subr.mxu0 0.0
        %1135 = vmatpush2.msra.mxu0 0.0
        %1136 = vmatprep.subr.mxu0 0.0
        %1137 = vmatpush2.msra.mxu0 0.0
        %1138 = vmatprep.subr.mxu0 0.0
        %1139 = vmatpush2.msra.mxu0 0.0
        %1140 = vmatprep.subr.mxu0 0.0
        %1141 = vmatpush2.msra.mxu0 0.0
        %1142 = vmatprep.subr.mxu0 0.0
        %1143 = vmatpush2.msra.mxu0 0.0
        %1144 = vmatprep.mubr.f32.mxu0 0.0
        %1145 = vmatmul.mubr.f32.gmra.mxu0 %v654
        %v1146 = vpop.f32.mrf.mxu0
        %v1147 = vadd.f32 0.0, %v1146
        %v1148 = vpop.f32.mrf.mxu0
        %1149 = vmatprep.mubr.f32.mxu0 0.0
        %1150 = vmatmul.mubr.f32.gmra.mxu0 %v656
        %v1151 = vpop.f32.mrf.mxu0
        %v1152 = vadd.f32 0.0, %v1151
        %v1153 = vpop.f32.mrf.mxu0
        %1154 = vmatprep.mubr.f32.mxu0 0.0
        %1155 = vmatmul.mubr.f32.gmra.mxu0 %v658
        %v1156 = vpop.f32.mrf.mxu0
        %v1157 = vadd.f32 0.0, %v1156
        %v1158 = vpop.f32.mrf.mxu0
        %1159 = vmatprep.mubr.f32.mxu0 0.0
        %1160 = vmatmul.mubr.f32.gmra.mxu0 %v660
        %v1161 = vpop.f32.mrf.mxu0
        %v1162 = vadd.f32 0.0, %v1161
        %v1163 = vpop.f32.mrf.mxu0
        %1164 = vmatprep.mubr.f32.mxu0 0.0
        %1165 = vmatmul.mubr.f32.gmra.mxu0 %v662
        %v1166 = vpop.f32.mrf.mxu0
        %v1167 = vadd.f32 0.0, %v1166
        %v1168 = vpop.f32.mrf.mxu0
        %1169 = vmatprep.mubr.f32.mxu0 0.0
        %1170 = vmatmul.mubr.f32.gmra.mxu0 %v664
        %v1171 = vpop.f32.mrf.mxu0
        %v1172 = vadd.f32 0.0, %v1171
        %v1173 = vpop.f32.mrf.mxu0
        %1174 = vmatprep.mubr.f32.mxu0 0.0
        %1175 = vmatmul.mubr.f32.gmra.mxu0 %v666
        %v1176 = vpop.f32.mrf.mxu0
        %v1177 = vadd.f32 0.0, %v1176
        %v1178 = vpop.f32.mrf.mxu0
        %1179 = vmatprep.mubr.f32.mxu0 0.0
        %1180 = vmatmul.mubr.f32.gmra.mxu0 %v668
        %v1181 = vpop.f32.mrf.mxu0
        %v1182 = vadd.f32 0.0, %v1181
        %v1183 = vpop.f32.mrf.mxu0
        %1184 = vmatprep.mubr.f32.mxu0 0.0
        %1185 = vmatmul.mubr.f32.gmra.mxu0 %v670
        %v1186 = vpop.f32.mrf.mxu0
        %v1187 = vadd.f32 0.0, %v1186
        %v1188 = vpop.f32.mrf.mxu0
        %1189 = vmatprep.mubr.f32.mxu0 0.0
        %1190 = vmatmul.mubr.f32.gmra.mxu0 %v672
        %v1191 = vpop.f32.mrf.mxu0
        %v1192 = vadd.f32 0.0, %v1191
        %v1193 = vpop.f32.mrf.mxu0
        %1194 = vmatprep.mubr.f32.mxu0 0.0
        %1195 = vmatmul.mubr.f32.gmra.mxu0 %v674
        %v1196 = vpop.f32.mrf.mxu0
        %v1197 = vadd.f32 0.0, %v1196
        %v1198 = vpop.f32.mrf.mxu0
        %1199 = vmatprep.mubr.f32.mxu0 0.0
        %1200 = vmatmul.mubr.f32.gmra.mxu0 %v676
        %v1201 = vpop.f32.mrf.mxu0
        %v1202 = vadd.f32 0.0, %v1201
        %v1203 = vpop.f32.mrf.mxu0
        %1204 = vmatprep.mubr.f32.mxu0 0.0
        %1205 = vmatmul.mubr.f32.gmra.mxu0 %v678
        %v1206 = vpop.f32.mrf.mxu0
        %v1207 = vadd.f32 0.0, %v1206
        %v1208 = vpop.f32.mrf.mxu0
        %1209 = vmatprep.mubr.f32.mxu0 0.0
        %1210 = vmatmul.mubr.f32.gmra.mxu0 %v680
        %v1211 = vpop.f32.mrf.mxu0
        %v1212 = vadd.f32 0.0, %v1211
        %v1213 = vpop.f32.mrf.mxu0
        %1214 = vmatprep.mubr.f32.mxu0 0.0
        %1215 = vmatmul.mubr.f32.gmra.mxu0 %v1072
        %v1216 = vpop.f32.mrf.mxu0
        %v1217 = vadd.f32 0.0, %v1216
        %v1218 = vpop.f32.mrf.mxu0
        %1219 = vmatprep.mubr.f32.mxu0 0.0
        %1220 = vmatmul.mubr.f32.gmra.mxu0 %v1075
        %v1221 = vpop.f32.mrf.mxu0
        %v1222 = vadd.f32 0.0, %v1221
        %v1223 = vpop.f32.mrf.mxu0
        %1224 = vdwg.mxu0
        %v1225 = vadd.f32 %v1053, %v1147
        %v1226 = vadd.f32 %v1054, %v1152
        %v1227 = vadd.f32 %v1055, %v1157
        %v1228 = vadd.f32 %v1056, %v1162
        %v1229 = vadd.f32 %v1057, %v1167
        %v1230 = vadd.f32 %v1058, %v1172
        %v1231 = vadd.f32 %v1059, %v1177
        %v1232 = vadd.f32 %v1060, %v1182
        %v1233 = vadd.f32 %v1061, %v1187
        %v1234 = vadd.f32 %v1062, %v1192
        %v1235 = vadd.f32 %v1063, %v1197
        %v1236 = vadd.f32 %v1064, %v1202
        %v1237 = vadd.f32 %v1065, %v1207
        %v1238 = vadd.f32 %v1066, %v1212
        %v1239 = vadd.f32 %v1067, %v1217
        %v1240 = vadd.f32 %v1068, %v1222
        %v1242 = vrot.slane %v395, 1
        %v1243 = vrot.slane %v396, 1
        %v1244 = vsel %vm426, %v1242, %v1243
        %v1245 = vrot.slane %v397, 1
        %v1246 = vsel %vm426, %v1243, %v1245
        %s1247 = scalar_lea.vmem %s2, 32
        %v1248 = vld [vmem:[%s1247] sm:$0x7f]
        %v1249 = vsel %vm469, %v1244, 0
        %v1251 = vsel %vm469, %v1246, 0
        %v1254 = vsel %vm426, %v1248, 0
        %1256 = vmatprep.subr.mxu0 0.0
        %1257 = vmatpush1.msra.mxu0 0.0
        %1258 = vmatprep.subr.mxu0 0.0
        %1259 = vmatpush1.msra.mxu0 0.0
        %1260 = vmatprep.subr.mxu0 0.0
        %1261 = vmatpush1.msra.mxu0 0.0
        %1262 = vmatprep.subr.mxu0 0.0
        %1263 = vmatpush1.msra.mxu0 0.0
        %1264 = vmatprep.subr.mxu0 0.0
        %1265 = vmatpush1.msra.mxu0 0.0
        %1266 = vmatprep.subr.mxu0 0.0
        %1267 = vmatpush1.msra.mxu0 0.0
        %1268 = vmatprep.subr.mxu0 0.0
        %1269 = vmatpush1.msra.mxu0 0.0
        %1270 = vmatprep.subr.mxu0 0.0
        %1271 = vmatpush1.msra.mxu0 0.0
        %1272 = vmatprep.subr.mxu0 0.0
        %1273 = vmatpush1.msra.mxu0 0.0
        %1274 = vmatprep.subr.mxu0 0.0
        %1275 = vmatpush1.msra.mxu0 0.0
        %1276 = vmatprep.subr.mxu0 0.0
        %1277 = vmatpush1.msra.mxu0 0.0
        %1278 = vmatprep.subr.mxu0 0.0
        %1279 = vmatpush1.msra.mxu0 0.0
        %1280 = vmatprep.subr.mxu0 0.0
        %1281 = vmatpush1.msra.mxu0 0.0
        %1282 = vmatprep.subr.mxu0 0.0
        %1283 = vmatpush1.msra.mxu0 0.0
        %1284 = vmatprep.subr.mxu0 0.0
        %1285 = vmatpush1.msra.mxu0 0.0
        %1286 = vmatprep.subr.mxu0 0.0
        %1287 = vmatpush1.msra.mxu0 %v1254
        %1288 = vmatprep.subr.mxu0 0.0
        %1289 = vmatpush2.msra.mxu0 0.0
        %1290 = vmatprep.subr.mxu0 0.0
        %1291 = vmatpush2.msra.mxu0 0.0
        %1292 = vmatprep.subr.mxu0 0.0
        %1293 = vmatpush2.msra.mxu0 0.0
        %1294 = vmatprep.subr.mxu0 0.0
        %1295 = vmatpush2.msra.mxu0 0.0
        %1296 = vmatprep.subr.mxu0 0.0
        %1297 = vmatpush2.msra.mxu0 0.0
        %1298 = vmatprep.subr.mxu0 0.0
        %1299 = vmatpush2.msra.mxu0 0.0
        %1300 = vmatprep.subr.mxu0 0.0
        %1301 = vmatpush2.msra.mxu0 0.0
        %1302 = vmatprep.subr.mxu0 0.0
        %1303 = vmatpush2.msra.mxu0 0.0
        %1304 = vmatprep.subr.mxu0 0.0
        %1305 = vmatpush2.msra.mxu0 0.0
        %1306 = vmatprep.subr.mxu0 0.0
        %1307 = vmatpush2.msra.mxu0 0.0
        %1308 = vmatprep.subr.mxu0 0.0
        %1309 = vmatpush2.msra.mxu0 0.0
        %1310 = vmatprep.subr.mxu0 0.0
        %1311 = vmatpush2.msra.mxu0 0.0
        %1312 = vmatprep.subr.mxu0 0.0
        %1313 = vmatpush2.msra.mxu0 0.0
        %1314 = vmatprep.subr.mxu0 0.0
        %1315 = vmatpush2.msra.mxu0 0.0
        %1316 = vmatprep.subr.mxu0 0.0
        %1317 = vmatpush2.msra.mxu0 0.0
        %1318 = vmatprep.subr.mxu0 0.0
        %1319 = vmatpush2.msra.mxu0 0.0
        %1320 = vmatprep.mubr.f32.mxu0 0.0
        %1321 = vmatmul.mubr.f32.gmra.mxu0 %v474
        %v1322 = vpop.f32.mrf.mxu0
        %v1323 = vadd.f32 0.0, %v1322
        %v1324 = vpop.f32.mrf.mxu0
        %1325 = vmatprep.mubr.f32.mxu0 0.0
        %1326 = vmatmul.mubr.f32.gmra.mxu0 %v476
        %v1327 = vpop.f32.mrf.mxu0
        %v1328 = vadd.f32 0.0, %v1327
        %v1329 = vpop.f32.mrf.mxu0
        %1330 = vmatprep.mubr.f32.mxu0 0.0
        %1331 = vmatmul.mubr.f32.gmra.mxu0 %v478
        %v1332 = vpop.f32.mrf.mxu0
        %v1333 = vadd.f32 0.0, %v1332
        %v1334 = vpop.f32.mrf.mxu0
        %1335 = vmatprep.mubr.f32.mxu0 0.0
        %1336 = vmatmul.mubr.f32.gmra.mxu0 %v480
        %v1337 = vpop.f32.mrf.mxu0
        %v1338 = vadd.f32 0.0, %v1337
        %v1339 = vpop.f32.mrf.mxu0
        %1340 = vmatprep.mubr.f32.mxu0 0.0
        %1341 = vmatmul.mubr.f32.gmra.mxu0 %v482
        %v1342 = vpop.f32.mrf.mxu0
        %v1343 = vadd.f32 0.0, %v1342
        %v1344 = vpop.f32.mrf.mxu0
        %1345 = vmatprep.mubr.f32.mxu0 0.0
        %1346 = vmatmul.mubr.f32.gmra.mxu0 %v484
        %v1347 = vpop.f32.mrf.mxu0
        %v1348 = vadd.f32 0.0, %v1347
        %v1349 = vpop.f32.mrf.mxu0
        %1350 = vmatprep.mubr.f32.mxu0 0.0
        %1351 = vmatmul.mubr.f32.gmra.mxu0 %v486
        %v1352 = vpop.f32.mrf.mxu0
        %v1353 = vadd.f32 0.0, %v1352
        %v1354 = vpop.f32.mrf.mxu0
        %1355 = vmatprep.mubr.f32.mxu0 0.0
        %1356 = vmatmul.mubr.f32.gmra.mxu0 %v488
        %v1357 = vpop.f32.mrf.mxu0
        %v1358 = vadd.f32 0.0, %v1357
        %v1359 = vpop.f32.mrf.mxu0
        %1360 = vmatprep.mubr.f32.mxu0 0.0
        %1361 = vmatmul.mubr.f32.gmra.mxu0 %v490
        %v1362 = vpop.f32.mrf.mxu0
        %v1363 = vadd.f32 0.0, %v1362
        %v1364 = vpop.f32.mrf.mxu0
        %1365 = vmatprep.mubr.f32.mxu0 0.0
        %1366 = vmatmul.mubr.f32.gmra.mxu0 %v492
        %v1367 = vpop.f32.mrf.mxu0
        %v1368 = vadd.f32 0.0, %v1367
        %v1369 = vpop.f32.mrf.mxu0
        %1370 = vmatprep.mubr.f32.mxu0 0.0
        %1371 = vmatmul.mubr.f32.gmra.mxu0 %v494
        %v1372 = vpop.f32.mrf.mxu0
        %v1373 = vadd.f32 0.0, %v1372
        %v1374 = vpop.f32.mrf.mxu0
        %1375 = vmatprep.mubr.f32.mxu0 0.0
        %1376 = vmatmul.mubr.f32.gmra.mxu0 %v496
        %v1377 = vpop.f32.mrf.mxu0
        %v1378 = vadd.f32 0.0, %v1377
        %v1379 = vpop.f32.mrf.mxu0
        %1380 = vmatprep.mubr.f32.mxu0 0.0
        %1381 = vmatmul.mubr.f32.gmra.mxu0 %v498
        %v1382 = vpop.f32.mrf.mxu0
        %v1383 = vadd.f32 0.0, %v1382
        %v1384 = vpop.f32.mrf.mxu0
        %1385 = vmatprep.mubr.f32.mxu0 0.0
        %1386 = vmatmul.mubr.f32.gmra.mxu0 %v500
        %v1387 = vpop.f32.mrf.mxu0
        %v1388 = vadd.f32 0.0, %v1387
        %v1389 = vpop.f32.mrf.mxu0
        %1390 = vmatprep.mubr.f32.mxu0 0.0
        %1391 = vmatmul.mubr.f32.gmra.mxu0 %v1249
        %v1392 = vpop.f32.mrf.mxu0
        %v1393 = vadd.f32 0.0, %v1392
        %v1394 = vpop.f32.mrf.mxu0
        %1395 = vmatprep.mubr.f32.mxu0 0.0
        %1396 = vmatmul.mubr.f32.gmra.mxu0 %v1251
        %v1397 = vpop.f32.mrf.mxu0
        %v1398 = vadd.f32 0.0, %v1397
        %v1399 = vpop.f32.mrf.mxu0
        %1400 = vdwg.mxu0
        %v1401 = vadd.f32 %v1225, %v1323
        %v1402 = vadd.f32 %v1226, %v1328
        %v1403 = vadd.f32 %v1227, %v1333
        %v1404 = vadd.f32 %v1228, %v1338
        %v1405 = vadd.f32 %v1229, %v1343
        %v1406 = vadd.f32 %v1230, %v1348
        %v1407 = vadd.f32 %v1231, %v1353
        %v1408 = vadd.f32 %v1232, %v1358
        %v1409 = vadd.f32 %v1233, %v1363
        %v1410 = vadd.f32 %v1234, %v1368
        %v1411 = vadd.f32 %v1235, %v1373
        %v1412 = vadd.f32 %v1236, %v1378
        %v1413 = vadd.f32 %v1237, %v1383
        %v1414 = vadd.f32 %v1238, %v1388
        %v1415 = vadd.f32 %v1239, %v1393
        %v1416 = vadd.f32 %v1240, %v1398
        %v1417 = vrot.slane %v395, 2
        %v1418 = vrot.slane %v396, 2
        %v1419 = vsel %vm830, %v1417, %v1418
        %v1420 = vrot.slane %v397, 2
        %v1421 = vsel %vm830, %v1418, %v1420
        %s1422 = scalar_lea.vmem %s2, 40
        %v1423 = vld [vmem:[%s1422] sm:$0x7f]
        %v1424 = vsel %vm469, %v1419, 0
        %v1426 = vsel %vm469, %v1421, 0
        %v1429 = vsel %vm426, %v1423, 0
        %1431 = vmatprep.subr.mxu0 0.0
        %1432 = vmatpush1.msra.mxu0 0.0
        %1433 = vmatprep.subr.mxu0 0.0
        %1434 = vmatpush1.msra.mxu0 0.0
        %1435 = vmatprep.subr.mxu0 0.0
        %1436 = vmatpush1.msra.mxu0 0.0
        %1437 = vmatprep.subr.mxu0 0.0
        %1438 = vmatpush1.msra.mxu0 0.0
        %1439 = vmatprep.subr.mxu0 0.0
        %1440 = vmatpush1.msra.mxu0 0.0
        %1441 = vmatprep.subr.mxu0 0.0
        %1442 = vmatpush1.msra.mxu0 0.0
        %1443 = vmatprep.subr.mxu0 0.0
        %1444 = vmatpush1.msra.mxu0 0.0
        %1445 = vmatprep.subr.mxu0 0.0
        %1446 = vmatpush1.msra.mxu0 0.0
        %1447 = vmatprep.subr.mxu0 0.0
        %1448 = vmatpush1.msra.mxu0 0.0
        %1449 = vmatprep.subr.mxu0 0.0
        %1450 = vmatpush1.msra.mxu0 0.0
        %1451 = vmatprep.subr.mxu0 0.0
        %1452 = vmatpush1.msra.mxu0 0.0
        %1453 = vmatprep.subr.mxu0 0.0
        %1454 = vmatpush1.msra.mxu0 0.0
        %1455 = vmatprep.subr.mxu0 0.0
        %1456 = vmatpush1.msra.mxu0 0.0
        %1457 = vmatprep.subr.mxu0 0.0
        %1458 = vmatpush1.msra.mxu0 0.0
        %1459 = vmatprep.subr.mxu0 0.0
        %1460 = vmatpush1.msra.mxu0 0.0
        %1461 = vmatprep.subr.mxu0 0.0
        %1462 = vmatpush1.msra.mxu0 %v1429
        %1463 = vmatprep.subr.mxu0 0.0
        %1464 = vmatpush2.msra.mxu0 0.0
        %1465 = vmatprep.subr.mxu0 0.0
        %1466 = vmatpush2.msra.mxu0 0.0
        %1467 = vmatprep.subr.mxu0 0.0
        %1468 = vmatpush2.msra.mxu0 0.0
        %1469 = vmatprep.subr.mxu0 0.0
        %1470 = vmatpush2.msra.mxu0 0.0
        %1471 = vmatprep.subr.mxu0 0.0
        %1472 = vmatpush2.msra.mxu0 0.0
        %1473 = vmatprep.subr.mxu0 0.0
        %1474 = vmatpush2.msra.mxu0 0.0
        %1475 = vmatprep.subr.mxu0 0.0
        %1476 = vmatpush2.msra.mxu0 0.0
        %1477 = vmatprep.subr.mxu0 0.0
        %1478 = vmatpush2.msra.mxu0 0.0
        %1479 = vmatprep.subr.mxu0 0.0
        %1480 = vmatpush2.msra.mxu0 0.0
        %1481 = vmatprep.subr.mxu0 0.0
        %1482 = vmatpush2.msra.mxu0 0.0
        %1483 = vmatprep.subr.mxu0 0.0
        %1484 = vmatpush2.msra.mxu0 0.0
        %1485 = vmatprep.subr.mxu0 0.0
        %1486 = vmatpush2.msra.mxu0 0.0
        %1487 = vmatprep.subr.mxu0 0.0
        %1488 = vmatpush2.msra.mxu0 0.0
        %1489 = vmatprep.subr.mxu0 0.0
        %1490 = vmatpush2.msra.mxu0 0.0
        %1491 = vmatprep.subr.mxu0 0.0
        %1492 = vmatpush2.msra.mxu0 0.0
        %1493 = vmatprep.subr.mxu0 0.0
        %1494 = vmatpush2.msra.mxu0 0.0
        %1495 = vmatprep.mubr.f32.mxu0 0.0
        %1496 = vmatmul.mubr.f32.gmra.mxu0 %v877
        %v1497 = vpop.f32.mrf.mxu0
        %v1498 = vadd.f32 0.0, %v1497
        %v1499 = vpop.f32.mrf.mxu0
        %1500 = vmatprep.mubr.f32.mxu0 0.0
        %1501 = vmatmul.mubr.f32.gmra.mxu0 %v879
        %v1502 = vpop.f32.mrf.mxu0
        %v1503 = vadd.f32 0.0, %v1502
        %v1504 = vpop.f32.mrf.mxu0
        %1505 = vmatprep.mubr.f32.mxu0 0.0
        %1506 = vmatmul.mubr.f32.gmra.mxu0 %v881
        %v1507 = vpop.f32.mrf.mxu0
        %v1508 = vadd.f32 0.0, %v1507
        %v1509 = vpop.f32.mrf.mxu0
        %1510 = vmatprep.mubr.f32.mxu0 0.0
        %1511 = vmatmul.mubr.f32.gmra.mxu0 %v883
        %v1512 = vpop.f32.mrf.mxu0
        %v1513 = vadd.f32 0.0, %v1512
        %v1514 = vpop.f32.mrf.mxu0
        %1515 = vmatprep.mubr.f32.mxu0 0.0
        %1516 = vmatmul.mubr.f32.gmra.mxu0 %v885
        %v1517 = vpop.f32.mrf.mxu0
        %v1518 = vadd.f32 0.0, %v1517
        %v1519 = vpop.f32.mrf.mxu0
        %1520 = vmatprep.mubr.f32.mxu0 0.0
        %1521 = vmatmul.mubr.f32.gmra.mxu0 %v887
        %v1522 = vpop.f32.mrf.mxu0
        %v1523 = vadd.f32 0.0, %v1522
        %v1524 = vpop.f32.mrf.mxu0
        %1525 = vmatprep.mubr.f32.mxu0 0.0
        %1526 = vmatmul.mubr.f32.gmra.mxu0 %v889
        %v1527 = vpop.f32.mrf.mxu0
        %v1528 = vadd.f32 0.0, %v1527
        %v1529 = vpop.f32.mrf.mxu0
        %1530 = vmatprep.mubr.f32.mxu0 0.0
        %1531 = vmatmul.mubr.f32.gmra.mxu0 %v891
        %v1532 = vpop.f32.mrf.mxu0
        %v1533 = vadd.f32 0.0, %v1532
        %v1534 = vpop.f32.mrf.mxu0
        %1535 = vmatprep.mubr.f32.mxu0 0.0
        %1536 = vmatmul.mubr.f32.gmra.mxu0 %v893
        %v1537 = vpop.f32.mrf.mxu0
        %v1538 = vadd.f32 0.0, %v1537
        %v1539 = vpop.f32.mrf.mxu0
        %1540 = vmatprep.mubr.f32.mxu0 0.0
        %1541 = vmatmul.mubr.f32.gmra.mxu0 %v895
        %v1542 = vpop.f32.mrf.mxu0
        %v1543 = vadd.f32 0.0, %v1542
        %v1544 = vpop.f32.mrf.mxu0
        %1545 = vmatprep.mubr.f32.mxu0 0.0
        %1546 = vmatmul.mubr.f32.gmra.mxu0 %v897
        %v1547 = vpop.f32.mrf.mxu0
        %v1548 = vadd.f32 0.0, %v1547
        %v1549 = vpop.f32.mrf.mxu0
        %1550 = vmatprep.mubr.f32.mxu0 0.0
        %1551 = vmatmul.mubr.f32.gmra.mxu0 %v899
        %v1552 = vpop.f32.mrf.mxu0
        %v1553 = vadd.f32 0.0, %v1552
        %v1554 = vpop.f32.mrf.mxu0
        %1555 = vmatprep.mubr.f32.mxu0 0.0
        %1556 = vmatmul.mubr.f32.gmra.mxu0 %v901
        %v1557 = vpop.f32.mrf.mxu0
        %v1558 = vadd.f32 0.0, %v1557
        %v1559 = vpop.f32.mrf.mxu0
        %1560 = vmatprep.mubr.f32.mxu0 0.0
        %1561 = vmatmul.mubr.f32.gmra.mxu0 %v903
        %v1562 = vpop.f32.mrf.mxu0
        %v1563 = vadd.f32 0.0, %v1562
        %v1564 = vpop.f32.mrf.mxu0
        %1565 = vmatprep.mubr.f32.mxu0 0.0
        %1566 = vmatmul.mubr.f32.gmra.mxu0 %v1424
        %v1567 = vpop.f32.mrf.mxu0
        %v1568 = vadd.f32 0.0, %v1567
        %v1569 = vpop.f32.mrf.mxu0
        %1570 = vmatprep.mubr.f32.mxu0 0.0
        %1571 = vmatmul.mubr.f32.gmra.mxu0 %v1426
        %v1572 = vpop.f32.mrf.mxu0
        %v1573 = vadd.f32 0.0, %v1572
        %v1574 = vpop.f32.mrf.mxu0
        %1575 = vdwg.mxu0
        %v1576 = vadd.f32 %v1401, %v1498
        %v1577 = vadd.f32 %v1402, %v1503
        %v1578 = vadd.f32 %v1403, %v1508
        %v1579 = vadd.f32 %v1404, %v1513
        %v1580 = vadd.f32 %v1405, %v1518
        %v1581 = vadd.f32 %v1406, %v1523
        %v1582 = vadd.f32 %v1407, %v1528
        %v1583 = vadd.f32 %v1408, %v1533
        %v1584 = vadd.f32 %v1409, %v1538
        %v1585 = vadd.f32 %v1410, %v1543
        %v1586 = vadd.f32 %v1411, %v1548
        %v1587 = vadd.f32 %v1412, %v1553
        %v1588 = vadd.f32 %v1413, %v1558
        %v1589 = vadd.f32 %v1414, %v1563
        %v1590 = vadd.f32 %v1415, %v1568
        %v1591 = vadd.f32 %v1416, %v1573
        %s1592 = scalar_lea.vmem %s2, 48
        %v1593 = vld [vmem:[%s1592] sm:$0x7f]
        %v1595 = vsel %vm469, %v398, 0
        %v1598 = vsel %vm469, %v399, 0
        %v1601 = vsel %vm426, %v1593, 0
        %1603 = vmatprep.subr.mxu0 0.0
        %1604 = vmatpush1.msra.mxu0 0.0
        %1605 = vmatprep.subr.mxu0 0.0
        %1606 = vmatpush1.msra.mxu0 0.0
        %1607 = vmatprep.subr.mxu0 0.0
        %1608 = vmatpush1.msra.mxu0 0.0
        %1609 = vmatprep.subr.mxu0 0.0
        %1610 = vmatpush1.msra.mxu0 0.0
        %1611 = vmatprep.subr.mxu0 0.0
        %1612 = vmatpush1.msra.mxu0 0.0
        %1613 = vmatprep.subr.mxu0 0.0
        %1614 = vmatpush1.msra.mxu0 0.0
        %1615 = vmatprep.subr.mxu0 0.0
        %1616 = vmatpush1.msra.mxu0 0.0
        %1617 = vmatprep.subr.mxu0 0.0
        %1618 = vmatpush1.msra.mxu0 0.0
        %1619 = vmatprep.subr.mxu0 0.0
        %1620 = vmatpush1.msra.mxu0 0.0
        %1621 = vmatprep.subr.mxu0 0.0
        %1622 = vmatpush1.msra.mxu0 0.0
        %1623 = vmatprep.subr.mxu0 0.0
        %1624 = vmatpush1.msra.mxu0 0.0
        %1625 = vmatprep.subr.mxu0 0.0
        %1626 = vmatpush1.msra.mxu0 0.0
        %1627 = vmatprep.subr.mxu0 0.0
        %1628 = vmatpush1.msra.mxu0 0.0
        %1629 = vmatprep.subr.mxu0 0.0
        %1630 = vmatpush1.msra.mxu0 0.0
        %1631 = vmatprep.subr.mxu0 0.0
        %1632 = vmatpush1.msra.mxu0 0.0
        %1633 = vmatprep.subr.mxu0 0.0
        %1634 = vmatpush1.msra.mxu0 %v1601
        %1635 = vmatprep.subr.mxu0 0.0
        %1636 = vmatpush2.msra.mxu0 0.0
        %1637 = vmatprep.subr.mxu0 0.0
        %1638 = vmatpush2.msra.mxu0 0.0
        %1639 = vmatprep.subr.mxu0 0.0
        %1640 = vmatpush2.msra.mxu0 0.0
        %1641 = vmatprep.subr.mxu0 0.0
        %1642 = vmatpush2.msra.mxu0 0.0
        %1643 = vmatprep.subr.mxu0 0.0
        %1644 = vmatpush2.msra.mxu0 0.0
        %1645 = vmatprep.subr.mxu0 0.0
        %1646 = vmatpush2.msra.mxu0 0.0
        %1647 = vmatprep.subr.mxu0 0.0
        %1648 = vmatpush2.msra.mxu0 0.0
        %1649 = vmatprep.subr.mxu0 0.0
        %1650 = vmatpush2.msra.mxu0 0.0
        %1651 = vmatprep.subr.mxu0 0.0
        %1652 = vmatpush2.msra.mxu0 0.0
        %1653 = vmatprep.subr.mxu0 0.0
        %1654 = vmatpush2.msra.mxu0 0.0
        %1655 = vmatprep.subr.mxu0 0.0
        %1656 = vmatpush2.msra.mxu0 0.0
        %1657 = vmatprep.subr.mxu0 0.0
        %1658 = vmatpush2.msra.mxu0 0.0
        %1659 = vmatprep.subr.mxu0 0.0
        %1660 = vmatpush2.msra.mxu0 0.0
        %1661 = vmatprep.subr.mxu0 0.0
        %1662 = vmatpush2.msra.mxu0 0.0
        %1663 = vmatprep.subr.mxu0 0.0
        %1664 = vmatpush2.msra.mxu0 0.0
        %1665 = vmatprep.subr.mxu0 0.0
        %1666 = vmatpush2.msra.mxu0 0.0
        %1667 = vmatprep.mubr.f32.mxu0 0.0
        %1668 = vmatmul.mubr.f32.gmra.mxu0 %v658
        %v1669 = vpop.f32.mrf.mxu0
        %v1670 = vadd.f32 0.0, %v1669
        %v1671 = vpop.f32.mrf.mxu0
        %1672 = vmatprep.mubr.f32.mxu0 0.0
        %1673 = vmatmul.mubr.f32.gmra.mxu0 %v660
        %v1674 = vpop.f32.mrf.mxu0
        %v1675 = vadd.f32 0.0, %v1674
        %v1676 = vpop.f32.mrf.mxu0
        %1677 = vmatprep.mubr.f32.mxu0 0.0
        %1678 = vmatmul.mubr.f32.gmra.mxu0 %v662
        %v1679 = vpop.f32.mrf.mxu0
        %v1680 = vadd.f32 0.0, %v1679
        %v1681 = vpop.f32.mrf.mxu0
        %1682 = vmatprep.mubr.f32.mxu0 0.0
        %1683 = vmatmul.mubr.f32.gmra.mxu0 %v664
        %v1684 = vpop.f32.mrf.mxu0
        %v1685 = vadd.f32 0.0, %v1684
        %v1686 = vpop.f32.mrf.mxu0
        %1687 = vmatprep.mubr.f32.mxu0 0.0
        %1688 = vmatmul.mubr.f32.gmra.mxu0 %v666
        %v1689 = vpop.f32.mrf.mxu0
        %v1690 = vadd.f32 0.0, %v1689
        %v1691 = vpop.f32.mrf.mxu0
        %1692 = vmatprep.mubr.f32.mxu0 0.0
        %1693 = vmatmul.mubr.f32.gmra.mxu0 %v668
        %v1694 = vpop.f32.mrf.mxu0
        %v1695 = vadd.f32 0.0, %v1694
        %v1696 = vpop.f32.mrf.mxu0
        %1697 = vmatprep.mubr.f32.mxu0 0.0
        %1698 = vmatmul.mubr.f32.gmra.mxu0 %v670
        %v1699 = vpop.f32.mrf.mxu0
        %v1700 = vadd.f32 0.0, %v1699
        %v1701 = vpop.f32.mrf.mxu0
        %1702 = vmatprep.mubr.f32.mxu0 0.0
        %1703 = vmatmul.mubr.f32.gmra.mxu0 %v672
        %v1704 = vpop.f32.mrf.mxu0
        %v1705 = vadd.f32 0.0, %v1704
        %v1706 = vpop.f32.mrf.mxu0
        %1707 = vmatprep.mubr.f32.mxu0 0.0
        %1708 = vmatmul.mubr.f32.gmra.mxu0 %v674
        %v1709 = vpop.f32.mrf.mxu0
        %v1710 = vadd.f32 0.0, %v1709
        %v1711 = vpop.f32.mrf.mxu0
        %1712 = vmatprep.mubr.f32.mxu0 0.0
        %1713 = vmatmul.mubr.f32.gmra.mxu0 %v676
        %v1714 = vpop.f32.mrf.mxu0
        %v1715 = vadd.f32 0.0, %v1714
        %v1716 = vpop.f32.mrf.mxu0
        %1717 = vmatprep.mubr.f32.mxu0 0.0
        %1718 = vmatmul.mubr.f32.gmra.mxu0 %v678
        %v1719 = vpop.f32.mrf.mxu0
        %v1720 = vadd.f32 0.0, %v1719
        %v1721 = vpop.f32.mrf.mxu0
        %1722 = vmatprep.mubr.f32.mxu0 0.0
        %1723 = vmatmul.mubr.f32.gmra.mxu0 %v680
        %v1724 = vpop.f32.mrf.mxu0
        %v1725 = vadd.f32 0.0, %v1724
        %v1726 = vpop.f32.mrf.mxu0
        %1727 = vmatprep.mubr.f32.mxu0 0.0
        %1728 = vmatmul.mubr.f32.gmra.mxu0 %v1072
        %v1729 = vpop.f32.mrf.mxu0
        %v1730 = vadd.f32 0.0, %v1729
        %v1731 = vpop.f32.mrf.mxu0
        %1732 = vmatprep.mubr.f32.mxu0 0.0
        %1733 = vmatmul.mubr.f32.gmra.mxu0 %v1075
        %v1734 = vpop.f32.mrf.mxu0
        %v1735 = vadd.f32 0.0, %v1734
        %v1736 = vpop.f32.mrf.mxu0
        %1737 = vmatprep.mubr.f32.mxu0 0.0
        %1738 = vmatmul.mubr.f32.gmra.mxu0 %v1595
        %v1739 = vpop.f32.mrf.mxu0
        %v1740 = vadd.f32 0.0, %v1739
        %v1741 = vpop.f32.mrf.mxu0
        %1742 = vmatprep.mubr.f32.mxu0 0.0
        %1743 = vmatmul.mubr.f32.gmra.mxu0 %v1598
        %v1744 = vpop.f32.mrf.mxu0
        %v1745 = vadd.f32 0.0, %v1744
        %v1746 = vpop.f32.mrf.mxu0
        %1747 = vdwg.mxu0
        %v1748 = vadd.f32 %v1576, %v1670
        %v1749 = vadd.f32 %v1577, %v1675
        %v1750 = vadd.f32 %v1578, %v1680
        %v1751 = vadd.f32 %v1579, %v1685
        %v1752 = vadd.f32 %v1580, %v1690
        %v1753 = vadd.f32 %v1581, %v1695
        %v1754 = vadd.f32 %v1582, %v1700
        %v1755 = vadd.f32 %v1583, %v1705
        %v1756 = vadd.f32 %v1584, %v1710
        %v1757 = vadd.f32 %v1585, %v1715
        %v1758 = vadd.f32 %v1586, %v1720
        %v1759 = vadd.f32 %v1587, %v1725
        %v1760 = vadd.f32 %v1588, %v1730
        %v1761 = vadd.f32 %v1589, %v1735
        %v1762 = vadd.f32 %v1590, %v1740
        %v1763 = vadd.f32 %v1591, %v1745
        %v1765 = vrot.slane %v398, 1
        %v1766 = vrot.slane %v399, 1
        %v1767 = vsel %vm426, %v1765, %v1766
        %v1768 = vrot.slane %v400, 1
        %v1769 = vsel %vm426, %v1766, %v1768
        %s1770 = scalar_lea.vmem %s2, 56
        %v1771 = vld [vmem:[%s1770] sm:$0x7f]
        %v1772 = vsel %vm469, %v1767, 0
        %v1774 = vsel %vm469, %v1769, 0
        %v1777 = vsel %vm426, %v1771, 0
        %1779 = vmatprep.subr.mxu0 0.0
        %1780 = vmatpush1.msra.mxu0 0.0
        %1781 = vmatprep.subr.mxu0 0.0
        %1782 = vmatpush1.msra.mxu0 0.0
        %1783 = vmatprep.subr.mxu0 0.0
        %1784 = vmatpush1.msra.mxu0 0.0
        %1785 = vmatprep.subr.mxu0 0.0
        %1786 = vmatpush1.msra.mxu0 0.0
        %1787 = vmatprep.subr.mxu0 0.0
        %1788 = vmatpush1.msra.mxu0 0.0
        %1789 = vmatprep.subr.mxu0 0.0
        %1790 = vmatpush1.msra.mxu0 0.0
        %1791 = vmatprep.subr.mxu0 0.0
        %1792 = vmatpush1.msra.mxu0 0.0
        %1793 = vmatprep.subr.mxu0 0.0
        %1794 = vmatpush1.msra.mxu0 0.0
        %1795 = vmatprep.subr.mxu0 0.0
        %1796 = vmatpush1.msra.mxu0 0.0
        %1797 = vmatprep.subr.mxu0 0.0
        %1798 = vmatpush1.msra.mxu0 0.0
        %1799 = vmatprep.subr.mxu0 0.0
        %1800 = vmatpush1.msra.mxu0 0.0
        %1801 = vmatprep.subr.mxu0 0.0
        %1802 = vmatpush1.msra.mxu0 0.0
        %1803 = vmatprep.subr.mxu0 0.0
        %1804 = vmatpush1.msra.mxu0 0.0
        %1805 = vmatprep.subr.mxu0 0.0
        %1806 = vmatpush1.msra.mxu0 0.0
        %1807 = vmatprep.subr.mxu0 0.0
        %1808 = vmatpush1.msra.mxu0 0.0
        %1809 = vmatprep.subr.mxu0 0.0
        %1810 = vmatpush1.msra.mxu0 %v1777
        %1811 = vmatprep.subr.mxu0 0.0
        %1812 = vmatpush2.msra.mxu0 0.0
        %1813 = vmatprep.subr.mxu0 0.0
        %1814 = vmatpush2.msra.mxu0 0.0
        %1815 = vmatprep.subr.mxu0 0.0
        %1816 = vmatpush2.msra.mxu0 0.0
        %1817 = vmatprep.subr.mxu0 0.0
        %1818 = vmatpush2.msra.mxu0 0.0
        %1819 = vmatprep.subr.mxu0 0.0
        %1820 = vmatpush2.msra.mxu0 0.0
        %1821 = vmatprep.subr.mxu0 0.0
        %1822 = vmatpush2.msra.mxu0 0.0
        %1823 = vmatprep.subr.mxu0 0.0
        %1824 = vmatpush2.msra.mxu0 0.0
        %1825 = vmatprep.subr.mxu0 0.0
        %1826 = vmatpush2.msra.mxu0 0.0
        %1827 = vmatprep.subr.mxu0 0.0
        %1828 = vmatpush2.msra.mxu0 0.0
        %1829 = vmatprep.subr.mxu0 0.0
        %1830 = vmatpush2.msra.mxu0 0.0
        %1831 = vmatprep.subr.mxu0 0.0
        %1832 = vmatpush2.msra.mxu0 0.0
        %1833 = vmatprep.subr.mxu0 0.0
        %1834 = vmatpush2.msra.mxu0 0.0
        %1835 = vmatprep.subr.mxu0 0.0
        %1836 = vmatpush2.msra.mxu0 0.0
        %1837 = vmatprep.subr.mxu0 0.0
        %1838 = vmatpush2.msra.mxu0 0.0
        %1839 = vmatprep.subr.mxu0 0.0
        %1840 = vmatpush2.msra.mxu0 0.0
        %1841 = vmatprep.subr.mxu0 0.0
        %1842 = vmatpush2.msra.mxu0 0.0
        %1843 = vmatprep.mubr.f32.mxu0 0.0
        %1844 = vmatmul.mubr.f32.gmra.mxu0 %v478
        %v1845 = vpop.f32.mrf.mxu0
        %v1846 = vadd.f32 0.0, %v1845
        %v1847 = vpop.f32.mrf.mxu0
        %1848 = vmatprep.mubr.f32.mxu0 0.0
        %1849 = vmatmul.mubr.f32.gmra.mxu0 %v480
        %v1850 = vpop.f32.mrf.mxu0
        %v1851 = vadd.f32 0.0, %v1850
        %v1852 = vpop.f32.mrf.mxu0
        %1853 = vmatprep.mubr.f32.mxu0 0.0
        %1854 = vmatmul.mubr.f32.gmra.mxu0 %v482
        %v1855 = vpop.f32.mrf.mxu0
        %v1856 = vadd.f32 0.0, %v1855
        %v1857 = vpop.f32.mrf.mxu0
        %1858 = vmatprep.mubr.f32.mxu0 0.0
        %1859 = vmatmul.mubr.f32.gmra.mxu0 %v484
        %v1860 = vpop.f32.mrf.mxu0
        %v1861 = vadd.f32 0.0, %v1860
        %v1862 = vpop.f32.mrf.mxu0
        %1863 = vmatprep.mubr.f32.mxu0 0.0
        %1864 = vmatmul.mubr.f32.gmra.mxu0 %v486
        %v1865 = vpop.f32.mrf.mxu0
        %v1866 = vadd.f32 0.0, %v1865
        %v1867 = vpop.f32.mrf.mxu0
        %1868 = vmatprep.mubr.f32.mxu0 0.0
        %1869 = vmatmul.mubr.f32.gmra.mxu0 %v488
        %v1870 = vpop.f32.mrf.mxu0
        %v1871 = vadd.f32 0.0, %v1870
        %v1872 = vpop.f32.mrf.mxu0
        %1873 = vmatprep.mubr.f32.mxu0 0.0
        %1874 = vmatmul.mubr.f32.gmra.mxu0 %v490
        %v1875 = vpop.f32.mrf.mxu0
        %v1876 = vadd.f32 0.0, %v1875
        %v1877 = vpop.f32.mrf.mxu0
        %1878 = vmatprep.mubr.f32.mxu0 0.0
        %1879 = vmatmul.mubr.f32.gmra.mxu0 %v492
        %v1880 = vpop.f32.mrf.mxu0
        %v1881 = vadd.f32 0.0, %v1880
        %v1882 = vpop.f32.mrf.mxu0
        %1883 = vmatprep.mubr.f32.mxu0 0.0
        %1884 = vmatmul.mubr.f32.gmra.mxu0 %v494
        %v1885 = vpop.f32.mrf.mxu0
        %v1886 = vadd.f32 0.0, %v1885
        %v1887 = vpop.f32.mrf.mxu0
        %1888 = vmatprep.mubr.f32.mxu0 0.0
        %1889 = vmatmul.mubr.f32.gmra.mxu0 %v496
        %v1890 = vpop.f32.mrf.mxu0
        %v1891 = vadd.f32 0.0, %v1890
        %v1892 = vpop.f32.mrf.mxu0
        %1893 = vmatprep.mubr.f32.mxu0 0.0
        %1894 = vmatmul.mubr.f32.gmra.mxu0 %v498
        %v1895 = vpop.f32.mrf.mxu0
        %v1896 = vadd.f32 0.0, %v1895
        %v1897 = vpop.f32.mrf.mxu0
        %1898 = vmatprep.mubr.f32.mxu0 0.0
        %1899 = vmatmul.mubr.f32.gmra.mxu0 %v500
        %v1900 = vpop.f32.mrf.mxu0
        %v1901 = vadd.f32 0.0, %v1900
        %v1902 = vpop.f32.mrf.mxu0
        %1903 = vmatprep.mubr.f32.mxu0 0.0
        %1904 = vmatmul.mubr.f32.gmra.mxu0 %v1249
        %v1905 = vpop.f32.mrf.mxu0
        %v1906 = vadd.f32 0.0, %v1905
        %v1907 = vpop.f32.mrf.mxu0
        %1908 = vmatprep.mubr.f32.mxu0 0.0
        %1909 = vmatmul.mubr.f32.gmra.mxu0 %v1251
        %v1910 = vpop.f32.mrf.mxu0
        %v1911 = vadd.f32 0.0, %v1910
        %v1912 = vpop.f32.mrf.mxu0
        %1913 = vmatprep.mubr.f32.mxu0 0.0
        %1914 = vmatmul.mubr.f32.gmra.mxu0 %v1772
        %v1915 = vpop.f32.mrf.mxu0
        %v1916 = vadd.f32 0.0, %v1915
        %v1917 = vpop.f32.mrf.mxu0
        %1918 = vmatprep.mubr.f32.mxu0 0.0
        %1919 = vmatmul.mubr.f32.gmra.mxu0 %v1774
        %v1920 = vpop.f32.mrf.mxu0
        %v1921 = vadd.f32 0.0, %v1920
        %v1922 = vpop.f32.mrf.mxu0
        %1923 = vdwg.mxu0
        %v1924 = vadd.f32 %v1748, %v1846
        %v1925 = vadd.f32 %v1749, %v1851
        %v1926 = vadd.f32 %v1750, %v1856
        %v1927 = vadd.f32 %v1751, %v1861
        %v1928 = vadd.f32 %v1752, %v1866
        %v1929 = vadd.f32 %v1753, %v1871
        %v1930 = vadd.f32 %v1754, %v1876
        %v1931 = vadd.f32 %v1755, %v1881
        %v1932 = vadd.f32 %v1756, %v1886
        %v1933 = vadd.f32 %v1757, %v1891
        %v1934 = vadd.f32 %v1758, %v1896
        %v1935 = vadd.f32 %v1759, %v1901
        %v1936 = vadd.f32 %v1760, %v1906
        %v1937 = vadd.f32 %v1761, %v1911
        %v1938 = vadd.f32 %v1762, %v1916
        %v1939 = vadd.f32 %v1763, %v1921
        %v1940 = vrot.slane %v398, 2
        %v1941 = vrot.slane %v399, 2
        %v1942 = vsel %vm830, %v1940, %v1941
        %v1943 = vrot.slane %v400, 2
        %v1944 = vsel %vm830, %v1941, %v1943
        %s1945 = scalar_lea.vmem %s2, 64
        %v1946 = vld [vmem:[%s1945] sm:$0x7f]
        %v1947 = vsel %vm469, %v1942, 0
        %v1949 = vsel %vm469, %v1944, 0
        %v1952 = vsel %vm426, %v1946, 0
        %1954 = vmatprep.subr.mxu0 0.0
        %1955 = vmatpush1.msra.mxu0 0.0
        %1956 = vmatprep.subr.mxu0 0.0
        %1957 = vmatpush1.msra.mxu0 0.0
        %1958 = vmatprep.subr.mxu0 0.0
        %1959 = vmatpush1.msra.mxu0 0.0
        %1960 = vmatprep.subr.mxu0 0.0
        %1961 = vmatpush1.msra.mxu0 0.0
        %1962 = vmatprep.subr.mxu0 0.0
        %1963 = vmatpush1.msra.mxu0 0.0
        %1964 = vmatprep.subr.mxu0 0.0
        %1965 = vmatpush1.msra.mxu0 0.0
        %1966 = vmatprep.subr.mxu0 0.0
        %1967 = vmatpush1.msra.mxu0 0.0
        %1968 = vmatprep.subr.mxu0 0.0
        %1969 = vmatpush1.msra.mxu0 0.0
        %1970 = vmatprep.subr.mxu0 0.0
        %1971 = vmatpush1.msra.mxu0 0.0
        %1972 = vmatprep.subr.mxu0 0.0
        %1973 = vmatpush1.msra.mxu0 0.0
        %1974 = vmatprep.subr.mxu0 0.0
        %1975 = vmatpush1.msra.mxu0 0.0
        %1976 = vmatprep.subr.mxu0 0.0
        %1977 = vmatpush1.msra.mxu0 0.0
        %1978 = vmatprep.subr.mxu0 0.0
        %1979 = vmatpush1.msra.mxu0 0.0
        %1980 = vmatprep.subr.mxu0 0.0
        %1981 = vmatpush1.msra.mxu0 0.0
        %1982 = vmatprep.subr.mxu0 0.0
        %1983 = vmatpush1.msra.mxu0 0.0
        %1984 = vmatprep.subr.mxu0 0.0
        %1985 = vmatpush1.msra.mxu0 %v1952
        %1986 = vmatprep.subr.mxu0 0.0
        %1987 = vmatpush2.msra.mxu0 0.0
        %1988 = vmatprep.subr.mxu0 0.0
        %1989 = vmatpush2.msra.mxu0 0.0
        %1990 = vmatprep.subr.mxu0 0.0
        %1991 = vmatpush2.msra.mxu0 0.0
        %1992 = vmatprep.subr.mxu0 0.0
        %1993 = vmatpush2.msra.mxu0 0.0
        %1994 = vmatprep.subr.mxu0 0.0
        %1995 = vmatpush2.msra.mxu0 0.0
        %1996 = vmatprep.subr.mxu0 0.0
        %1997 = vmatpush2.msra.mxu0 0.0
        %1998 = vmatprep.subr.mxu0 0.0
        %1999 = vmatpush2.msra.mxu0 0.0
        %2000 = vmatprep.subr.mxu0 0.0
        %2001 = vmatpush2.msra.mxu0 0.0
        %2002 = vmatprep.subr.mxu0 0.0
        %2003 = vmatpush2.msra.mxu0 0.0
        %2004 = vmatprep.subr.mxu0 0.0
        %2005 = vmatpush2.msra.mxu0 0.0
        %2006 = vmatprep.subr.mxu0 0.0
        %2007 = vmatpush2.msra.mxu0 0.0
        %2008 = vmatprep.subr.mxu0 0.0
        %2009 = vmatpush2.msra.mxu0 0.0
        %2010 = vmatprep.subr.mxu0 0.0
        %2011 = vmatpush2.msra.mxu0 0.0
        %2012 = vmatprep.subr.mxu0 0.0
        %2013 = vmatpush2.msra.mxu0 0.0
        %2014 = vmatprep.subr.mxu0 0.0
        %2015 = vmatpush2.msra.mxu0 0.0
        %2016 = vmatprep.subr.mxu0 0.0
        %2017 = vmatpush2.msra.mxu0 0.0
        %2018 = vmatprep.mubr.f32.mxu0 0.0
        %2019 = vmatmul.mubr.f32.gmra.mxu0 %v881
        %v2020 = vpop.f32.mrf.mxu0
        %v2021 = vadd.f32 0.0, %v2020
        %v2022 = vpop.f32.mrf.mxu0
        %2023 = vmatprep.mubr.f32.mxu0 0.0
        %2024 = vmatmul.mubr.f32.gmra.mxu0 %v883
        %v2025 = vpop.f32.mrf.mxu0
        %v2026 = vadd.f32 0.0, %v2025
        %v2027 = vpop.f32.mrf.mxu0
        %2028 = vmatprep.mubr.f32.mxu0 0.0
        %2029 = vmatmul.mubr.f32.gmra.mxu0 %v885
        %v2030 = vpop.f32.mrf.mxu0
        %v2031 = vadd.f32 0.0, %v2030
        %v2032 = vpop.f32.mrf.mxu0
        %2033 = vmatprep.mubr.f32.mxu0 0.0
        %2034 = vmatmul.mubr.f32.gmra.mxu0 %v887
        %v2035 = vpop.f32.mrf.mxu0
        %v2036 = vadd.f32 0.0, %v2035
        %v2037 = vpop.f32.mrf.mxu0
        %2038 = vmatprep.mubr.f32.mxu0 0.0
        %2039 = vmatmul.mubr.f32.gmra.mxu0 %v889
        %v2040 = vpop.f32.mrf.mxu0
        %v2041 = vadd.f32 0.0, %v2040
        %v2042 = vpop.f32.mrf.mxu0
        %2043 = vmatprep.mubr.f32.mxu0 0.0
        %2044 = vmatmul.mubr.f32.gmra.mxu0 %v891
        %v2045 = vpop.f32.mrf.mxu0
        %v2046 = vadd.f32 0.0, %v2045
        %v2047 = vpop.f32.mrf.mxu0
        %2048 = vmatprep.mubr.f32.mxu0 0.0
        %2049 = vmatmul.mubr.f32.gmra.mxu0 %v893
        %v2050 = vpop.f32.mrf.mxu0
        %v2051 = vadd.f32 0.0, %v2050
        %v2052 = vpop.f32.mrf.mxu0
        %2053 = vmatprep.mubr.f32.mxu0 0.0
        %2054 = vmatmul.mubr.f32.gmra.mxu0 %v895
        %v2055 = vpop.f32.mrf.mxu0
        %v2056 = vadd.f32 0.0, %v2055
        %v2057 = vpop.f32.mrf.mxu0
        %2058 = vmatprep.mubr.f32.mxu0 0.0
        %2059 = vmatmul.mubr.f32.gmra.mxu0 %v897
        %v2060 = vpop.f32.mrf.mxu0
        %v2061 = vadd.f32 0.0, %v2060
        %v2062 = vpop.f32.mrf.mxu0
        %2063 = vmatprep.mubr.f32.mxu0 0.0
        %2064 = vmatmul.mubr.f32.gmra.mxu0 %v899
        %v2065 = vpop.f32.mrf.mxu0
        %v2066 = vadd.f32 0.0, %v2065
        %v2067 = vpop.f32.mrf.mxu0
        %2068 = vmatprep.mubr.f32.mxu0 0.0
        %2069 = vmatmul.mubr.f32.gmra.mxu0 %v901
        %v2070 = vpop.f32.mrf.mxu0
        %v2071 = vadd.f32 0.0, %v2070
        %v2072 = vpop.f32.mrf.mxu0
        %2073 = vmatprep.mubr.f32.mxu0 0.0
        %2074 = vmatmul.mubr.f32.gmra.mxu0 %v903
        %v2075 = vpop.f32.mrf.mxu0
        %v2076 = vadd.f32 0.0, %v2075
        %v2077 = vpop.f32.mrf.mxu0
        %2078 = vmatprep.mubr.f32.mxu0 0.0
        %2079 = vmatmul.mubr.f32.gmra.mxu0 %v1424
        %v2080 = vpop.f32.mrf.mxu0
        %v2081 = vadd.f32 0.0, %v2080
        %v2082 = vpop.f32.mrf.mxu0
        %2083 = vmatprep.mubr.f32.mxu0 0.0
        %2084 = vmatmul.mubr.f32.gmra.mxu0 %v1426
        %v2085 = vpop.f32.mrf.mxu0
        %v2086 = vadd.f32 0.0, %v2085
        %v2087 = vpop.f32.mrf.mxu0
        %2088 = vmatprep.mubr.f32.mxu0 0.0
        %2089 = vmatmul.mubr.f32.gmra.mxu0 %v1947
        %v2090 = vpop.f32.mrf.mxu0
        %v2091 = vadd.f32 0.0, %v2090
        %v2092 = vpop.f32.mrf.mxu0
        %2093 = vmatprep.mubr.f32.mxu0 0.0
        %2094 = vmatmul.mubr.f32.gmra.mxu0 %v1949
        %v2095 = vpop.f32.mrf.mxu0
        %v2096 = vadd.f32 0.0, %v2095
        %v2097 = vpop.f32.mrf.mxu0
        %2098 = vdwg.mxu0
        %v2099 = vadd.f32 %v1924, %v2021
        %v2100 = vadd.f32 %v1925, %v2026
        %v2101 = vadd.f32 %v1926, %v2031
        %v2102 = vadd.f32 %v1927, %v2036
        %v2103 = vadd.f32 %v1928, %v2041
        %v2104 = vadd.f32 %v1929, %v2046
        %v2105 = vadd.f32 %v1930, %v2051
        %v2106 = vadd.f32 %v1931, %v2056
        %v2107 = vadd.f32 %v1932, %v2061
        %v2108 = vadd.f32 %v1933, %v2066
        %v2109 = vadd.f32 %v1934, %v2071
        %v2110 = vadd.f32 %v1935, %v2076
        %v2111 = vadd.f32 %v1936, %v2081
        %v2112 = vadd.f32 %v1937, %v2086
        %v2113 = vadd.f32 %v1938, %v2091
        %v2114 = vadd.f32 %v1939, %v2096
        %v2115 = vld [vmem:[%s3] sm:$0x1]
        %v2117 = vlaneseq
        %v2118 = vshrl.u32 %v2117, 7
        %v2119 = vsub.s32 0, %v2118
        %v2120 = vrot.slane %v2115, %v2119
        %v2122 = vadd.f32 %v2099, %v2120
        %v2123 = vadd.f32 %v2100, %v2120
        %v2124 = vadd.f32 %v2101, %v2120
        %v2125 = vadd.f32 %v2102, %v2120
        %v2126 = vadd.f32 %v2103, %v2120
        %v2127 = vadd.f32 %v2104, %v2120
        %v2128 = vadd.f32 %v2105, %v2120
        %v2129 = vadd.f32 %v2106, %v2120
        %v2130 = vadd.f32 %v2107, %v2120
        %v2131 = vadd.f32 %v2108, %v2120
        %v2132 = vadd.f32 %v2109, %v2120
        %v2133 = vadd.f32 %v2110, %v2120
        %v2134 = vadd.f32 %v2111, %v2120
        %v2135 = vadd.f32 %v2112, %v2120
        %v2136 = vadd.f32 %v2113, %v2120
        %v2137 = vadd.f32 %v2114, %v2120
        %v2138 = vmax.f32 %v2122, 0.0
        %v2139 = vmax.f32 %v2123, 0.0
        %v2140 = vmax.f32 %v2124, 0.0
        %v2141 = vmax.f32 %v2125, 0.0
        %v2142 = vmax.f32 %v2126, 0.0
        %v2143 = vmax.f32 %v2127, 0.0
        %v2144 = vmax.f32 %v2128, 0.0
        %v2145 = vmax.f32 %v2129, 0.0
        %v2146 = vmax.f32 %v2130, 0.0
        %v2147 = vmax.f32 %v2131, 0.0
        %v2148 = vmax.f32 %v2132, 0.0
        %v2149 = vmax.f32 %v2133, 0.0
        %v2150 = vmax.f32 %v2134, 0.0
        %v2151 = vmax.f32 %v2135, 0.0
        %v2152 = vmax.f32 %v2136, 0.0
        %v2153 = vmax.f32 %v2137, 0.0
        %v2154 = vld [vmem:[%s4] sm:$0xff]
        %v2155 = vld [vmem:[%s5] sm:$0x1]
        %v2157 = vlaneseq
        %v2158 = vshrl.u32 %v2157, 7
        %v2159 = vsub.s32 0, %v2158
        %v2160 = vrot.slane %v2155, %v2159
        %vm2162 = vcmask 64512
        %v2164 = vsel %vm2162, %v2138, 0
        %v2167 = vsel %vm2162, %v2139, 0
        %v2170 = vsel %vm2162, %v2140, 0
        %v2173 = vsel %vm2162, %v2141, 0
        %v2176 = vsel %vm2162, %v2142, 0
        %v2179 = vsel %vm2162, %v2143, 0
        %v2182 = vsel %vm2162, %v2144, 0
        %v2185 = vsel %vm2162, %v2145, 0
        %v2188 = vsel %vm2162, %v2146, 0
        %v2191 = vsel %vm2162, %v2147, 0
        %v2194 = vsel %vm2162, %v2148, 0
        %v2197 = vsel %vm2162, %v2149, 0
        %v2200 = vsel %vm2162, %v2150, 0
        %v2203 = vsel %vm2162, %v2151, 0
        %v2206 = vsel %vm2162, %v2152, 0
        %v2209 = vsel %vm2162, %v2153, 0
        %2211 = vmatprep.subr.mxu0 0.0
        %2212 = vmatpush1.msra.mxu0 0.0
        %2213 = vmatprep.subr.mxu0 0.0
        %2214 = vmatpush1.msra.mxu0 0.0
        %2215 = vmatprep.subr.mxu0 0.0
        %2216 = vmatpush1.msra.mxu0 0.0
        %2217 = vmatprep.subr.mxu0 0.0
        %2218 = vmatpush1.msra.mxu0 0.0
        %2219 = vmatprep.subr.mxu0 0.0
        %2220 = vmatpush1.msra.mxu0 0.0
        %2221 = vmatprep.subr.mxu0 0.0
        %2222 = vmatpush1.msra.mxu0 0.0
        %2223 = vmatprep.subr.mxu0 0.0
        %2224 = vmatpush1.msra.mxu0 0.0
        %2225 = vmatprep.subr.mxu0 0.0
        %2226 = vmatpush1.msra.mxu0 0.0
        %2227 = vmatprep.subr.mxu0 0.0
        %2228 = vmatpush1.msra.mxu0 0.0
        %2229 = vmatprep.subr.mxu0 0.0
        %2230 = vmatpush1.msra.mxu0 0.0
        %2231 = vmatprep.subr.mxu0 0.0
        %2232 = vmatpush1.msra.mxu0 0.0
        %2233 = vmatprep.subr.mxu0 0.0
        %2234 = vmatpush1.msra.mxu0 0.0
        %2235 = vmatprep.subr.mxu0 0.0
        %2236 = vmatpush1.msra.mxu0 0.0
        %2237 = vmatprep.subr.mxu0 0.0
        %2238 = vmatpush1.msra.mxu0 0.0
        %2239 = vmatprep.subr.mxu0 0.0
        %2240 = vmatpush1.msra.mxu0 0.0
        %2241 = vmatprep.subr.mxu0 0.0
        %2242 = vmatpush1.msra.mxu0 %v2154
        %2243 = vmatprep.subr.mxu0 0.0
        %2244 = vmatpush2.msra.mxu0 0.0
        %2245 = vmatprep.subr.mxu0 0.0
        %2246 = vmatpush2.msra.mxu0 0.0
        %2247 = vmatprep.subr.mxu0 0.0
        %2248 = vmatpush2.msra.mxu0 0.0
        %2249 = vmatprep.subr.mxu0 0.0
        %2250 = vmatpush2.msra.mxu0 0.0
        %2251 = vmatprep.subr.mxu0 0.0
        %2252 = vmatpush2.msra.mxu0 0.0
        %2253 = vmatprep.subr.mxu0 0.0
        %2254 = vmatpush2.msra.mxu0 0.0
        %2255 = vmatprep.subr.mxu0 0.0
        %2256 = vmatpush2.msra.mxu0 0.0
        %2257 = vmatprep.subr.mxu0 0.0
        %2258 = vmatpush2.msra.mxu0 0.0
        %2259 = vmatprep.subr.mxu0 0.0
        %2260 = vmatpush2.msra.mxu0 0.0
        %2261 = vmatprep.subr.mxu0 0.0
        %2262 = vmatpush2.msra.mxu0 0.0
        %2263 = vmatprep.subr.mxu0 0.0
        %2264 = vmatpush2.msra.mxu0 0.0
        %2265 = vmatprep.subr.mxu0 0.0
        %2266 = vmatpush2.msra.mxu0 0.0
        %2267 = vmatprep.subr.mxu0 0.0
        %2268 = vmatpush2.msra.mxu0 0.0
        %2269 = vmatprep.subr.mxu0 0.0
        %2270 = vmatpush2.msra.mxu0 0.0
        %2271 = vmatprep.subr.mxu0 0.0
        %2272 = vmatpush2.msra.mxu0 0.0
        %2273 = vmatprep.subr.mxu0 0.0
        %2274 = vmatpush2.msra.mxu0 0.0
        %2275 = vmatprep.mubr.f32.mxu0 0.0
        %2276 = vmatmul.mubr.f32.gmra.mxu0 %v2164
        %v2277 = vpop.f32.mrf.mxu0
        %v2278 = vadd.f32 %v2160, %v2277
        %v2279 = vpop.f32.mrf.mxu0
        %2280 = vmatprep.mubr.f32.mxu0 0.0
        %2281 = vmatmul.mubr.f32.gmra.mxu0 %v2167
        %v2282 = vpop.f32.mrf.mxu0
        %v2283 = vadd.f32 %v2160, %v2282
        %v2284 = vpop.f32.mrf.mxu0
        %2285 = vmatprep.mubr.f32.mxu0 0.0
        %2286 = vmatmul.mubr.f32.gmra.mxu0 %v2170
        %v2287 = vpop.f32.mrf.mxu0
        %v2288 = vadd.f32 %v2160, %v2287
        %v2289 = vpop.f32.mrf.mxu0
        %2290 = vmatprep.mubr.f32.mxu0 0.0
        %2291 = vmatmul.mubr.f32.gmra.mxu0 %v2173
        %v2292 = vpop.f32.mrf.mxu0
        %v2293 = vadd.f32 %v2160, %v2292
        %v2294 = vpop.f32.mrf.mxu0
        %2295 = vmatprep.mubr.f32.mxu0 0.0
        %2296 = vmatmul.mubr.f32.gmra.mxu0 %v2176
        %v2297 = vpop.f32.mrf.mxu0
        %v2298 = vadd.f32 %v2160, %v2297
        %v2299 = vpop.f32.mrf.mxu0
        %2300 = vmatprep.mubr.f32.mxu0 0.0
        %2301 = vmatmul.mubr.f32.gmra.mxu0 %v2179
        %v2302 = vpop.f32.mrf.mxu0
        %v2303 = vadd.f32 %v2160, %v2302
        %v2304 = vpop.f32.mrf.mxu0
        %2305 = vmatprep.mubr.f32.mxu0 0.0
        %2306 = vmatmul.mubr.f32.gmra.mxu0 %v2182
        %v2307 = vpop.f32.mrf.mxu0
        %v2308 = vadd.f32 %v2160, %v2307
        %v2309 = vpop.f32.mrf.mxu0
        %2310 = vmatprep.mubr.f32.mxu0 0.0
        %2311 = vmatmul.mubr.f32.gmra.mxu0 %v2185
        %v2312 = vpop.f32.mrf.mxu0
        %v2313 = vadd.f32 %v2160, %v2312
        %v2314 = vpop.f32.mrf.mxu0
        %2315 = vmatprep.mubr.f32.mxu0 0.0
        %2316 = vmatmul.mubr.f32.gmra.mxu0 %v2188
        %v2317 = vpop.f32.mrf.mxu0
        %v2318 = vadd.f32 %v2160, %v2317
        %v2319 = vpop.f32.mrf.mxu0
        %2320 = vmatprep.mubr.f32.mxu0 0.0
        %2321 = vmatmul.mubr.f32.gmra.mxu0 %v2191
        %v2322 = vpop.f32.mrf.mxu0
        %v2323 = vadd.f32 %v2160, %v2322
        %v2324 = vpop.f32.mrf.mxu0
        %2325 = vmatprep.mubr.f32.mxu0 0.0
        %2326 = vmatmul.mubr.f32.gmra.mxu0 %v2194
        %v2327 = vpop.f32.mrf.mxu0
        %v2328 = vadd.f32 %v2160, %v2327
        %v2329 = vpop.f32.mrf.mxu0
        %2330 = vmatprep.mubr.f32.mxu0 0.0
        %2331 = vmatmul.mubr.f32.gmra.mxu0 %v2197
        %v2332 = vpop.f32.mrf.mxu0
        %v2333 = vadd.f32 %v2160, %v2332
        %v2334 = vpop.f32.mrf.mxu0
        %2335 = vmatprep.mubr.f32.mxu0 0.0
        %2336 = vmatmul.mubr.f32.gmra.mxu0 %v2200
        %v2337 = vpop.f32.mrf.mxu0
        %v2338 = vadd.f32 %v2160, %v2337
        %v2339 = vpop.f32.mrf.mxu0
        %2340 = vmatprep.mubr.f32.mxu0 0.0
        %2341 = vmatmul.mubr.f32.gmra.mxu0 %v2203
        %v2342 = vpop.f32.mrf.mxu0
        %v2343 = vadd.f32 %v2160, %v2342
        %v2344 = vpop.f32.mrf.mxu0
        %2345 = vmatprep.mubr.f32.mxu0 0.0
        %2346 = vmatmul.mubr.f32.gmra.mxu0 %v2206
        %v2347 = vpop.f32.mrf.mxu0
        %v2348 = vadd.f32 %v2160, %v2347
        %v2349 = vpop.f32.mrf.mxu0
        %2350 = vmatprep.mubr.f32.mxu0 0.0
        %2351 = vmatmul.mubr.f32.gmra.mxu0 %v2209
        %v2352 = vpop.f32.mrf.mxu0
        %v2353 = vadd.f32 %v2160, %v2352
        %v2354 = vpop.f32.mrf.mxu0
        %2355 = vdwg.mxu0
        %vm2356 = vcmask 15360
        %2357 = vst.msk [vmem:[%s333] sm:$0xff] %vm2356, %v2278
        %2358 = vst.msk [vmem:[%s333 + $0x8] sm:$0xff] %vm2356, %v2283
        %2359 = vst.msk [vmem:[%s333 + $0x10] sm:$0xff] %vm2356, %v2288
        %2360 = vst.msk [vmem:[%s333 + $0x18] sm:$0xff] %vm2356, %v2293
        %2361 = vst.msk [vmem:[%s333 + $0x20] sm:$0xff] %vm2356, %v2298
        %2362 = vst.msk [vmem:[%s333 + $0x28] sm:$0xff] %vm2356, %v2303
        %2363 = vst.msk [vmem:[%s333 + $0x30] sm:$0xff] %vm2356, %v2308
        %2364 = vst.msk [vmem:[%s333 + $0x38] sm:$0xff] %vm2356, %v2313
        %2365 = vst.msk [vmem:[%s333 + $0x40] sm:$0xff] %vm2356, %v2318
        %2366 = vst.msk [vmem:[%s333 + $0x48] sm:$0xff] %vm2356, %v2323
        %2367 = vst.msk [vmem:[%s333 + $0x50] sm:$0xff] %vm2356, %v2328
        %2368 = vst.msk [vmem:[%s333 + $0x58] sm:$0xff] %vm2356, %v2333
        %2369 = vst.msk [vmem:[%s333 + $0x60] sm:$0xff] %vm2356, %v2338
        %2370 = vst.msk [vmem:[%s333 + $0x68] sm:$0xff] %vm2356, %v2343
        %2371 = vst.msk [vmem:[%s333 + $0x70] sm:$0xff] %vm2356, %v2348
        %2372 = vst.msk [vmem:[%s333 + $0x78] sm:$0xff] %vm2356, %v2353
        %v2373 = vld [vmem:[%s323] sm:$0xff]
        %v2374 = vld [vmem:[%s323 + $0x8] sm:$0xff]
        %v2375 = vld [vmem:[%s323 + $0x10] sm:$0xff]
        %v2376 = vld [vmem:[%s323 + $0x18] sm:$0xff]
        %v2377 = vld [vmem:[%s323 + $0x20] sm:$0xff]
        %v2378 = vld [vmem:[%s323 + $0x28] sm:$0xff]
        %v2379 = vld [vmem:[%s323 + $0x30] sm:$0xff]
        %v2380 = vld [vmem:[%s323 + $0x38] sm:$0xff]
        %v2381 = vld [vmem:[%s323 + $0x40] sm:$0xff]
        %v2382 = vld [vmem:[%s323 + $0x48] sm:$0xff]
        %v2383 = vld [vmem:[%s323 + $0x50] sm:$0xff]
        %v2384 = vld [vmem:[%s323 + $0x58] sm:$0xff]
        %v2385 = vld [vmem:[%s323 + $0x60] sm:$0xff]
        %v2386 = vld [vmem:[%s323 + $0x68] sm:$0xff]
        %v2387 = vld [vmem:[%s323 + $0x70] sm:$0xff]
        %v2388 = vld [vmem:[%s323 + $0x78] sm:$0xff]
        %v2389 = vxor.u32 %v2278, 2147483648
        %v2390 = vxor.u32 %v2283, 2147483648
        %v2391 = vxor.u32 %v2288, 2147483648
        %v2392 = vxor.u32 %v2293, 2147483648
        %v2393 = vxor.u32 %v2298, 2147483648
        %v2394 = vxor.u32 %v2303, 2147483648
        %v2395 = vxor.u32 %v2308, 2147483648
        %v2396 = vxor.u32 %v2313, 2147483648
        %v2397 = vxor.u32 %v2318, 2147483648
        %v2398 = vxor.u32 %v2323, 2147483648
        %v2399 = vxor.u32 %v2328, 2147483648
        %v2400 = vxor.u32 %v2333, 2147483648
        %v2401 = vxor.u32 %v2338, 2147483648
        %v2402 = vxor.u32 %v2343, 2147483648
        %v2403 = vxor.u32 %v2348, 2147483648
        %v2404 = vxor.u32 %v2353, 2147483648
        %v2405 = vmul.f32 %v2389, 1.442695
        %v2406 = vpow.pop %v2405
        %v2407 = vmul.f32 %v2390, 1.442695
        %v2408 = vpow.pop %v2407
        %v2409 = vmul.f32 %v2391, 1.442695
        %v2410 = vpow.pop %v2409
        %v2411 = vmul.f32 %v2392, 1.442695
        %v2412 = vpow.pop %v2411
        %v2413 = vmul.f32 %v2393, 1.442695
        %v2414 = vpow.pop %v2413
        %v2415 = vmul.f32 %v2394, 1.442695
        %v2416 = vpow.pop %v2415
        %v2417 = vmul.f32 %v2395, 1.442695
        %v2418 = vpow.pop %v2417
        %v2419 = vmul.f32 %v2396, 1.442695
        %v2420 = vpow.pop %v2419
        %v2421 = vmul.f32 %v2397, 1.442695
        %v2422 = vpow.pop %v2421
        %v2423 = vmul.f32 %v2398, 1.442695
        %v2424 = vpow.pop %v2423
        %v2425 = vmul.f32 %v2399, 1.442695
        %v2426 = vpow.pop %v2425
        %v2427 = vmul.f32 %v2400, 1.442695
        %v2428 = vpow.pop %v2427
        %v2429 = vmul.f32 %v2401, 1.442695
        %v2430 = vpow.pop %v2429
        %v2431 = vmul.f32 %v2402, 1.442695
        %v2432 = vpow.pop %v2431
        %v2433 = vmul.f32 %v2403, 1.442695
        %v2434 = vpow.pop %v2433
        %v2435 = vmul.f32 %v2404, 1.442695
        %v2436 = vpow.pop %v2435
        %v2437 = vadd.f32 %v2406, 1.0
        %v2438 = vadd.f32 %v2408, 1.0
        %v2439 = vadd.f32 %v2410, 1.0
        %v2440 = vadd.f32 %v2412, 1.0
        %v2441 = vadd.f32 %v2414, 1.0
        %v2442 = vadd.f32 %v2416, 1.0
        %v2443 = vadd.f32 %v2418, 1.0
        %v2444 = vadd.f32 %v2420, 1.0
        %v2445 = vadd.f32 %v2422, 1.0
        %v2446 = vadd.f32 %v2424, 1.0
        %v2447 = vadd.f32 %v2426, 1.0
        %v2448 = vadd.f32 %v2428, 1.0
        %v2449 = vadd.f32 %v2430, 1.0
        %v2450 = vadd.f32 %v2432, 1.0
        %v2451 = vadd.f32 %v2434, 1.0
        %v2452 = vadd.f32 %v2436, 1.0
        %v2453 = vrcp.pop %v2437
        %v2454 = vmul.f32 1.0, %v2453
        %v2455 = vrcp.pop %v2438
        %v2456 = vmul.f32 1.0, %v2455
        %v2457 = vrcp.pop %v2439
        %v2458 = vmul.f32 1.0, %v2457
        %v2459 = vrcp.pop %v2440
        %v2460 = vmul.f32 1.0, %v2459
        %v2461 = vrcp.pop %v2441
        %v2462 = vmul.f32 1.0, %v2461
        %v2463 = vrcp.pop %v2442
        %v2464 = vmul.f32 1.0, %v2463
        %v2465 = vrcp.pop %v2443
        %v2466 = vmul.f32 1.0, %v2465
        %v2467 = vrcp.pop %v2444
        %v2468 = vmul.f32 1.0, %v2467
        %v2469 = vrcp.pop %v2445
        %v2470 = vmul.f32 1.0, %v2469
        %v2471 = vrcp.pop %v2446
        %v2472 = vmul.f32 1.0, %v2471
        %v2473 = vrcp.pop %v2447
        %v2474 = vmul.f32 1.0, %v2473
        %v2475 = vrcp.pop %v2448
        %v2476 = vmul.f32 1.0, %v2475
        %v2477 = vrcp.pop %v2449
        %v2478 = vmul.f32 1.0, %v2477
        %v2479 = vrcp.pop %v2450
        %v2480 = vmul.f32 1.0, %v2479
        %v2481 = vrcp.pop %v2451
        %v2482 = vmul.f32 1.0, %v2481
        %v2483 = vrcp.pop %v2452
        %v2484 = vmul.f32 1.0, %v2483
        %v2485 = vmax.f32 %v2454, 0.0001
        %v2486 = vmax.f32 %v2456, 0.0001
        %v2487 = vmax.f32 %v2458, 0.0001
        %v2488 = vmax.f32 %v2460, 0.0001
        %v2489 = vmax.f32 %v2462, 0.0001
        %v2490 = vmax.f32 %v2464, 0.0001
        %v2491 = vmax.f32 %v2466, 0.0001
        %v2492 = vmax.f32 %v2468, 0.0001
        %v2493 = vmax.f32 %v2470, 0.0001
        %v2494 = vmax.f32 %v2472, 0.0001
        %v2495 = vmax.f32 %v2474, 0.0001
        %v2496 = vmax.f32 %v2476, 0.0001
        %v2497 = vmax.f32 %v2478, 0.0001
        %v2498 = vmax.f32 %v2480, 0.0001
        %v2499 = vmax.f32 %v2482, 0.0001
        %v2500 = vmax.f32 %v2484, 0.0001
        %v2501 = vmin.f32 %v2485, 0.9999
        %v2502 = vmin.f32 %v2486, 0.9999
        %v2503 = vmin.f32 %v2487, 0.9999
        %v2504 = vmin.f32 %v2488, 0.9999
        %v2505 = vmin.f32 %v2489, 0.9999
        %v2506 = vmin.f32 %v2490, 0.9999
        %v2507 = vmin.f32 %v2491, 0.9999
        %v2508 = vmin.f32 %v2492, 0.9999
        %v2509 = vmin.f32 %v2493, 0.9999
        %v2510 = vmin.f32 %v2494, 0.9999
        %v2511 = vmin.f32 %v2495, 0.9999
        %v2512 = vmin.f32 %v2496, 0.9999
        %v2513 = vmin.f32 %v2497, 0.9999
        %v2514 = vmin.f32 %v2498, 0.9999
        %v2515 = vmin.f32 %v2499, 0.9999
        %v2516 = vmin.f32 %v2500, 0.9999
        %vm2517 = vcmp.eq.f32.partialorder %v2373, 1.0
        %vm2518 = vcmp.eq.f32.partialorder %v2374, 1.0
        %vm2519 = vcmp.eq.f32.partialorder %v2375, 1.0
        %vm2520 = vcmp.eq.f32.partialorder %v2376, 1.0
        %vm2521 = vcmp.eq.f32.partialorder %v2377, 1.0
        %vm2522 = vcmp.eq.f32.partialorder %v2378, 1.0
        %vm2523 = vcmp.eq.f32.partialorder %v2379, 1.0
        %vm2524 = vcmp.eq.f32.partialorder %v2380, 1.0
        %vm2525 = vcmp.eq.f32.partialorder %v2381, 1.0
        %vm2526 = vcmp.eq.f32.partialorder %v2382, 1.0
        %vm2527 = vcmp.eq.f32.partialorder %v2383, 1.0
        %vm2528 = vcmp.eq.f32.partialorder %v2384, 1.0
        %vm2529 = vcmp.eq.f32.partialorder %v2385, 1.0
        %vm2530 = vcmp.eq.f32.partialorder %v2386, 1.0
        %vm2531 = vcmp.eq.f32.partialorder %v2387, 1.0
        %vm2532 = vcmp.eq.f32.partialorder %v2388, 1.0
        %v2533 = vsel %vm2517, 1, 0
        %v2534 = vsel %vm2518, 1, 0
        %v2535 = vsel %vm2519, 1, 0
        %v2536 = vsel %vm2520, 1, 0
        %v2537 = vsel %vm2521, 1, 0
        %v2538 = vsel %vm2522, 1, 0
        %v2539 = vsel %vm2523, 1, 0
        %v2540 = vsel %vm2524, 1, 0
        %v2541 = vsel %vm2525, 1, 0
        %v2542 = vsel %vm2526, 1, 0
        %v2543 = vsel %vm2527, 1, 0
        %v2544 = vsel %vm2528, 1, 0
        %v2545 = vsel %vm2529, 1, 0
        %v2546 = vsel %vm2530, 1, 0
        %v2547 = vsel %vm2531, 1, 0
        %v2548 = vsel %vm2532, 1, 0
        %v2549 = vcvt.s32.f32 %v2533
        %v2550 = vcvt.s32.f32 %v2534
        %v2551 = vcvt.s32.f32 %v2535
        %v2552 = vcvt.s32.f32 %v2536
        %v2553 = vcvt.s32.f32 %v2537
        %v2554 = vcvt.s32.f32 %v2538
        %v2555 = vcvt.s32.f32 %v2539
        %v2556 = vcvt.s32.f32 %v2540
        %v2557 = vcvt.s32.f32 %v2541
        %v2558 = vcvt.s32.f32 %v2542
        %v2559 = vcvt.s32.f32 %v2543
        %v2560 = vcvt.s32.f32 %v2544
        %v2561 = vcvt.s32.f32 %v2545
        %v2562 = vcvt.s32.f32 %v2546
        %v2563 = vcvt.s32.f32 %v2547
        %v2564 = vcvt.s32.f32 %v2548
        %v2565 = vsub.f32 1.0, %v2373
        %v2566 = vsub.f32 1.0, %v2374
        %v2567 = vsub.f32 1.0, %v2375
        %v2568 = vsub.f32 1.0, %v2376
        %v2569 = vsub.f32 1.0, %v2377
        %v2570 = vsub.f32 1.0, %v2378
        %v2571 = vsub.f32 1.0, %v2379
        %v2572 = vsub.f32 1.0, %v2380
        %v2573 = vsub.f32 1.0, %v2381
        %v2574 = vsub.f32 1.0, %v2382
        %v2575 = vsub.f32 1.0, %v2383
        %v2576 = vsub.f32 1.0, %v2384
        %v2577 = vsub.f32 1.0, %v2385
        %v2578 = vsub.f32 1.0, %v2386
        %v2579 = vsub.f32 1.0, %v2387
        %v2580 = vsub.f32 1.0, %v2388
        %v2581 = vmul.f32 %v2565, %v2565
        %v2582 = vmul.f32 %v2566, %v2566
        %v2583 = vmul.f32 %v2567, %v2567
        %v2584 = vmul.f32 %v2568, %v2568
        %v2585 = vmul.f32 %v2569, %v2569
        %v2586 = vmul.f32 %v2570, %v2570
        %v2587 = vmul.f32 %v2571, %v2571
        %v2588 = vmul.f32 %v2572, %v2572
        %v2589 = vmul.f32 %v2573, %v2573
        %v2590 = vmul.f32 %v2574, %v2574
        %v2591 = vmul.f32 %v2575, %v2575
        %v2592 = vmul.f32 %v2576, %v2576
        %v2593 = vmul.f32 %v2577, %v2577
        %v2594 = vmul.f32 %v2578, %v2578
        %v2595 = vmul.f32 %v2579, %v2579
        %v2596 = vmul.f32 %v2580, %v2580
        %v2597 = vmul.f32 %v2581, %v2581
        %v2598 = vmul.f32 %v2582, %v2582
        %v2599 = vmul.f32 %v2583, %v2583
        %v2600 = vmul.f32 %v2584, %v2584
        %v2601 = vmul.f32 %v2585, %v2585
        %v2602 = vmul.f32 %v2586, %v2586
        %v2603 = vmul.f32 %v2587, %v2587
        %v2604 = vmul.f32 %v2588, %v2588
        %v2605 = vmul.f32 %v2589, %v2589
        %v2606 = vmul.f32 %v2590, %v2590
        %v2607 = vmul.f32 %v2591, %v2591
        %v2608 = vmul.f32 %v2592, %v2592
        %v2609 = vmul.f32 %v2593, %v2593
        %v2610 = vmul.f32 %v2594, %v2594
        %v2611 = vmul.f32 %v2595, %v2595
        %v2612 = vmul.f32 %v2596, %v2596
        %v2613 = vsub.f32 1.0, %v2501
        %v2614 = vsub.f32 1.0, %v2502
        %v2615 = vsub.f32 1.0, %v2503
        %v2616 = vsub.f32 1.0, %v2504
        %v2617 = vsub.f32 1.0, %v2505
        %v2618 = vsub.f32 1.0, %v2506
        %v2619 = vsub.f32 1.0, %v2507
        %v2620 = vsub.f32 1.0, %v2508
        %v2621 = vsub.f32 1.0, %v2509
        %v2622 = vsub.f32 1.0, %v2510
        %v2623 = vsub.f32 1.0, %v2511
        %v2624 = vsub.f32 1.0, %v2512
        %v2625 = vsub.f32 1.0, %v2513
        %v2626 = vsub.f32 1.0, %v2514
        %v2627 = vsub.f32 1.0, %v2515
        %v2628 = vsub.f32 1.0, %v2516
        %v2629 = vlog2.pop %v2501
        %v2630 = vmul.f32 %v2629, 0.6931472
        %v2631 = vlog2.pop %v2502
        %v2632 = vmul.f32 %v2631, 0.6931472
        %v2633 = vlog2.pop %v2503
        %v2634 = vmul.f32 %v2633, 0.6931472
        %v2635 = vlog2.pop %v2504
        %v2636 = vmul.f32 %v2635, 0.6931472
        %v2637 = vlog2.pop %v2505
        %v2638 = vmul.f32 %v2637, 0.6931472
        %v2639 = vlog2.pop %v2506
        %v2640 = vmul.f32 %v2639, 0.6931472
        %v2641 = vlog2.pop %v2507
        %v2642 = vmul.f32 %v2641, 0.6931472
        %v2643 = vlog2.pop %v2508
        %v2644 = vmul.f32 %v2643, 0.6931472
        %v2645 = vlog2.pop %v2509
        %v2646 = vmul.f32 %v2645, 0.6931472
        %v2647 = vlog2.pop %v2510
        %v2648 = vmul.f32 %v2647, 0.6931472
        %v2649 = vlog2.pop %v2511
        %v2650 = vmul.f32 %v2649, 0.6931472
        %v2651 = vlog2.pop %v2512
        %v2652 = vmul.f32 %v2651, 0.6931472
        %v2653 = vlog2.pop %v2513
        %v2654 = vmul.f32 %v2653, 0.6931472
        %v2655 = vlog2.pop %v2514
        %v2656 = vmul.f32 %v2655, 0.6931472
        %v2657 = vlog2.pop %v2515
        %v2658 = vmul.f32 %v2657, 0.6931472
        %v2659 = vlog2.pop %v2516
        %v2660 = vmul.f32 %v2659, 0.6931472
        %v2661 = vmul.f32 %v2613, %v2613
        %v2662 = vmul.f32 %v2614, %v2614
        %v2663 = vmul.f32 %v2615, %v2615
        %v2664 = vmul.f32 %v2616, %v2616
        %v2665 = vmul.f32 %v2617, %v2617
        %v2666 = vmul.f32 %v2618, %v2618
        %v2667 = vmul.f32 %v2619, %v2619
        %v2668 = vmul.f32 %v2620, %v2620
        %v2669 = vmul.f32 %v2621, %v2621
        %v2670 = vmul.f32 %v2622, %v2622
        %v2671 = vmul.f32 %v2623, %v2623
        %v2672 = vmul.f32 %v2624, %v2624
        %v2673 = vmul.f32 %v2625, %v2625
        %v2674 = vmul.f32 %v2626, %v2626
        %v2675 = vmul.f32 %v2627, %v2627
        %v2676 = vmul.f32 %v2628, %v2628
        %v2677 = vmul.f32 %v2630, %v2661
        %v2678 = vmul.f32 %v2632, %v2662
        %v2679 = vmul.f32 %v2634, %v2663
        %v2680 = vmul.f32 %v2636, %v2664
        %v2681 = vmul.f32 %v2638, %v2665
        %v2682 = vmul.f32 %v2640, %v2666
        %v2683 = vmul.f32 %v2642, %v2667
        %v2684 = vmul.f32 %v2644, %v2668
        %v2685 = vmul.f32 %v2646, %v2669
        %v2686 = vmul.f32 %v2648, %v2670
        %v2687 = vmul.f32 %v2650, %v2671
        %v2688 = vmul.f32 %v2652, %v2672
        %v2689 = vmul.f32 %v2654, %v2673
        %v2690 = vmul.f32 %v2656, %v2674
        %v2691 = vmul.f32 %v2658, %v2675
        %v2692 = vmul.f32 %v2660, %v2676
        %v2693 = vmul.f32 %v2677, %v2549
        %v2694 = vmul.f32 %v2678, %v2550
        %v2695 = vmul.f32 %v2679, %v2551
        %v2696 = vmul.f32 %v2680, %v2552
        %v2697 = vmul.f32 %v2681, %v2553
        %v2698 = vmul.f32 %v2682, %v2554
        %v2699 = vmul.f32 %v2683, %v2555
        %v2700 = vmul.f32 %v2684, %v2556
        %v2701 = vmul.f32 %v2685, %v2557
        %v2702 = vmul.f32 %v2686, %v2558
        %v2703 = vmul.f32 %v2687, %v2559
        %v2704 = vmul.f32 %v2688, %v2560
        %v2705 = vmul.f32 %v2689, %v2561
        %v2706 = vmul.f32 %v2690, %v2562
        %v2707 = vmul.f32 %v2691, %v2563
        %v2708 = vmul.f32 %v2692, %v2564
        %v2709 = vlog2.pop %v2613
        %v2710 = vmul.f32 %v2709, 0.6931472
        %v2711 = vlog2.pop %v2614
        %v2712 = vmul.f32 %v2711, 0.6931472
        %v2713 = vlog2.pop %v2615
        %v2714 = vmul.f32 %v2713, 0.6931472
        %v2715 = vlog2.pop %v2616
        %v2716 = vmul.f32 %v2715, 0.6931472
        %v2717 = vlog2.pop %v2617
        %v2718 = vmul.f32 %v2717, 0.6931472
        %v2719 = vlog2.pop %v2618
        %v2720 = vmul.f32 %v2719, 0.6931472
        %v2721 = vlog2.pop %v2619
        %v2722 = vmul.f32 %v2721, 0.6931472
        %v2723 = vlog2.pop %v2620
        %v2724 = vmul.f32 %v2723, 0.6931472
        %v2725 = vlog2.pop %v2621
        %v2726 = vmul.f32 %v2725, 0.6931472
        %v2727 = vlog2.pop %v2622
        %v2728 = vmul.f32 %v2727, 0.6931472
        %v2729 = vlog2.pop %v2623
        %v2730 = vmul.f32 %v2729, 0.6931472
        %v2731 = vlog2.pop %v2624
        %v2732 = vmul.f32 %v2731, 0.6931472
        %v2733 = vlog2.pop %v2625
        %v2734 = vmul.f32 %v2733, 0.6931472
        %v2735 = vlog2.pop %v2626
        %v2736 = vmul.f32 %v2735, 0.6931472
        %v2737 = vlog2.pop %v2627
        %v2738 = vmul.f32 %v2737, 0.6931472
        %v2739 = vlog2.pop %v2628
        %v2740 = vmul.f32 %v2739, 0.6931472
        %v2741 = vmul.f32 %v2501, %v2501
        %v2742 = vmul.f32 %v2502, %v2502
        %v2743 = vmul.f32 %v2503, %v2503
        %v2744 = vmul.f32 %v2504, %v2504
        %v2745 = vmul.f32 %v2505, %v2505
        %v2746 = vmul.f32 %v2506, %v2506
        %v2747 = vmul.f32 %v2507, %v2507
        %v2748 = vmul.f32 %v2508, %v2508
        %v2749 = vmul.f32 %v2509, %v2509
        %v2750 = vmul.f32 %v2510, %v2510
        %v2751 = vmul.f32 %v2511, %v2511
        %v2752 = vmul.f32 %v2512, %v2512
        %v2753 = vmul.f32 %v2513, %v2513
        %v2754 = vmul.f32 %v2514, %v2514
        %v2755 = vmul.f32 %v2515, %v2515
        %v2756 = vmul.f32 %v2516, %v2516
        %v2757 = vmul.f32 %v2710, %v2741
        %v2758 = vmul.f32 %v2712, %v2742
        %v2759 = vmul.f32 %v2714, %v2743
        %v2760 = vmul.f32 %v2716, %v2744
        %v2761 = vmul.f32 %v2718, %v2745
        %v2762 = vmul.f32 %v2720, %v2746
        %v2763 = vmul.f32 %v2722, %v2747
        %v2764 = vmul.f32 %v2724, %v2748
        %v2765 = vmul.f32 %v2726, %v2749
        %v2766 = vmul.f32 %v2728, %v2750
        %v2767 = vmul.f32 %v2730, %v2751
        %v2768 = vmul.f32 %v2732, %v2752
        %v2769 = vmul.f32 %v2734, %v2753
        %v2770 = vmul.f32 %v2736, %v2754
        %v2771 = vmul.f32 %v2738, %v2755
        %v2772 = vmul.f32 %v2740, %v2756
        %v2773 = vmul.f32 %v2757, %v2597
        %v2774 = vmul.f32 %v2758, %v2598
        %v2775 = vmul.f32 %v2759, %v2599
        %v2776 = vmul.f32 %v2760, %v2600
        %v2777 = vmul.f32 %v2761, %v2601
        %v2778 = vmul.f32 %v2762, %v2602
        %v2779 = vmul.f32 %v2763, %v2603
        %v2780 = vmul.f32 %v2764, %v2604
        %v2781 = vmul.f32 %v2765, %v2605
        %v2782 = vmul.f32 %v2766, %v2606
        %v2783 = vmul.f32 %v2767, %v2607
        %v2784 = vmul.f32 %v2768, %v2608
        %v2785 = vmul.f32 %v2769, %v2609
        %v2786 = vmul.f32 %v2770, %v2610
        %v2787 = vmul.f32 %v2771, %v2611
        %v2788 = vmul.f32 %v2772, %v2612
        %v2789 = vsub.f32 1.0, %v2549
        %v2790 = vsub.f32 1.0, %v2550
        %v2791 = vsub.f32 1.0, %v2551
        %v2792 = vsub.f32 1.0, %v2552
        %v2793 = vsub.f32 1.0, %v2553
        %v2794 = vsub.f32 1.0, %v2554
        %v2795 = vsub.f32 1.0, %v2555
        %v2796 = vsub.f32 1.0, %v2556
        %v2797 = vsub.f32 1.0, %v2557
        %v2798 = vsub.f32 1.0, %v2558
        %v2799 = vsub.f32 1.0, %v2559
        %v2800 = vsub.f32 1.0, %v2560
        %v2801 = vsub.f32 1.0, %v2561
        %v2802 = vsub.f32 1.0, %v2562
        %v2803 = vsub.f32 1.0, %v2563
        %v2804 = vsub.f32 1.0, %v2564
        %v2805 = vmul.f32 %v2773, %v2789
        %v2806 = vmul.f32 %v2774, %v2790
        %v2807 = vmul.f32 %v2775, %v2791
        %v2808 = vmul.f32 %v2776, %v2792
        %v2809 = vmul.f32 %v2777, %v2793
        %v2810 = vmul.f32 %v2778, %v2794
        %v2811 = vmul.f32 %v2779, %v2795
        %v2812 = vmul.f32 %v2780, %v2796
        %v2813 = vmul.f32 %v2781, %v2797
        %v2814 = vmul.f32 %v2782, %v2798
        %v2815 = vmul.f32 %v2783, %v2799
        %v2816 = vmul.f32 %v2784, %v2800
        %v2817 = vmul.f32 %v2785, %v2801
        %v2818 = vmul.f32 %v2786, %v2802
        %v2819 = vmul.f32 %v2787, %v2803
        %v2820 = vmul.f32 %v2788, %v2804
        %p2821 = scmp.eq.s32.totalorder %s24, 0
        %p2822 = scmp.eq.s32.totalorder %s25, 0
        %p2823 = pnand %p2821, %p2822
        %p2824 = pneg %p2823
        // Predicated region
        $region45: #{tpu_custom_call.1} parent=43 // pred_check
          _
        $region46: #{tpu_custom_call.1} parent=43 // pred_check_branch
          %2826 = sbr.rel (%p2823) target = $region48
        $region47: #{tpu_custom_call.1} parent=43 // pred_region
          %s2827 = scalar_lea.smem [#allocation2], 0
          %2828 = sst [smem:[%s2827]] 0.0
          %s2829 = scalar_lea.smem [#allocation2], 1
          %2830 = sst [smem:[%s2829]] 0.0
          %s2831 = scalar_lea.smem [#allocation2], 2
          %2832 = sst [smem:[%s2831]] 0.0
        $region48: #{tpu_custom_call.1} parent=43 // pred_fallthru
          _
        %s2833 = sld [smem:[#allocation2]]
        %v2834 = vsel %vm2356, %v2693, 0.0
        %v2835 = vsel %vm2356, %v2694, 0.0
        %v2836 = vadd.f32 %v2834, %v2835
        %v2837 = vsel %vm2356, %v2695, 0.0
        %v2838 = vadd.f32 %v2836, %v2837
        %v2839 = vsel %vm2356, %v2696, 0.0
        %v2840 = vadd.f32 %v2838, %v2839
        %v2841 = vsel %vm2356, %v2697, 0.0
        %v2842 = vadd.f32 %v2840, %v2841
        %v2843 = vsel %vm2356, %v2698, 0.0
        %v2844 = vadd.f32 %v2842, %v2843
        %v2845 = vsel %vm2356, %v2699, 0.0
        %v2846 = vadd.f32 %v2844, %v2845
        %v2847 = vsel %vm2356, %v2700, 0.0
        %v2848 = vadd.f32 %v2846, %v2847
        %v2849 = vsel %vm2356, %v2701, 0.0
        %v2850 = vadd.f32 %v2848, %v2849
        %v2851 = vsel %vm2356, %v2702, 0.0
        %v2852 = vadd.f32 %v2850, %v2851
        %v2853 = vsel %vm2356, %v2703, 0.0
        %v2854 = vadd.f32 %v2852, %v2853
        %v2855 = vsel %vm2356, %v2704, 0.0
        %v2856 = vadd.f32 %v2854, %v2855
        %v2857 = vsel %vm2356, %v2705, 0.0
        %v2858 = vadd.f32 %v2856, %v2857
        %v2859 = vsel %vm2356, %v2706, 0.0
        %v2860 = vadd.f32 %v2858, %v2859
        %v2861 = vsel %vm2356, %v2707, 0.0
        %v2862 = vadd.f32 %v2860, %v2861
        %v2863 = vsel %vm2356, %v2708, 0.0
        %v2864 = vadd.f32 %v2862, %v2863
        %2865 = vadd.xlane.f32.xlu0 %v2864
        %v2866 = vpop.xlane.xlu0 %2865
        %v2867 = vrot.slane %v2866, 4
        %v2868 = vadd.f32 %v2866, %v2867
        %v2869 = vrot.slane %v2868, 2
        %v2870 = vadd.f32 %v2868, %v2869
        %v2871 = vrot.slane %v2870, 1
        %v2872 = vadd.f32 %v2870, %v2871
        %s2873 = vtos %v2872
        %s2874 = sadd.f32 %s2833, %s2873
        %s2875 = scalar_lea.smem [#allocation2], 0
        %2876 = sst [smem:[%s2875]] %s2874
        %s2877 = sld [smem:[#allocation2 + $0x1]]
        %v2878 = vsel %vm2356, %v2805, 0.0
        %v2879 = vsel %vm2356, %v2806, 0.0
        %v2880 = vadd.f32 %v2878, %v2879
        %v2881 = vsel %vm2356, %v2807, 0.0
        %v2882 = vadd.f32 %v2880, %v2881
        %v2883 = vsel %vm2356, %v2808, 0.0
        %v2884 = vadd.f32 %v2882, %v2883
        %v2885 = vsel %vm2356, %v2809, 0.0
        %v2886 = vadd.f32 %v2884, %v2885
        %v2887 = vsel %vm2356, %v2810, 0.0
        %v2888 = vadd.f32 %v2886, %v2887
        %v2889 = vsel %vm2356, %v2811, 0.0
        %v2890 = vadd.f32 %v2888, %v2889
        %v2891 = vsel %vm2356, %v2812, 0.0
        %v2892 = vadd.f32 %v2890, %v2891
        %v2893 = vsel %vm2356, %v2813, 0.0
        %v2894 = vadd.f32 %v2892, %v2893
        %v2895 = vsel %vm2356, %v2814, 0.0
        %v2896 = vadd.f32 %v2894, %v2895
        %v2897 = vsel %vm2356, %v2815, 0.0
        %v2898 = vadd.f32 %v2896, %v2897
        %v2899 = vsel %vm2356, %v2816, 0.0
        %v2900 = vadd.f32 %v2898, %v2899
        %v2901 = vsel %vm2356, %v2817, 0.0
        %v2902 = vadd.f32 %v2900, %v2901
        %v2903 = vsel %vm2356, %v2818, 0.0
        %v2904 = vadd.f32 %v2902, %v2903
        %v2905 = vsel %vm2356, %v2819, 0.0
        %v2906 = vadd.f32 %v2904, %v2905
        %v2907 = vsel %vm2356, %v2820, 0.0
        %v2908 = vadd.f32 %v2906, %v2907
        %2909 = vadd.xlane.f32.xlu0 %v2908
        %v2910 = vpop.xlane.xlu0 %2909
        %v2911 = vrot.slane %v2910, 4
        %v2912 = vadd.f32 %v2910, %v2911
        %v2913 = vrot.slane %v2912, 2
        %v2914 = vadd.f32 %v2912, %v2913
        %v2915 = vrot.slane %v2914, 1
        %v2916 = vadd.f32 %v2914, %v2915
        %s2917 = vtos %v2916
        %s2918 = sadd.f32 %s2877, %s2917
        %s2919 = scalar_lea.smem [#allocation2], 1
        %2920 = sst [smem:[%s2919]] %s2918
        %s2921 = sld [smem:[#allocation2 + $0x2]]
        %v2922 = vsel %vm2356, %v2549, 0.0
        %v2923 = vsel %vm2356, %v2550, 0.0
        %v2924 = vadd.f32 %v2922, %v2923
        %v2925 = vsel %vm2356, %v2551, 0.0
        %v2926 = vadd.f32 %v2924, %v2925
        %v2927 = vsel %vm2356, %v2552, 0.0
        %v2928 = vadd.f32 %v2926, %v2927
        %v2929 = vsel %vm2356, %v2553, 0.0
        %v2930 = vadd.f32 %v2928, %v2929
        %v2931 = vsel %vm2356, %v2554, 0.0
        %v2932 = vadd.f32 %v2930, %v2931
        %v2933 = vsel %vm2356, %v2555, 0.0
        %v2934 = vadd.f32 %v2932, %v2933
        %v2935 = vsel %vm2356, %v2556, 0.0
        %v2936 = vadd.f32 %v2934, %v2935
        %v2937 = vsel %vm2356, %v2557, 0.0
        %v2938 = vadd.f32 %v2936, %v2937
        %v2939 = vsel %vm2356, %v2558, 0.0
        %v2940 = vadd.f32 %v2938, %v2939
        %v2941 = vsel %vm2356, %v2559, 0.0
        %v2942 = vadd.f32 %v2940, %v2941
        %v2943 = vsel %vm2356, %v2560, 0.0
        %v2944 = vadd.f32 %v2942, %v2943
        %v2945 = vsel %vm2356, %v2561, 0.0
        %v2946 = vadd.f32 %v2944, %v2945
        %v2947 = vsel %vm2356, %v2562, 0.0
        %v2948 = vadd.f32 %v2946, %v2947
        %v2949 = vsel %vm2356, %v2563, 0.0
        %v2950 = vadd.f32 %v2948, %v2949
        %v2951 = vsel %vm2356, %v2564, 0.0
        %v2952 = vadd.f32 %v2950, %v2951
        %2953 = vadd.xlane.f32.xlu0 %v2952
        %v2954 = vpop.xlane.xlu0 %2953
        %v2955 = vrot.slane %v2954, 4
        %v2956 = vadd.f32 %v2954, %v2955
        %v2957 = vrot.slane %v2956, 2
        %v2958 = vadd.f32 %v2956, %v2957
        %v2959 = vrot.slane %v2958, 1
        %v2960 = vadd.f32 %v2958, %v2959
        %s2961 = vtos %v2960
        %s2962 = sadd.f32 %s2921, %s2961
        %s2963 = scalar_lea.smem [#allocation2], 2
        %2964 = sst [smem:[%s2963]] %s2962
        %s2965 = smul.u32 %s24, 2
        %s2966 = sadd.s32 %s2965, %s25
        %s2967 = smul.u32 16, %s2966
        %p2968 = scmp.lt.s32.totalorder %s2967, 63
        %s2969 = scalar_select %p2968, %s2967, 63
        %s2970 = smul.addr %s2969, 8
        %s2971 = scalar_lea.vmem %s6, %s2970
        // Predicated region
        $region49: #{tpu_custom_call.1} parent=43 // pred_check
          %p2972 = pneg %p194
        $region50: #{tpu_custom_call.1} parent=43 // pred_check_branch
          %2974 = sbr.rel (%p2972) target = $region52
        $region51: #{tpu_custom_call.1} parent=43 // pred_region
          %s2975 = smul.u32 %s24, 2
          %s2976 = sadd.s32 %s2975, %s25
          %s2977 = smul.u32 16, %s2976
        $region52: #{tpu_custom_call.1} parent=43 // pred_fallthru
          _
        // Predicated region
        $region53: #{tpu_custom_call.1} parent=43 // pred_check
          %p2978 = pneg %p215
        $region54: #{tpu_custom_call.1} parent=43 // pred_check_branch
          %2980 = sbr.rel (%p2978) target = $region56
        $region55: #{tpu_custom_call.1} parent=43 // pred_region
          %s2982 = ssub.s32 16, 16
          %2983 = vsyncadd [#allocation3], %s2982
          %2986 = dma.smem_to_hbm [#allocation2], 16, %s7, [#allocation3]
        $region56: #{tpu_custom_call.1} parent=43 // pred_fallthru
          _
        // Predicated region
        $region57: #{tpu_custom_call.1} parent=43 // pred_check
          %p2987 = pneg %p215
        $region58: #{tpu_custom_call.1} parent=43 // pred_check_branch
          %2989 = sbr.rel (%p2987) target = $region60
        $region59: #{tpu_custom_call.1} parent=43 // pred_region
          %2990 = dma.done [#allocation3], 16
        $region60: #{tpu_custom_call.1} parent=43 // pred_fallthru
          _
        %2991 = sfence
      $region44: #{tpu_custom_call.1} parent=5 // pred_fallthru
        _
      %p2992 = scmp.le.s32.totalorder 2, %s15
      // Predicated region
      $region61: #{tpu_custom_call.1} parent=5 // pred_check
        %p2993 = pneg %p2992
      $region62: #{tpu_custom_call.1} parent=5 // pred_check_branch
        %2995 = sbr.rel (%p2993) target = $region64
      $region63: #{tpu_custom_call.1} parent=5 // pred_region
        %s2996 = ssub.s32 %s15, 2
        // Predicated region
        $region65: #{tpu_custom_call.1} parent=63 // pred_check
          %p2997 = pneg %p200
        $region66: #{tpu_custom_call.1} parent=63 // pred_check_branch
          %2999 = sbr.rel (%p2997) target = $region68
        $region67: #{tpu_custom_call.1} parent=63 // pred_region
          %s3000 = smul.u32 %s26, 2
          %s3001 = sadd.s32 %s3000, %s27
          %s3002 = smul.u32 16, %s3001
          %p3003 = scmp.lt.s32.totalorder %s3002, 63
          %s3004 = scalar_select %p3003, %s3002, 63
          %s3005 = smul.addr %s3004, 8
          %s3006 = scalar_lea.vmem %s6, %s3005
        $region68: #{tpu_custom_call.1} parent=63 // pred_fallthru
          _
      $region64: #{tpu_custom_call.1} parent=5 // pred_fallthru
        _
    $region6: #{tpu_custom_call.1} parent=1 // loop_footer
      %s19 = sadd.s32 1, %s15
    $region7: #{tpu_custom_call.1} parent=1 // loop_footer_branch
      %14 = sbr.rel target = $region3
    $region8: #{tpu_custom_call.1} parent=1 // loop_exit
      _
    %3007 = vsyncpa [#allocation3], 1
    %s3008 = scalar_lea.sflag [#allocation3], 1
    %3009 = vsyncpa %s3008, 1

</llo_original>
